<compile_context>
chip_gen: v7x
topology: tpu7x:2x2x1
jax: 0.10.0
libtpu: 0.0.40
codegen_flags: <defaults>
</compile_context>

<pallas_src>
import functools

import jax
import jax.numpy as jnp
import numpy as np
from jax.experimental import pallas as pl
from jax.experimental.pallas import tpu as pltpu


_POOL_KS = (3, 5, 7)      # cascaded max-pool kernel sizes (stride 1, 'same')


def _maxpool_same_flat(y, pbuf, col, H, W, k, neg):
    """k x k max-pool (stride 1, 'same') on a flattened (H*W, C) image in VMEM.

    Separable: column pass (W-axis shifts == row shifts by +-d, masked at
    image-row boundaries with the precomputed `col` iota), then row pass
    (H-axis shifts by +-d*W, sublane-aligned when W % 8 == 0; borders handled
    by the -inf pad rows of `pbuf`, so no mask is needed).
    """
    p = k // 2
    M = H * W
    top = (pbuf.shape[0] - M) // 2          # -inf rows above the image

    # ---- column (W) pass: max over the k-wide row window ----
    pbuf[top:top + M, :] = y
    acc = y
    for d in range(1, p + 1):
        plus = pbuf[top + d:top + d + M, :]          # element (h, w + d)
        acc = jnp.maximum(acc, jnp.where(col < W - d, plus, neg))
        minus = pbuf[top - d:top - d + M, :]         # element (h, w - d)
        acc = jnp.maximum(acc, jnp.where(col >= d, minus, neg))

    # ---- row (H) pass: max over the k-tall column window ----
    pbuf[top:top + M, :] = acc
    out = acc
    for d in range(1, p + 1):
        s = d * W                                    # aligned offset (W % 8 == 0)
        out = jnp.maximum(out, pbuf[top + s:top + s + M, :])
        out = jnp.maximum(out, pbuf[top - s:top - s + M, :])
    return out


def _sppf_fused_kernel(x_ref, w1_ref, b1_ref, w2_ref, b2_ref, o_ref, pbuf,
                       *, H, W):
    M = H * W
    C = pbuf.shape[1]
    neg = jnp.float32(-jnp.inf)

    # -inf border rows of the padded pooling scratch (set once per grid step;
    # the center region is overwritten by every pool pass).
    top = (pbuf.shape[0] - M) // 2
    pbuf[0:top, :] = jnp.full((top, C), neg, jnp.float32)
    pbuf[top + M:, :] = jnp.full((pbuf.shape[0] - top - M, C), neg, jnp.float32)

    # Column index within an image row, hoisted out of the pooling loops.
    col = jax.lax.broadcasted_iota(jnp.int32, (M, C), 0) % W

    # ---- modConv #1: 1x1 conv (BN scale pre-folded into w1) + bias + SiLU ----
    x_bf16 = x_ref[0].astype(jnp.bfloat16)           # bf16 MXU inputs (v6e/v7x)
    y1 = jnp.dot(x_bf16, w1_ref[...], preferred_element_type=jnp.float32)
    y1 = y1 + b1_ref[...]
    y1 = y1 * jax.nn.sigmoid(y1)                     # SiLU in f32 (EUP slot)

    # ---- cascaded max-pools, entirely in VMEM ----
    feats = [y1]
    m = y1
    for k in _POOL_KS:
        m = _maxpool_same_flat(m, pbuf, col, H, W, k, neg)
        feats.append(m)

    # ---- modConv #2 on the virtual concat [y1 | m1 | m2 | m3] ----
    # w2 is pre-split into four (Cout, Cout) row blocks -> block-additive matmul
    # accumulated in f32 (no concatenation is ever materialized).
    acc = None
    for j, f in enumerate(feats):
        part = jnp.dot(f.astype(jnp.bfloat16), w2_ref[j],
                       preferred_element_type=jnp.float32)
        acc = part if acc is None else acc + part
    y2 = acc + b2_ref[...]
    o_ref[0] = (y2 * jax.nn.sigmoid(y2)).astype(o_ref.dtype)


def sppf_forward(x_nchw, params):
    N, Cin, H, W = x_nchw.shape
    Cout = params["w1"].shape[1]
    M = H * W
    pad_rows = (max(_POOL_KS) // 2) * W     # -inf rows above/below the image

    # Layout glue only (module interface is NCHW); all compute is in the kernel.
    x2d = jnp.transpose(x_nchw, (0, 2, 3, 1)).reshape(N, M, Cin)

    kern = functools.partial(_sppf_fused_kernel, H=H, W=W)
    out = pl.pallas_call(
        kern,
        out_shape=jax.ShapeDtypeStruct((N, M, Cout), jnp.float32),
        grid=(N,),
        in_specs=[
            pl.BlockSpec((1, M, Cin), lambda n: (n, 0, 0)),       # x (per batch)
            pl.BlockSpec((Cin, Cout), lambda n: (0, 0)),          # w1 (bf16, folded)
            pl.BlockSpec((1, Cout), lambda n: (0, 0)),            # b1 (f32)
            pl.BlockSpec((4, Cout, Cout), lambda n: (0, 0, 0)),   # w2 blocks (bf16)
            pl.BlockSpec((1, Cout), lambda n: (0, 0)),            # b2 (f32)
        ],
        out_specs=pl.BlockSpec((1, M, Cout), lambda n: (n, 0, 0)),
        scratch_shapes=[pltpu.VMEM((M + 2 * pad_rows, Cout), jnp.float32)],
        compiler_params=pltpu.CompilerParams(
            dimension_semantics=("parallel",),      # megacore / 2 TCs on v7x
            vmem_limit_bytes=32 * 1024 * 1024,      # well under v7x 64 MiB VMEM
        ),
    )(x2d, params["w1"], params["b1"], params["w2"], params["b2"])

    return jnp.transpose(out.reshape(N, H, W, Cout), (0, 3, 1, 2))


def init_params(key, c_in, c_out):
    """BN(eval) scale is folded into the conv weights (stored bf16 for the MXU);
    the remaining per-output-channel bias stays in f32."""
    eps = 1e-5
    ks = jax.random.split(key, 10)
    w1 = 0.1 * jax.random.normal(ks[0], (c_in, c_out), jnp.float32)
    w2 = 0.1 * jax.random.normal(ks[1], (4 * c_out, c_out), jnp.float32)
    g1 = 1.0 + 0.1 * jax.random.normal(ks[2], (c_out,), jnp.float32)
    be1 = 0.1 * jax.random.normal(ks[3], (c_out,), jnp.float32)
    mu1 = 0.1 * jax.random.normal(ks[4], (c_out,), jnp.float32)
    v1 = 0.5 + jax.random.uniform(ks[5], (c_out,), jnp.float32)
    g2 = 1.0 + 0.1 * jax.random.normal(ks[6], (c_out,), jnp.float32)
    be2 = 0.1 * jax.random.normal(ks[7], (c_out,), jnp.float32)
    mu2 = 0.1 * jax.random.normal(ks[8], (c_out,), jnp.float32)
    v2 = 0.5 + jax.random.uniform(ks[9], (c_out,), jnp.float32)
    s1 = g1 / jnp.sqrt(v1 + eps)
    s2 = g2 / jnp.sqrt(v2 + eps)
    return dict(
        w1=(w1 * s1[None, :]).astype(jnp.bfloat16),                       # (Cin, Cout)
        b1=(be1 - mu1 * s1).reshape(1, c_out).astype(jnp.float32),
        w2=(w2 * s2[None, :]).reshape(4, c_out, c_out).astype(jnp.bfloat16),
        b2=(be2 - mu2 * s2).reshape(1, c_out).astype(jnp.float32),
    )


def ref_forward(x_nchw, params):
    """Pure-JAX/XLA reference with the same bf16 quantization of matmul inputs
    (so the comparison isolates kernel correctness, not dtype policy)."""
    x = jnp.transpose(x_nchw, (0, 2, 3, 1))
    c_out = params["w1"].shape[1]

    def modconv(z, w, b):                     # 1x1 conv + folded BN + SiLU
        y = jnp.einsum("nhwc,cd->nhwd", z.astype(jnp.bfloat16), w,
                       preferred_element_type=jnp.float32) + b
        return y * jax.nn.sigmoid(y)

    def maxpool_same(z, k):
        p = k // 2
        return jax.lax.reduce_window(z, -jnp.inf, jax.lax.max,
                                     (1, k, k, 1), (1, 1, 1, 1),
                                     ((0, 0), (p, p), (p, p), (0, 0)))

    y1 = modconv(x, params["w1"], params["b1"])
    m1 = maxpool_same(y1, 3)
    m2 = maxpool_same(m1, 5)
    m3 = maxpool_same(m2, 7)
    cat = jnp.concatenate([y1, m1, m2, m3], axis=-1)
    y2 = modconv(cat, params["w2"].reshape(4 * c_out, c_out), params["b2"])
    return jnp.transpose(y2, (0, 3, 1, 2))


if __name__ == "__main__":
    # modConv instances inside SPPF: 1x1 conv, stride 1, pad 0.
    c_in = 8
    c_out = 8          # SPPF forward requires c_in == c_out to type-check
    N, H, W = 2, 16, 16

    key = jax.random.PRNGKey(0)
    kx, kp = jax.random.split(key)
    x_nchw = jax.random.normal(kx, (N, c_in, H, W), jnp.float32)
    params = init_params(kp, c_in, c_out)

    fwd = jax.jit(sppf_forward)
    out = jax.block_until_ready(fwd(x_nchw, params))
    assert out.shape == (N, c_out, H, W), out.shape

    ref = jax.block_until_ready(ref_forward(x_nchw, params))
    # tolerance covers bf16 MXU inputs / accumulation-order differences
    np.testing.assert_allclose(np.asarray(out), np.asarray(ref),
                               rtol=1e-2, atol=1e-2)
    print("KERNEL_OK")
</pallas_src>

<mosaic_0001>
module attributes {stable_mosaic.version = 11 : i64} {
  func.func @_sppf_fused_kernel(%arg0: i32, %arg1: memref<1x256x8xf32, #tpu.memory_space<vmem>>, %arg2: memref<8x8xbf16, #tpu.memory_space<vmem>>, %arg3: memref<1x8xf32, #tpu.memory_space<vmem>>, %arg4: memref<4x8x8xbf16, #tpu.memory_space<vmem>>, %arg5: memref<1x8xf32, #tpu.memory_space<vmem>>, %arg6: memref<1x256x8xf32, #tpu.memory_space<vmem>>, %arg7: memref<352x8xf32, #tpu.memory_space<vmem>>) attributes {dimension_semantics = [#tpu.dimension_semantics<parallel>], iteration_bounds = array<i64: 2>, scalar_prefetch = 0 : i64, scratch_operands = 1 : i64, tpu.core_type = #tpu.core_type<tc>, window_params = [{transform_indices = @transform_0, window_bounds = array<i64: 1, 256, 8>}, {pipeline_mode = #tpu.pipeline_mode<synchronous>, transform_indices = @transform_1, window_bounds = array<i64: 8, 8>}, {pipeline_mode = #tpu.pipeline_mode<synchronous>, transform_indices = @transform_2, window_bounds = array<i64: 1, 8>}, {pipeline_mode = #tpu.pipeline_mode<synchronous>, transform_indices = @transform_3, window_bounds = array<i64: 4, 8, 8>}, {pipeline_mode = #tpu.pipeline_mode<synchronous>, transform_indices = @transform_4, window_bounds = array<i64: 1, 8>}, {transform_indices = @transform_5, window_bounds = array<i64: 1, 256, 8>}]} {
    %cst = arith.constant 0xFF800000 : f32
    %0 = vector.broadcast %cst : f32 to vector<48x8xf32>
    %c0 = arith.constant 0 : index
    %c0_0 = arith.constant 0 : index
    %1 = vector.load %arg7[%c0, %c0_0] : memref<352x8xf32, #tpu.memory_space<vmem>>, vector<48x8xf32>
    tpu.vector_store %arg7[%c0, %c0_0], %0 {strides = array<i32>} : memref<352x8xf32, #tpu.memory_space<vmem>>, vector<48x8xf32>,
    %cst_1 = arith.constant 0xFF800000 : f32
    %2 = vector.broadcast %cst_1 : f32 to vector<48x8xf32>
    %c304 = arith.constant 304 : index
    %c0_2 = arith.constant 0 : index
    %3 = vector.load %arg7[%c304, %c0_2] : memref<352x8xf32, #tpu.memory_space<vmem>>, vector<48x8xf32>
    tpu.vector_store %arg7[%c304, %c0_2], %2 {strides = array<i32>} : memref<352x8xf32, #tpu.memory_space<vmem>>, vector<48x8xf32>,
    %4 = tpu.iota {dimensions = array<i32: 0>} : vector<256x8xi32>
    %c16_i32 = arith.constant 16 : i32
    %c0_i32 = arith.constant 0 : i32
    %5 = arith.cmpi eq, %c16_i32, %c0_i32 : i32
    %c1_i32 = arith.constant 1 : i32
    %6 = arith.select %5, %c1_i32, %c16_i32 : i32
    %7 = vector.broadcast %6 : i32 to vector<256x8xi32>
    %8 = arith.remsi %4, %7 : vector<256x8xi32>
    %c0_i32_3 = arith.constant 0 : i32
    %9 = vector.broadcast %c0_i32_3 : i32 to vector<256x8xi32>
    %10 = arith.cmpi ne, %8, %9 : vector<256x8xi32>
    %c0_i32_4 = arith.constant 0 : i32
    %11 = vector.broadcast %c0_i32_4 : i32 to vector<256x8xi32>
    %12 = arith.cmpi slt, %8, %11 : vector<256x8xi32>
    %c0_i32_5 = arith.constant 0 : i32
    %13 = arith.cmpi slt, %6, %c0_i32_5 : i32
    %14 = vector.broadcast %13 : i1 to vector<256x8xi1>
    %15 = vector.broadcast %14 : vector<256x8xi1> to vector<256x8xi1>
    %16 = arith.xori %12, %15 : vector<256x8xi1>
    %17 = arith.andi %16, %10 : vector<256x8xi1>
    %18 = vector.broadcast %6 : i32 to vector<256x8xi32>
    %19 = arith.addi %8, %18 : vector<256x8xi32>
    %20 = arith.select %17, %19, %8 : vector<256x8xi1>, vector<256x8xi32>
    %c0_6 = arith.constant 0 : index
    %c0_7 = arith.constant 0 : index
    %c0_8 = arith.constant 0 : index
    %21 = vector.load %arg1[%c0_6, %c0_7, %c0_8] : memref<1x256x8xf32, #tpu.memory_space<vmem>>, vector<1x256x8xf32>
    %22 = vector.shape_cast %21 : vector<1x256x8xf32> to vector<256x8xf32>
    %23 = arith.truncf %22 : vector<256x8xf32> to vector<256x8xbf16>
    %c0_9 = arith.constant 0 : index
    %c0_10 = arith.constant 0 : index
    %24 = vector.load %arg2[%c0_9, %c0_10] : memref<8x8xbf16, #tpu.memory_space<vmem>>, vector<8x8xbf16>
    %cst_11 = arith.constant dense<0.000000e+00> : vector<256x8xf32>
    %25 = tpu.matmul %23, %24, %cst_11 {dimension_numbers = #tpu.dot_dimension_numbers<[1], [0], [0], [1], [0, 0, 1, 1], [], []>} : vector<256x8xbf16>, vector<8x8xbf16>, vector<256x8xf32> -> vector<256x8xf32>
    %c0_12 = arith.constant 0 : index
    %c0_13 = arith.constant 0 : index
    %26 = vector.load %arg3[%c0_12, %c0_13] : memref<1x8xf32, #tpu.memory_space<vmem>>, vector<1x8xf32>
    %27 = vector.broadcast %26 : vector<1x8xf32> to vector<256x8xf32>
    %28 = arith.addf %25, %27 : vector<256x8xf32>
    %29 = arith.negf %28 : vector<256x8xf32>
    %30 = math.exp %29 : vector<256x8xf32>
    %cst_14 = arith.constant 1.000000e+00 : f32
    %31 = vector.broadcast %cst_14 : f32 to vector<256x8xf32>
    %32 = arith.addf %31, %30 : vector<256x8xf32>
    %33 = arith.divf %31, %32 : vector<256x8xf32>
    %34 = arith.mulf %28, %33 : vector<256x8xf32>
    %c48 = arith.constant 48 : index
    %c0_15 = arith.constant 0 : index
    %35 = vector.load %arg7[%c48, %c0_15] : memref<352x8xf32, #tpu.memory_space<vmem>>, vector<256x8xf32>
    tpu.vector_store %arg7[%c48, %c0_15], %34 {strides = array<i32>} : memref<352x8xf32, #tpu.memory_space<vmem>>, vector<256x8xf32>,
    %c49 = arith.constant 49 : index
    %c0_16 = arith.constant 0 : index
    %36 = vector.load %arg7[%c49, %c0_16] : memref<352x8xf32, #tpu.memory_space<vmem>>, vector<256x8xf32>
    %c15_i32 = arith.constant 15 : i32
    %37 = vector.broadcast %c15_i32 : i32 to vector<256x8xi32>
    %38 = arith.cmpi slt, %20, %37 : vector<256x8xi32>
    %cst_17 = arith.constant 0xFF800000 : f32
    %39 = vector.broadcast %cst_17 : f32 to vector<256x8xf32>
    %40 = arith.select %38, %36, %39 : vector<256x8xi1>, vector<256x8xf32>
    %41 = arith.maximumf %34, %40 : vector<256x8xf32>
    %c47 = arith.constant 47 : index
    %c0_18 = arith.constant 0 : index
    %42 = vector.load %arg7[%c47, %c0_18] : memref<352x8xf32, #tpu.memory_space<vmem>>, vector<256x8xf32>
    %c1_i32_19 = arith.constant 1 : i32
    %43 = vector.broadcast %c1_i32_19 : i32 to vector<256x8xi32>
    %44 = arith.cmpi sge, %20, %43 : vector<256x8xi32>
    %cst_20 = arith.constant 0xFF800000 : f32
    %45 = vector.broadcast %cst_20 : f32 to vector<256x8xf32>
    %46 = arith.select %44, %42, %45 : vector<256x8xi1>, vector<256x8xf32>
    %47 = arith.maximumf %41, %46 : vector<256x8xf32>
    %c48_21 = arith.constant 48 : index
    %c0_22 = arith.constant 0 : index
    %48 = vector.load %arg7[%c48_21, %c0_22] : memref<352x8xf32, #tpu.memory_space<vmem>>, vector<256x8xf32>
    tpu.vector_store %arg7[%c48_21, %c0_22], %47 {strides = array<i32>} : memref<352x8xf32, #tpu.memory_space<vmem>>, vector<256x8xf32>,
    %c64 = arith.constant 64 : index
    %c0_23 = arith.constant 0 : index
    %49 = vector.load %arg7[%c64, %c0_23] : memref<352x8xf32, #tpu.memory_space<vmem>>, vector<256x8xf32>
    %50 = arith.maximumf %47, %49 : vector<256x8xf32>
    %c32 = arith.constant 32 : index
    %c0_24 = arith.constant 0 : index
    %51 = vector.load %arg7[%c32, %c0_24] : memref<352x8xf32, #tpu.memory_space<vmem>>, vector<256x8xf32>
    %52 = arith.maximumf %50, %51 : vector<256x8xf32>
    %c48_25 = arith.constant 48 : index
    %c0_26 = arith.constant 0 : index
    %53 = vector.load %arg7[%c48_25, %c0_26] : memref<352x8xf32, #tpu.memory_space<vmem>>, vector<256x8xf32>
    tpu.vector_store %arg7[%c48_25, %c0_26], %52 {strides = array<i32>} : memref<352x8xf32, #tpu.memory_space<vmem>>, vector<256x8xf32>,
    %c49_27 = arith.constant 49 : index
    %c0_28 = arith.constant 0 : index
    %54 = vector.load %arg7[%c49_27, %c0_28] : memref<352x8xf32, #tpu.memory_space<vmem>>, vector<256x8xf32>
    %c15_i32_29 = arith.constant 15 : i32
    %55 = vector.broadcast %c15_i32_29 : i32 to vector<256x8xi32>
    %56 = arith.cmpi slt, %20, %55 : vector<256x8xi32>
    %cst_30 = arith.constant 0xFF800000 : f32
    %57 = vector.broadcast %cst_30 : f32 to vector<256x8xf32>
    %58 = arith.select %56, %54, %57 : vector<256x8xi1>, vector<256x8xf32>
    %59 = arith.maximumf %52, %58 : vector<256x8xf32>
    %c47_31 = arith.constant 47 : index
    %c0_32 = arith.constant 0 : index
    %60 = vector.load %arg7[%c47_31, %c0_32] : memref<352x8xf32, #tpu.memory_space<vmem>>, vector<256x8xf32>
    %c1_i32_33 = arith.constant 1 : i32
    %61 = vector.broadcast %c1_i32_33 : i32 to vector<256x8xi32>
    %62 = arith.cmpi sge, %20, %61 : vector<256x8xi32>
    %cst_34 = arith.constant 0xFF800000 : f32
    %63 = vector.broadcast %cst_34 : f32 to vector<256x8xf32>
    %64 = arith.select %62, %60, %63 : vector<256x8xi1>, vector<256x8xf32>
    %65 = arith.maximumf %59, %64 : vector<256x8xf32>
    %c50 = arith.constant 50 : index
    %c0_35 = arith.constant 0 : index
    %66 = vector.load %arg7[%c50, %c0_35] : memref<352x8xf32, #tpu.memory_space<vmem>>, vector<256x8xf32>
    %c14_i32 = arith.constant 14 : i32
    %67 = vector.broadcast %c14_i32 : i32 to vector<256x8xi32>
    %68 = arith.cmpi slt, %20, %67 : vector<256x8xi32>
    %cst_36 = arith.constant 0xFF800000 : f32
    %69 = vector.broadcast %cst_36 : f32 to vector<256x8xf32>
    %70 = arith.select %68, %66, %69 : vector<256x8xi1>, vector<256x8xf32>
    %71 = arith.maximumf %65, %70 : vector<256x8xf32>
    %c46 = arith.constant 46 : index
    %c0_37 = arith.constant 0 : index
    %72 = vector.load %arg7[%c46, %c0_37] : memref<352x8xf32, #tpu.memory_space<vmem>>, vector<256x8xf32>
    %c2_i32 = arith.constant 2 : i32
    %73 = vector.broadcast %c2_i32 : i32 to vector<256x8xi32>
    %74 = arith.cmpi sge, %20, %73 : vector<256x8xi32>
    %cst_38 = arith.constant 0xFF800000 : f32
    %75 = vector.broadcast %cst_38 : f32 to vector<256x8xf32>
    %76 = arith.select %74, %72, %75 : vector<256x8xi1>, vector<256x8xf32>
    %77 = arith.maximumf %71, %76 : vector<256x8xf32>
    %c48_39 = arith.constant 48 : index
    %c0_40 = arith.constant 0 : index
    %78 = vector.load %arg7[%c48_39, %c0_40] : memref<352x8xf32, #tpu.memory_space<vmem>>, vector<256x8xf32>
    tpu.vector_store %arg7[%c48_39, %c0_40], %77 {strides = array<i32>} : memref<352x8xf32, #tpu.memory_space<vmem>>, vector<256x8xf32>,
    %c64_41 = arith.constant 64 : index
    %c0_42 = arith.constant 0 : index
    %79 = vector.load %arg7[%c64_41, %c0_42] : memref<352x8xf32, #tpu.memory_space<vmem>>, vector<256x8xf32>
    %80 = arith.maximumf %77, %79 : vector<256x8xf32>
    %c32_43 = arith.constant 32 : index
    %c0_44 = arith.constant 0 : index
    %81 = vector.load %arg7[%c32_43, %c0_44] : memref<352x8xf32, #tpu.memory_space<vmem>>, vector<256x8xf32>
    %82 = arith.maximumf %80, %81 : vector<256x8xf32>
    %c80 = arith.constant 80 : index
    %c0_45 = arith.constant 0 : index
    %83 = vector.load %arg7[%c80, %c0_45] : memref<352x8xf32, #tpu.memory_space<vmem>>, vector<256x8xf32>
    %84 = arith.maximumf %82, %83 : vector<256x8xf32>
    %c16 = arith.constant 16 : index
    %c0_46 = arith.constant 0 : index
    %85 = vector.load %arg7[%c16, %c0_46] : memref<352x8xf32, #tpu.memory_space<vmem>>, vector<256x8xf32>
    %86 = arith.maximumf %84, %85 : vector<256x8xf32>
    %c48_47 = arith.constant 48 : index
    %c0_48 = arith.constant 0 : index
    %87 = vector.load %arg7[%c48_47, %c0_48] : memref<352x8xf32, #tpu.memory_space<vmem>>, vector<256x8xf32>
    tpu.vector_store %arg7[%c48_47, %c0_48], %86 {strides = array<i32>} : memref<352x8xf32, #tpu.memory_space<vmem>>, vector<256x8xf32>,
    %c49_49 = arith.constant 49 : index
    %c0_50 = arith.constant 0 : index
    %88 = vector.load %arg7[%c49_49, %c0_50] : memref<352x8xf32, #tpu.memory_space<vmem>>, vector<256x8xf32>
    %c15_i32_51 = arith.constant 15 : i32
    %89 = vector.broadcast %c15_i32_51 : i32 to vector<256x8xi32>
    %90 = arith.cmpi slt, %20, %89 : vector<256x8xi32>
    %cst_52 = arith.constant 0xFF800000 : f32
    %91 = vector.broadcast %cst_52 : f32 to vector<256x8xf32>
    %92 = arith.select %90, %88, %91 : vector<256x8xi1>, vector<256x8xf32>
    %93 = arith.maximumf %86, %92 : vector<256x8xf32>
    %c47_53 = arith.constant 47 : index
    %c0_54 = arith.constant 0 : index
    %94 = vector.load %arg7[%c47_53, %c0_54] : memref<352x8xf32, #tpu.memory_space<vmem>>, vector<256x8xf32>
    %c1_i32_55 = arith.constant 1 : i32
    %95 = vector.broadcast %c1_i32_55 : i32 to vector<256x8xi32>
    %96 = arith.cmpi sge, %20, %95 : vector<256x8xi32>
    %cst_56 = arith.constant 0xFF800000 : f32
    %97 = vector.broadcast %cst_56 : f32 to vector<256x8xf32>
    %98 = arith.select %96, %94, %97 : vector<256x8xi1>, vector<256x8xf32>
    %99 = arith.maximumf %93, %98 : vector<256x8xf32>
    %c50_57 = arith.constant 50 : index
    %c0_58 = arith.constant 0 : index
    %100 = vector.load %arg7[%c50_57, %c0_58] : memref<352x8xf32, #tpu.memory_space<vmem>>, vector<256x8xf32>
    %c14_i32_59 = arith.constant 14 : i32
    %101 = vector.broadcast %c14_i32_59 : i32 to vector<256x8xi32>
    %102 = arith.cmpi slt, %20, %101 : vector<256x8xi32>
    %cst_60 = arith.constant 0xFF800000 : f32
    %103 = vector.broadcast %cst_60 : f32 to vector<256x8xf32>
    %104 = arith.select %102, %100, %103 : vector<256x8xi1>, vector<256x8xf32>
    %105 = arith.maximumf %99, %104 : vector<256x8xf32>
    %c46_61 = arith.constant 46 : index
    %c0_62 = arith.constant 0 : index
    %106 = vector.load %arg7[%c46_61, %c0_62] : memref<352x8xf32, #tpu.memory_space<vmem>>, vector<256x8xf32>
    %c2_i32_63 = arith.constant 2 : i32
    %107 = vector.broadcast %c2_i32_63 : i32 to vector<256x8xi32>
    %108 = arith.cmpi sge, %20, %107 : vector<256x8xi32>
    %cst_64 = arith.constant 0xFF800000 : f32
    %109 = vector.broadcast %cst_64 : f32 to vector<256x8xf32>
    %110 = arith.select %108, %106, %109 : vector<256x8xi1>, vector<256x8xf32>
    %111 = arith.maximumf %105, %110 : vector<256x8xf32>
    %c51 = arith.constant 51 : index
    %c0_65 = arith.constant 0 : index
    %112 = vector.load %arg7[%c51, %c0_65] : memref<352x8xf32, #tpu.memory_space<vmem>>, vector<256x8xf32>
    %c13_i32 = arith.constant 13 : i32
    %113 = vector.broadcast %c13_i32 : i32 to vector<256x8xi32>
    %114 = arith.cmpi slt, %20, %113 : vector<256x8xi32>
    %cst_66 = arith.constant 0xFF800000 : f32
    %115 = vector.broadcast %cst_66 : f32 to vector<256x8xf32>
    %116 = arith.select %114, %112, %115 : vector<256x8xi1>, vector<256x8xf32>
    %117 = arith.maximumf %111, %116 : vector<256x8xf32>
    %c45 = arith.constant 45 : index
    %c0_67 = arith.constant 0 : index
    %118 = vector.load %arg7[%c45, %c0_67] : memref<352x8xf32, #tpu.memory_space<vmem>>, vector<256x8xf32>
    %c3_i32 = arith.constant 3 : i32
    %119 = vector.broadcast %c3_i32 : i32 to vector<256x8xi32>
    %120 = arith.cmpi sge, %20, %119 : vector<256x8xi32>
    %cst_68 = arith.constant 0xFF800000 : f32
    %121 = vector.broadcast %cst_68 : f32 to vector<256x8xf32>
    %122 = arith.select %120, %118, %121 : vector<256x8xi1>, vector<256x8xf32>
    %123 = arith.maximumf %117, %122 : vector<256x8xf32>
    %c48_69 = arith.constant 48 : index
    %c0_70 = arith.constant 0 : index
    %124 = vector.load %arg7[%c48_69, %c0_70] : memref<352x8xf32, #tpu.memory_space<vmem>>, vector<256x8xf32>
    tpu.vector_store %arg7[%c48_69, %c0_70], %123 {strides = array<i32>} : memref<352x8xf32, #tpu.memory_space<vmem>>, vector<256x8xf32>,
    %c64_71 = arith.constant 64 : index
    %c0_72 = arith.constant 0 : index
    %125 = vector.load %arg7[%c64_71, %c0_72] : memref<352x8xf32, #tpu.memory_space<vmem>>, vector<256x8xf32>
    %126 = arith.maximumf %123, %125 : vector<256x8xf32>
    %c32_73 = arith.constant 32 : index
    %c0_74 = arith.constant 0 : index
    %127 = vector.load %arg7[%c32_73, %c0_74] : memref<352x8xf32, #tpu.memory_space<vmem>>, vector<256x8xf32>
    %128 = arith.maximumf %126, %127 : vector<256x8xf32>
    %c80_75 = arith.constant 80 : index
    %c0_76 = arith.constant 0 : index
    %129 = vector.load %arg7[%c80_75, %c0_76] : memref<352x8xf32, #tpu.memory_space<vmem>>, vector<256x8xf32>
    %130 = arith.maximumf %128, %129 : vector<256x8xf32>
    %c16_77 = arith.constant 16 : index
    %c0_78 = arith.constant 0 : index
    %131 = vector.load %arg7[%c16_77, %c0_78] : memref<352x8xf32, #tpu.memory_space<vmem>>, vector<256x8xf32>
    %132 = arith.maximumf %130, %131 : vector<256x8xf32>
    %c96 = arith.constant 96 : index
    %c0_79 = arith.constant 0 : index
    %133 = vector.load %arg7[%c96, %c0_79] : memref<352x8xf32, #tpu.memory_space<vmem>>, vector<256x8xf32>
    %134 = arith.maximumf %132, %133 : vector<256x8xf32>
    %c0_80 = arith.constant 0 : index
    %c0_81 = arith.constant 0 : index
    %135 = vector.load %arg7[%c0_80, %c0_81] : memref<352x8xf32, #tpu.memory_space<vmem>>, vector<256x8xf32>
    %136 = arith.maximumf %134, %135 : vector<256x8xf32>
    %137 = arith.truncf %34 : vector<256x8xf32> to vector<256x8xbf16>
    %c0_82 = arith.constant 0 : index
    %c0_83 = arith.constant 0 : index
    %c0_84 = arith.constant 0 : index
    %138 = vector.load %arg4[%c0_82, %c0_83, %c0_84] : memref<4x8x8xbf16, #tpu.memory_space<vmem>>, vector<1x8x8xbf16>
    %139 = vector.shape_cast %138 : vector<1x8x8xbf16> to vector<8x8xbf16>
    %cst_85 = arith.constant dense<0.000000e+00> : vector<256x8xf32>
    %140 = tpu.matmul %137, %139, %cst_85 {dimension_numbers = #tpu.dot_dimension_numbers<[1], [0], [0], [1], [0, 0, 1, 1], [], []>} : vector<256x8xbf16>, vector<8x8xbf16>, vector<256x8xf32> -> vector<256x8xf32>
    %141 = arith.truncf %52 : vector<256x8xf32> to vector<256x8xbf16>
    %c1 = arith.constant 1 : index
    %c0_86 = arith.constant 0 : index
    %c0_87 = arith.constant 0 : index
    %142 = vector.load %arg4[%c1, %c0_86, %c0_87] : memref<4x8x8xbf16, #tpu.memory_space<vmem>>, vector<1x8x8xbf16>
    %143 = vector.shape_cast %142 : vector<1x8x8xbf16> to vector<8x8xbf16>
    %cst_88 = arith.constant dense<0.000000e+00> : vector<256x8xf32>
    %144 = tpu.matmul %141, %143, %cst_88 {dimension_numbers = #tpu.dot_dimension_numbers<[1], [0], [0], [1], [0, 0, 1, 1], [], []>} : vector<256x8xbf16>, vector<8x8xbf16>, vector<256x8xf32> -> vector<256x8xf32>
    %145 = arith.addf %140, %144 : vector<256x8xf32>
    %146 = arith.truncf %86 : vector<256x8xf32> to vector<256x8xbf16>
    %c2 = arith.constant 2 : index
    %c0_89 = arith.constant 0 : index
    %c0_90 = arith.constant 0 : index
    %147 = vector.load %arg4[%c2, %c0_89, %c0_90] : memref<4x8x8xbf16, #tpu.memory_space<vmem>>, vector<1x8x8xbf16>
    %148 = vector.shape_cast %147 : vector<1x8x8xbf16> to vector<8x8xbf16>
    %cst_91 = arith.constant dense<0.000000e+00> : vector<256x8xf32>
    %149 = tpu.matmul %146, %148, %cst_91 {dimension_numbers = #tpu.dot_dimension_numbers<[1], [0], [0], [1], [0, 0, 1, 1], [], []>} : vector<256x8xbf16>, vector<8x8xbf16>, vector<256x8xf32> -> vector<256x8xf32>
    %150 = arith.addf %145, %149 : vector<256x8xf32>
    %151 = arith.truncf %136 : vector<256x8xf32> to vector<256x8xbf16>
    %c3 = arith.constant 3 : index
    %c0_92 = arith.constant 0 : index
    %c0_93 = arith.constant 0 : index
    %152 = vector.load %arg4[%c3, %c0_92, %c0_93] : memref<4x8x8xbf16, #tpu.memory_space<vmem>>, vector<1x8x8xbf16>
    %153 = vector.shape_cast %152 : vector<1x8x8xbf16> to vector<8x8xbf16>
    %cst_94 = arith.constant dense<0.000000e+00> : vector<256x8xf32>
    %154 = tpu.matmul %151, %153, %cst_94 {dimension_numbers = #tpu.dot_dimension_numbers<[1], [0], [0], [1], [0, 0, 1, 1], [], []>} : vector<256x8xbf16>, vector<8x8xbf16>, vector<256x8xf32> -> vector<256x8xf32>
    %155 = arith.addf %150, %154 : vector<256x8xf32>
    %c0_95 = arith.constant 0 : index
    %c0_96 = arith.constant 0 : index
    %156 = vector.load %arg5[%c0_95, %c0_96] : memref<1x8xf32, #tpu.memory_space<vmem>>, vector<1x8xf32>
    %157 = vector.broadcast %156 : vector<1x8xf32> to vector<256x8xf32>
    %158 = arith.addf %155, %157 : vector<256x8xf32>
    %159 = arith.negf %158 : vector<256x8xf32>
    %160 = math.exp %159 : vector<256x8xf32>
    %cst_97 = arith.constant 1.000000e+00 : f32
    %161 = vector.broadcast %cst_97 : f32 to vector<256x8xf32>
    %162 = arith.addf %161, %160 : vector<256x8xf32>
    %163 = arith.divf %161, %162 : vector<256x8xf32>
    %164 = arith.mulf %158, %163 : vector<256x8xf32>
    %c0_98 = arith.constant 0 : index
    %c0_99 = arith.constant 0 : index
    %c0_100 = arith.constant 0 : index
    %165 = vector.load %arg6[%c0_98, %c0_99, %c0_100] : memref<1x256x8xf32, #tpu.memory_space<vmem>>, vector<1x256x8xf32>
    %166 = vector.shape_cast %165 : vector<1x256x8xf32> to vector<256x8xf32>
    %167 = vector.shape_cast %164 : vector<256x8xf32> to vector<1x256x8xf32>
    tpu.vector_store %arg6[%c0_98, %c0_99, %c0_100], %167 {strides = array<i32>} : memref<1x256x8xf32, #tpu.memory_space<vmem>>, vector<1x256x8xf32>,
    return
  }
  func.func @transform_0(%arg0: i32) -> (i32, i32, i32) {
    %c0_i32 = arith.constant 0 : i32
    %c0_i32_0 = arith.constant 0 : i32
    %c0_i32_1 = arith.constant 0 : i32
    return %arg0, %c0_i32, %c0_i32_0 : i32, i32, i32
  }
  func.func @transform_1(%arg0: i32) -> (i32, i32) {
    %c0_i32 = arith.constant 0 : i32
    %c0_i32_0 = arith.constant 0 : i32
    %c0_i32_1 = arith.constant 0 : i32
    return %c0_i32, %c0_i32_0 : i32, i32
  }
  func.func @transform_2(%arg0: i32) -> (i32, i32) {
    %c0_i32 = arith.constant 0 : i32
    %c0_i32_0 = arith.constant 0 : i32
    %c0_i32_1 = arith.constant 0 : i32
    return %c0_i32, %c0_i32_0 : i32, i32
  }
  func.func @transform_3(%arg0: i32) -> (i32, i32, i32) {
    %c0_i32 = arith.constant 0 : i32
    %c0_i32_0 = arith.constant 0 : i32
    %c0_i32_1 = arith.constant 0 : i32
    %c0_i32_2 = arith.constant 0 : i32
    return %c0_i32, %c0_i32_0, %c0_i32_1 : i32, i32, i32
  }
  func.func @transform_4(%arg0: i32) -> (i32, i32) {
    %c0_i32 = arith.constant 0 : i32
    %c0_i32_0 = arith.constant 0 : i32
    %c0_i32_1 = arith.constant 0 : i32
    return %c0_i32, %c0_i32_0 : i32, i32
  }
  func.func @transform_5(%arg0: i32) -> (i32, i32, i32) {
    %c0_i32 = arith.constant 0 : i32
    %c0_i32_0 = arith.constant 0 : i32
    %c0_i32_1 = arith.constant 0 : i32
    return %arg0, %c0_i32, %c0_i32_0 : i32, i32, i32
  }
}

</mosaic_0001>

<llo_original>
// kernel: sppf_forward.1
$region0: #{sppf_forward.1}
  #allocation0 [shape = 'u32[]', space=smem, size = 0x4, offset = 0x4, fixed_abs, tag = 'smem constant byte address 0x4 - core index']
  #allocation1 [shape = 'u32[144,128]{1,0:T(1,128)}', space=vmem, size = 0x12000, scoped, tag = 'internal scratch']
  #allocation2 [shape = 'f32[352,8]{1,0:T(8,128)}', space=vmem, size = 0x2c000, scoped, tag = 'scratch operand']
  %s0 = inlined_call_operand.vmem [shape: f32[2,256,8], index: 0, kind: input, shape index: {}]
  %s1 = inlined_call_operand.vmem [shape: bf16[8,8], index: 1, kind: input, shape index: {}]
  %s2 = inlined_call_operand.vmem [shape: f32[1,8], index: 2, kind: input, shape index: {}]
  %s3 = inlined_call_operand.vmem [shape: bf16[4,8,8], index: 3, kind: input, shape index: {}]
  %s4 = inlined_call_operand.vmem [shape: f32[1,8], index: 4, kind: input, shape index: {}]
  %s5 = inlined_call_operand.vmem [shape: f32[2,256,8], index: 5, kind: output, shape index: {}]
  %s6 = sld [smem:[#allocation0]]
  $region53: #{sppf_forward.1} parent=0
    _
  %s8 = ssub.s32 1, %s6
  %s9 = scalar_select 0, %s8, %s6
  loop: start=0, step=1, limit=4
  $region2: #{sppf_forward.1} parent=0 // loop_pre_header
    _
  $region3: #{sppf_forward.1} parent=0 // loop_header
    %s11 = sphi 0, %s15
    %p12 = scmp.ge.s32.totalorder %s11, 4
    %s21 = sphi 0, %s23
    %s24 = sphi 0, %s21
    %s25 = sphi 0, %s24
    %s41 = sphi 0, %s25
    %s45 = sphi 0, %s45
    %s47 = sphi 0, %s45
    %s48 = sphi 0, %s47
    %s62 = sphi 0, %s48
    %s66 = sphi 0, %s66
    %s68 = sphi 0, %s66
    %s69 = sphi 0, %s68
    %s83 = sphi 0, %s69
    %s87 = sphi 0, %s87
    %s89 = sphi 0, %s87
    %s90 = sphi 0, %s89
    %s104 = sphi 0, %s90
    %s108 = sphi 0, %s108
    %s110 = sphi 0, %s108
    %s111 = sphi 0, %s110
    %s125 = sphi 0, %s111
    %s131 = sphi 0, %s133
    %s134 = sphi 0, %s131
    %s135 = sphi 0, %s134
    %s151 = sphi 0, %s135
  $region4: #{sppf_forward.1} parent=0 // loop_header_branch
    %14 = sbr.rel (%p12) target = $region8
  $region5: #{sppf_forward.1} parent=0 // loop_body
    %s16 = ssub.s32 %s11, 1
    %s17 = ssub.s32 %s11, 2
    %s18 = sadd.s32 %s11, 1
    %s19 = ssub.s32 %s11, %s18
    %p20 = scmp.eq.s32.totalorder %s19, 0
    %s22 = sadd.s32 %s21, 1
    %s23 = scalar_select %p20, %s21, %s22
    %p26 = pneg %p20
    %p27 = scmp.eq.s32.totalorder %s11, 1
    %p28 = por %p26, %p27
    %p29 = scmp.ne.s32.totalorder %s21, %s24
    %p30 = scmp.eq.s32.totalorder %s11, 0
    %p31 = por %p29, %p30
    %p32 = scmp.ne.s32.totalorder %s21, %s24
    %p33 = scmp.eq.s32.totalorder %s16, 1
    %p34 = por %p32, %p33
    %p35 = scmp.ne.s32.totalorder %s24, %s25
    %p36 = scmp.eq.s32.totalorder %s16, 0
    %p37 = por %p35, %p36
    %p38 = scmp.ne.s32.totalorder %s24, %s25
    %p39 = scmp.eq.s32.totalorder %s17, 1
    %p40 = por %p38, %p39
    %p42 = scmp.ne.s32.totalorder %s25, %s41
    %p43 = scmp.eq.s32.totalorder %s17, 0
    %p44 = por %p42, %p43
    %s46 = sadd.s32 %s45, 1
    %p49 = scmp.eq.s32.totalorder %s11, 1
    %p50 = scmp.ne.s32.totalorder %s45, %s47
    %p51 = scmp.eq.s32.totalorder %s11, 0
    %p52 = por %p50, %p51
    %p53 = scmp.ne.s32.totalorder %s45, %s47
    %p54 = scmp.eq.s32.totalorder %s16, 1
    %p55 = por %p53, %p54
    %p56 = scmp.ne.s32.totalorder %s47, %s48
    %p57 = scmp.eq.s32.totalorder %s16, 0
    %p58 = por %p56, %p57
    %p59 = scmp.ne.s32.totalorder %s47, %s48
    %p60 = scmp.eq.s32.totalorder %s17, 1
    %p61 = por %p59, %p60
    %p63 = scmp.ne.s32.totalorder %s48, %s62
    %p64 = scmp.eq.s32.totalorder %s17, 0
    %p65 = por %p63, %p64
    %s67 = sadd.s32 %s66, 1
    %p70 = scmp.eq.s32.totalorder %s11, 1
    %p71 = scmp.ne.s32.totalorder %s66, %s68
    %p72 = scmp.eq.s32.totalorder %s11, 0
    %p73 = por %p71, %p72
    %p74 = scmp.ne.s32.totalorder %s66, %s68
    %p75 = scmp.eq.s32.totalorder %s16, 1
    %p76 = por %p74, %p75
    %p77 = scmp.ne.s32.totalorder %s68, %s69
    %p78 = scmp.eq.s32.totalorder %s16, 0
    %p79 = por %p77, %p78
    %p80 = scmp.ne.s32.totalorder %s68, %s69
    %p81 = scmp.eq.s32.totalorder %s17, 1
    %p82 = por %p80, %p81
    %p84 = scmp.ne.s32.totalorder %s69, %s83
    %p85 = scmp.eq.s32.totalorder %s17, 0
    %p86 = por %p84, %p85
    %s88 = sadd.s32 %s87, 1
    %p91 = scmp.eq.s32.totalorder %s11, 1
    %p92 = scmp.ne.s32.totalorder %s87, %s89
    %p93 = scmp.eq.s32.totalorder %s11, 0
    %p94 = por %p92, %p93
    %p95 = scmp.ne.s32.totalorder %s87, %s89
    %p96 = scmp.eq.s32.totalorder %s16, 1
    %p97 = por %p95, %p96
    %p98 = scmp.ne.s32.totalorder %s89, %s90
    %p99 = scmp.eq.s32.totalorder %s16, 0
    %p100 = por %p98, %p99
    %p101 = scmp.ne.s32.totalorder %s89, %s90
    %p102 = scmp.eq.s32.totalorder %s17, 1
    %p103 = por %p101, %p102
    %p105 = scmp.ne.s32.totalorder %s90, %s104
    %p106 = scmp.eq.s32.totalorder %s17, 0
    %p107 = por %p105, %p106
    %s109 = sadd.s32 %s108, 1
    %p112 = scmp.eq.s32.totalorder %s11, 1
    %p113 = scmp.ne.s32.totalorder %s108, %s110
    %p114 = scmp.eq.s32.totalorder %s11, 0
    %p115 = por %p113, %p114
    %p116 = scmp.ne.s32.totalorder %s108, %s110
    %p117 = scmp.eq.s32.totalorder %s16, 1
    %p118 = por %p116, %p117
    %p119 = scmp.ne.s32.totalorder %s110, %s111
    %p120 = scmp.eq.s32.totalorder %s16, 0
    %p121 = por %p119, %p120
    %p122 = scmp.ne.s32.totalorder %s110, %s111
    %p123 = scmp.eq.s32.totalorder %s17, 1
    %p124 = por %p122, %p123
    %p126 = scmp.ne.s32.totalorder %s111, %s125
    %p127 = scmp.eq.s32.totalorder %s17, 0
    %p128 = por %p126, %p127
    %s129 = ssub.s32 %s11, %s18
    %p130 = scmp.eq.s32.totalorder %s129, 0
    %s132 = sadd.s32 %s131, 1
    %s133 = scalar_select %p130, %s131, %s132
    %p136 = pneg %p130
    %p137 = scmp.eq.s32.totalorder %s11, 1
    %p138 = por %p136, %p137
    %p139 = scmp.ne.s32.totalorder %s131, %s134
    %p140 = scmp.eq.s32.totalorder %s11, 0
    %p141 = por %p139, %p140
    %p142 = scmp.ne.s32.totalorder %s131, %s134
    %p143 = scmp.eq.s32.totalorder %s16, 1
    %p144 = por %p142, %p143
    %p145 = scmp.ne.s32.totalorder %s134, %s135
    %p146 = scmp.eq.s32.totalorder %s16, 0
    %p147 = por %p145, %p146
    %p148 = scmp.ne.s32.totalorder %s134, %s135
    %p149 = scmp.eq.s32.totalorder %s17, 1
    %p150 = por %p148, %p149
    %p152 = scmp.ne.s32.totalorder %s135, %s151
    %p153 = scmp.eq.s32.totalorder %s17, 0
    %p154 = por %p152, %p153
    %p155 = scmp.le.s32.totalorder 1, %s11
    %p156 = scmp.lt.s32.totalorder %s11, 3
    %p157 = pnand %p155, %p156
    %p158 = pneg %p157
    // Predicated region
    $region9: #{sppf_forward.1} parent=5 // pred_check
      _
    $region10: #{sppf_forward.1} parent=5 // pred_check_branch
      %160 = sbr.rel (%p157) target = $region12
    $region11: #{sppf_forward.1} parent=5 // pred_region
      %s161 = ssub.s32 %s11, 1
      // Predicated region
      $region13: #{sppf_forward.1} parent=11 // pred_check
        %p162 = pneg %p58
      $region14: #{sppf_forward.1} parent=11 // pred_check_branch
        %164 = sbr.rel (%p162) target = $region16
      $region15: #{sppf_forward.1} parent=11 // pred_region
        _
      $region16: #{sppf_forward.1} parent=11 // pred_fallthru
        _
      // Predicated region
      $region17: #{sppf_forward.1} parent=11 // pred_check
        %p165 = pneg %p79
      $region18: #{sppf_forward.1} parent=11 // pred_check_branch
        %167 = sbr.rel (%p165) target = $region20
      $region19: #{sppf_forward.1} parent=11 // pred_region
        _
      $region20: #{sppf_forward.1} parent=11 // pred_fallthru
        _
      // Predicated region
      $region21: #{sppf_forward.1} parent=11 // pred_check
        %p168 = pneg %p100
      $region22: #{sppf_forward.1} parent=11 // pred_check_branch
        %170 = sbr.rel (%p168) target = $region24
      $region23: #{sppf_forward.1} parent=11 // pred_region
        _
      $region24: #{sppf_forward.1} parent=11 // pred_fallthru
        _
      // Predicated region
      $region25: #{sppf_forward.1} parent=11 // pred_check
        %p171 = pneg %p121
      $region26: #{sppf_forward.1} parent=11 // pred_check_branch
        %173 = sbr.rel (%p171) target = $region28
      $region27: #{sppf_forward.1} parent=11 // pred_region
        _
      $region28: #{sppf_forward.1} parent=11 // pred_fallthru
        _
    $region12: #{sppf_forward.1} parent=5 // pred_fallthru
      _
    %p174 = scmp.lt.s32.totalorder %s11, 2
    // Predicated region
    $region29: #{sppf_forward.1} parent=5 // pred_check
      %p175 = pneg %p174
    $region30: #{sppf_forward.1} parent=5 // pred_check_branch
      %177 = sbr.rel (%p175) target = $region32
    $region31: #{sppf_forward.1} parent=5 // pred_region
      // Predicated region
      $region33: #{sppf_forward.1} parent=31 // pred_check
        %p178 = pneg %p31
      $region34: #{sppf_forward.1} parent=31 // pred_check_branch
        %180 = sbr.rel (%p178) target = $region36
      $region35: #{sppf_forward.1} parent=31 // pred_region
        %p181 = scmp.lt.s32.totalorder %s11, 1
        %s182 = scalar_select %p181, %s11, 1
        %s183 = smul.addr %s182, 32
        %s184 = smul.addr %s183, 8
        %s185 = scalar_lea.vmem %s0, %s184
      $region36: #{sppf_forward.1} parent=31 // pred_fallthru
        _
    $region32: #{sppf_forward.1} parent=5 // pred_fallthru
      _
    %p186 = scmp.le.s32.totalorder 1, %s11
    %p187 = scmp.lt.s32.totalorder %s11, 3
    %p188 = pnand %p186, %p187
    %p189 = pneg %p188
    // Predicated region
    $region37: #{sppf_forward.1} parent=5 // pred_check
      _
    $region38: #{sppf_forward.1} parent=5 // pred_check_branch
      %191 = sbr.rel (%p188) target = $region40
    $region39: #{sppf_forward.1} parent=5 // pred_region
      %s192 = ssub.s32 %s11, 1
      %p193 = scmp.lt.s32.totalorder %s16, 1
      %s194 = scalar_select %p193, %s16, 1
      %s195 = smul.addr %s194, 32
      %s196 = smul.addr %s195, 8
      %s197 = scalar_lea.vmem %s0, %s196
      %p198 = pneg %p37
      %p199 = pneg %p34
      %p200 = pneg %p58
      %p201 = pneg %p55
      %p202 = pneg %p79
      %p203 = pneg %p76
      %p204 = pneg %p100
      %p205 = pneg %p97
      %p206 = pneg %p121
      %p207 = pneg %p118
      %p208 = pneg %p147
      %p209 = pneg %p144
      %p210 = scmp.lt.s32.totalorder %s16, 1
      %s211 = scalar_select %p210, %s16, 1
      %s212 = smul.addr %s211, 32
      %s213 = smul.addr %s212, 8
      %s214 = scalar_lea.vmem %s5, %s213
      %p215 = scmp.lt.s32.totalorder %s16, 1
      %s216 = scalar_select %p215, %s16, 1
      %s217 = smul.addr %s216, 32
      %s218 = smul.addr %s217, 8
      %s219 = scalar_lea.vmem %s0, %s218
      %p220 = scmp.lt.s32.totalorder %s16, 1
      %s221 = scalar_select %p220, %s16, 1
      %s222 = smul.addr %s221, 32
      %s223 = smul.addr %s222, 8
      %s224 = scalar_lea.vmem %s5, %s223
      %vm226 = vcmask 64512
      %227 = vst.msk [vmem:[#allocation2] sm:$0xff] %vm226, -inf
      %228 = vst.msk [vmem:[#allocation2 + $0x8] sm:$0xff] %vm226, -inf
      %229 = vst.msk [vmem:[#allocation2 + $0x10] sm:$0xff] %vm226, -inf
      %230 = vst.msk [vmem:[#allocation2 + $0x18] sm:$0xff] %vm226, -inf
      %231 = vst.msk [vmem:[#allocation2 + $0x20] sm:$0xff] %vm226, -inf
      %232 = vst.msk [vmem:[#allocation2 + $0x28] sm:$0xff] %vm226, -inf
      %233 = vst.msk [vmem:[#allocation2 + $0x130] sm:$0xff] %vm226, -inf
      %234 = vst.msk [vmem:[#allocation2 + $0x138] sm:$0xff] %vm226, -inf
      %235 = vst.msk [vmem:[#allocation2 + $0x140] sm:$0xff] %vm226, -inf
      %236 = vst.msk [vmem:[#allocation2 + $0x148] sm:$0xff] %vm226, -inf
      %237 = vst.msk [vmem:[#allocation2 + $0x150] sm:$0xff] %vm226, -inf
      %238 = vst.msk [vmem:[#allocation2 + $0x158] sm:$0xff] %vm226, -inf
      %v239 = vlaneseq
      %v240 = vshrl.u32 %v239, 7
      %v241 = vadd.s32 %v240, 8
      %v242 = vadd.s32 %v240, 16
      %v243 = vadd.s32 %v240, 24
      %v244 = vadd.s32 %v240, 32
      %v245 = vadd.s32 %v240, 40
      %v246 = vadd.s32 %v240, 48
      %v247 = vadd.s32 %v240, 56
      %v248 = vadd.s32 %v240, 64
      %v249 = vadd.s32 %v240, 72
      %v250 = vadd.s32 %v240, 80
      %v251 = vadd.s32 %v240, 88
      %v252 = vadd.s32 %v240, 96
      %v253 = vadd.s32 %v240, 104
      %v254 = vadd.s32 %v240, 112
      %v255 = vadd.s32 %v240, 120
      %v256 = vadd.s32 %v240, 128
      %v257 = vadd.s32 %v240, 136
      %v258 = vadd.s32 %v240, 144
      %v259 = vadd.s32 %v240, 152
      %v260 = vadd.s32 %v240, 160
      %v261 = vadd.s32 %v240, 168
      %v262 = vadd.s32 %v240, 176
      %v263 = vadd.s32 %v240, 184
      %v264 = vadd.s32 %v240, 192
      %v265 = vadd.s32 %v240, 200
      %v266 = vadd.s32 %v240, 208
      %v267 = vadd.s32 %v240, 216
      %v268 = vadd.s32 %v240, 224
      %v269 = vadd.s32 %v240, 232
      %v270 = vadd.s32 %v240, 240
      %v271 = vadd.s32 %v240, 248
      %vm272 = vcmp.lt.s32.totalorder %v240, 0
      %v273 = vsub.s32 0, %v240
      %v274 = vsel %vm272, %v273, %v240
      %v275 = vshrl.u32 %v274, 4
      %v276 = vand.u32 %v274, 15
      %v277 = vsub.s32 0, %v276
      %v278 = vsel %vm272, %v277, %v276
      %vm279 = vcmp.lt.s32.totalorder %v241, 0
      %v280 = vsub.s32 0, %v241
      %v281 = vsel %vm279, %v280, %v241
      %v282 = vshrl.u32 %v281, 4
      %v283 = vand.u32 %v281, 15
      %v284 = vsub.s32 0, %v283
      %v285 = vsel %vm279, %v284, %v283
      %vm286 = vcmp.lt.s32.totalorder %v242, 0
      %v287 = vsub.s32 0, %v242
      %v288 = vsel %vm286, %v287, %v242
      %v289 = vshrl.u32 %v288, 4
      %v290 = vand.u32 %v288, 15
      %v291 = vsub.s32 0, %v290
      %v292 = vsel %vm286, %v291, %v290
      %vm293 = vcmp.lt.s32.totalorder %v243, 0
      %v294 = vsub.s32 0, %v243
      %v295 = vsel %vm293, %v294, %v243
      %v296 = vshrl.u32 %v295, 4
      %v297 = vand.u32 %v295, 15
      %v298 = vsub.s32 0, %v297
      %v299 = vsel %vm293, %v298, %v297
      %vm300 = vcmp.lt.s32.totalorder %v244, 0
      %v301 = vsub.s32 0, %v244
      %v302 = vsel %vm300, %v301, %v244
      %v303 = vshrl.u32 %v302, 4
      %v304 = vand.u32 %v302, 15
      %v305 = vsub.s32 0, %v304
      %v306 = vsel %vm300, %v305, %v304
      %vm307 = vcmp.lt.s32.totalorder %v245, 0
      %v308 = vsub.s32 0, %v245
      %v309 = vsel %vm307, %v308, %v245
      %v310 = vshrl.u32 %v309, 4
      %v311 = vand.u32 %v309, 15
      %v312 = vsub.s32 0, %v311
      %v313 = vsel %vm307, %v312, %v311
      %vm314 = vcmp.lt.s32.totalorder %v246, 0
      %v315 = vsub.s32 0, %v246
      %v316 = vsel %vm314, %v315, %v246
      %v317 = vshrl.u32 %v316, 4
      %v318 = vand.u32 %v316, 15
      %v319 = vsub.s32 0, %v318
      %v320 = vsel %vm314, %v319, %v318
      %vm321 = vcmp.lt.s32.totalorder %v247, 0
      %v322 = vsub.s32 0, %v247
      %v323 = vsel %vm321, %v322, %v247
      %v324 = vshrl.u32 %v323, 4
      %v325 = vand.u32 %v323, 15
      %v326 = vsub.s32 0, %v325
      %v327 = vsel %vm321, %v326, %v325
      %vm328 = vcmp.lt.s32.totalorder %v248, 0
      %v329 = vsub.s32 0, %v248
      %v330 = vsel %vm328, %v329, %v248
      %v331 = vshrl.u32 %v330, 4
      %v332 = vand.u32 %v330, 15
      %v333 = vsub.s32 0, %v332
      %v334 = vsel %vm328, %v333, %v332
      %vm335 = vcmp.lt.s32.totalorder %v249, 0
      %v336 = vsub.s32 0, %v249
      %v337 = vsel %vm335, %v336, %v249
      %v338 = vshrl.u32 %v337, 4
      %v339 = vand.u32 %v337, 15
      %v340 = vsub.s32 0, %v339
      %v341 = vsel %vm335, %v340, %v339
      %vm342 = vcmp.lt.s32.totalorder %v250, 0
      %v343 = vsub.s32 0, %v250
      %v344 = vsel %vm342, %v343, %v250
      %v345 = vshrl.u32 %v344, 4
      %v346 = vand.u32 %v344, 15
      %v347 = vsub.s32 0, %v346
      %v348 = vsel %vm342, %v347, %v346
      %vm349 = vcmp.lt.s32.totalorder %v251, 0
      %v350 = vsub.s32 0, %v251
      %v351 = vsel %vm349, %v350, %v251
      %v352 = vshrl.u32 %v351, 4
      %v353 = vand.u32 %v351, 15
      %v354 = vsub.s32 0, %v353
      %v355 = vsel %vm349, %v354, %v353
      %vm356 = vcmp.lt.s32.totalorder %v252, 0
      %v357 = vsub.s32 0, %v252
      %v358 = vsel %vm356, %v357, %v252
      %v359 = vshrl.u32 %v358, 4
      %v360 = vand.u32 %v358, 15
      %v361 = vsub.s32 0, %v360
      %v362 = vsel %vm356, %v361, %v360
      %vm363 = vcmp.lt.s32.totalorder %v253, 0
      %v364 = vsub.s32 0, %v253
      %v365 = vsel %vm363, %v364, %v253
      %v366 = vshrl.u32 %v365, 4
      %v367 = vand.u32 %v365, 15
      %v368 = vsub.s32 0, %v367
      %v369 = vsel %vm363, %v368, %v367
      %vm370 = vcmp.lt.s32.totalorder %v254, 0
      %v371 = vsub.s32 0, %v254
      %v372 = vsel %vm370, %v371, %v254
      %v373 = vshrl.u32 %v372, 4
      %v374 = vand.u32 %v372, 15
      %v375 = vsub.s32 0, %v374
      %v376 = vsel %vm370, %v375, %v374
      %vm377 = vcmp.lt.s32.totalorder %v255, 0
      %v378 = vsub.s32 0, %v255
      %v379 = vsel %vm377, %v378, %v255
      %v380 = vshrl.u32 %v379, 4
      %v381 = vand.u32 %v379, 15
      %v382 = vsub.s32 0, %v381
      %v383 = vsel %vm377, %v382, %v381
      %vm384 = vcmp.lt.s32.totalorder %v256, 0
      %v385 = vsub.s32 0, %v256
      %v386 = vsel %vm384, %v385, %v256
      %v387 = vshrl.u32 %v386, 4
      %v388 = vand.u32 %v386, 15
      %v389 = vsub.s32 0, %v388
      %v390 = vsel %vm384, %v389, %v388
      %vm391 = vcmp.lt.s32.totalorder %v257, 0
      %v392 = vsub.s32 0, %v257
      %v393 = vsel %vm391, %v392, %v257
      %v394 = vshrl.u32 %v393, 4
      %v395 = vand.u32 %v393, 15
      %v396 = vsub.s32 0, %v395
      %v397 = vsel %vm391, %v396, %v395
      %vm398 = vcmp.lt.s32.totalorder %v258, 0
      %v399 = vsub.s32 0, %v258
      %v400 = vsel %vm398, %v399, %v258
      %v401 = vshrl.u32 %v400, 4
      %v402 = vand.u32 %v400, 15
      %v403 = vsub.s32 0, %v402
      %v404 = vsel %vm398, %v403, %v402
      %vm405 = vcmp.lt.s32.totalorder %v259, 0
      %v406 = vsub.s32 0, %v259
      %v407 = vsel %vm405, %v406, %v259
      %v408 = vshrl.u32 %v407, 4
      %v409 = vand.u32 %v407, 15
      %v410 = vsub.s32 0, %v409
      %v411 = vsel %vm405, %v410, %v409
      %vm412 = vcmp.lt.s32.totalorder %v260, 0
      %v413 = vsub.s32 0, %v260
      %v414 = vsel %vm412, %v413, %v260
      %v415 = vshrl.u32 %v414, 4
      %v416 = vand.u32 %v414, 15
      %v417 = vsub.s32 0, %v416
      %v418 = vsel %vm412, %v417, %v416
      %vm419 = vcmp.lt.s32.totalorder %v261, 0
      %v420 = vsub.s32 0, %v261
      %v421 = vsel %vm419, %v420, %v261
      %v422 = vshrl.u32 %v421, 4
      %v423 = vand.u32 %v421, 15
      %v424 = vsub.s32 0, %v423
      %v425 = vsel %vm419, %v424, %v423
      %vm426 = vcmp.lt.s32.totalorder %v262, 0
      %v427 = vsub.s32 0, %v262
      %v428 = vsel %vm426, %v427, %v262
      %v429 = vshrl.u32 %v428, 4
      %v430 = vand.u32 %v428, 15
      %v431 = vsub.s32 0, %v430
      %v432 = vsel %vm426, %v431, %v430
      %vm433 = vcmp.lt.s32.totalorder %v263, 0
      %v434 = vsub.s32 0, %v263
      %v435 = vsel %vm433, %v434, %v263
      %v436 = vshrl.u32 %v435, 4
      %v437 = vand.u32 %v435, 15
      %v438 = vsub.s32 0, %v437
      %v439 = vsel %vm433, %v438, %v437
      %vm440 = vcmp.lt.s32.totalorder %v264, 0
      %v441 = vsub.s32 0, %v264
      %v442 = vsel %vm440, %v441, %v264
      %v443 = vshrl.u32 %v442, 4
      %v444 = vand.u32 %v442, 15
      %v445 = vsub.s32 0, %v444
      %v446 = vsel %vm440, %v445, %v444
      %vm447 = vcmp.lt.s32.totalorder %v265, 0
      %v448 = vsub.s32 0, %v265
      %v449 = vsel %vm447, %v448, %v265
      %v450 = vshrl.u32 %v449, 4
      %v451 = vand.u32 %v449, 15
      %v452 = vsub.s32 0, %v451
      %v453 = vsel %vm447, %v452, %v451
      %vm454 = vcmp.lt.s32.totalorder %v266, 0
      %v455 = vsub.s32 0, %v266
      %v456 = vsel %vm454, %v455, %v266
      %v457 = vshrl.u32 %v456, 4
      %v458 = vand.u32 %v456, 15
      %v459 = vsub.s32 0, %v458
      %v460 = vsel %vm454, %v459, %v458
      %vm461 = vcmp.lt.s32.totalorder %v267, 0
      %v462 = vsub.s32 0, %v267
      %v463 = vsel %vm461, %v462, %v267
      %v464 = vshrl.u32 %v463, 4
      %v465 = vand.u32 %v463, 15
      %v466 = vsub.s32 0, %v465
      %v467 = vsel %vm461, %v466, %v465
      %vm468 = vcmp.lt.s32.totalorder %v268, 0
      %v469 = vsub.s32 0, %v268
      %v470 = vsel %vm468, %v469, %v268
      %v471 = vshrl.u32 %v470, 4
      %v472 = vand.u32 %v470, 15
      %v473 = vsub.s32 0, %v472
      %v474 = vsel %vm468, %v473, %v472
      %vm475 = vcmp.lt.s32.totalorder %v269, 0
      %v476 = vsub.s32 0, %v269
      %v477 = vsel %vm475, %v476, %v269
      %v478 = vshrl.u32 %v477, 4
      %v479 = vand.u32 %v477, 15
      %v480 = vsub.s32 0, %v479
      %v481 = vsel %vm475, %v480, %v479
      %vm482 = vcmp.lt.s32.totalorder %v270, 0
      %v483 = vsub.s32 0, %v270
      %v484 = vsel %vm482, %v483, %v270
      %v485 = vshrl.u32 %v484, 4
      %v486 = vand.u32 %v484, 15
      %v487 = vsub.s32 0, %v486
      %v488 = vsel %vm482, %v487, %v486
      %vm489 = vcmp.lt.s32.totalorder %v271, 0
      %v490 = vsub.s32 0, %v271
      %v491 = vsel %vm489, %v490, %v271
      %v492 = vshrl.u32 %v491, 4
      %v493 = vand.u32 %v491, 15
      %v494 = vsub.s32 0, %v493
      %v495 = vsel %vm489, %v494, %v493
      %vm496 = vcmp.ne.s32.totalorder %v278, 0
      %vm497 = vcmp.ne.s32.totalorder %v285, 0
      %vm498 = vcmp.ne.s32.totalorder %v292, 0
      %vm499 = vcmp.ne.s32.totalorder %v299, 0
      %vm500 = vcmp.ne.s32.totalorder %v306, 0
      %vm501 = vcmp.ne.s32.totalorder %v313, 0
      %vm502 = vcmp.ne.s32.totalorder %v320, 0
      %vm503 = vcmp.ne.s32.totalorder %v327, 0
      %vm504 = vcmp.ne.s32.totalorder %v334, 0
      %vm505 = vcmp.ne.s32.totalorder %v341, 0
      %vm506 = vcmp.ne.s32.totalorder %v348, 0
      %vm507 = vcmp.ne.s32.totalorder %v355, 0
      %vm508 = vcmp.ne.s32.totalorder %v362, 0
      %vm509 = vcmp.ne.s32.totalorder %v369, 0
      %vm510 = vcmp.ne.s32.totalorder %v376, 0
      %vm511 = vcmp.ne.s32.totalorder %v383, 0
      %vm512 = vcmp.ne.s32.totalorder %v390, 0
      %vm513 = vcmp.ne.s32.totalorder %v397, 0
      %vm514 = vcmp.ne.s32.totalorder %v404, 0
      %vm515 = vcmp.ne.s32.totalorder %v411, 0
      %vm516 = vcmp.ne.s32.totalorder %v418, 0
      %vm517 = vcmp.ne.s32.totalorder %v425, 0
      %vm518 = vcmp.ne.s32.totalorder %v432, 0
      %vm519 = vcmp.ne.s32.totalorder %v439, 0
      %vm520 = vcmp.ne.s32.totalorder %v446, 0
      %vm521 = vcmp.ne.s32.totalorder %v453, 0
      %vm522 = vcmp.ne.s32.totalorder %v460, 0
      %vm523 = vcmp.ne.s32.totalorder %v467, 0
      %vm524 = vcmp.ne.s32.totalorder %v474, 0
      %vm525 = vcmp.ne.s32.totalorder %v481, 0
      %vm526 = vcmp.ne.s32.totalorder %v488, 0
      %vm527 = vcmp.ne.s32.totalorder %v495, 0
      %vm528 = vcmp.lt.s32.totalorder %v278, 0
      %vm529 = vcmp.lt.s32.totalorder %v285, 0
      %vm530 = vcmp.lt.s32.totalorder %v292, 0
      %vm531 = vcmp.lt.s32.totalorder %v299, 0
      %vm532 = vcmp.lt.s32.totalorder %v306, 0
      %vm533 = vcmp.lt.s32.totalorder %v313, 0
      %vm534 = vcmp.lt.s32.totalorder %v320, 0
      %vm535 = vcmp.lt.s32.totalorder %v327, 0
      %vm536 = vcmp.lt.s32.totalorder %v334, 0
      %vm537 = vcmp.lt.s32.totalorder %v341, 0
      %vm538 = vcmp.lt.s32.totalorder %v348, 0
      %vm539 = vcmp.lt.s32.totalorder %v355, 0
      %vm540 = vcmp.lt.s32.totalorder %v362, 0
      %vm541 = vcmp.lt.s32.totalorder %v369, 0
      %vm542 = vcmp.lt.s32.totalorder %v376, 0
      %vm543 = vcmp.lt.s32.totalorder %v383, 0
      %vm544 = vcmp.lt.s32.totalorder %v390, 0
      %vm545 = vcmp.lt.s32.totalorder %v397, 0
      %vm546 = vcmp.lt.s32.totalorder %v404, 0
      %vm547 = vcmp.lt.s32.totalorder %v411, 0
      %vm548 = vcmp.lt.s32.totalorder %v418, 0
      %vm549 = vcmp.lt.s32.totalorder %v425, 0
      %vm550 = vcmp.lt.s32.totalorder %v432, 0
      %vm551 = vcmp.lt.s32.totalorder %v439, 0
      %vm552 = vcmp.lt.s32.totalorder %v446, 0
      %vm553 = vcmp.lt.s32.totalorder %v453, 0
      %vm554 = vcmp.lt.s32.totalorder %v460, 0
      %vm555 = vcmp.lt.s32.totalorder %v467, 0
      %vm556 = vcmp.lt.s32.totalorder %v474, 0
      %vm557 = vcmp.lt.s32.totalorder %v481, 0
      %vm558 = vcmp.lt.s32.totalorder %v488, 0
      %vm559 = vcmp.lt.s32.totalorder %v495, 0
      %vm560 = vmand %vm528, %vm496
      %vm561 = vmand %vm529, %vm497
      %vm562 = vmand %vm530, %vm498
      %vm563 = vmand %vm531, %vm499
      %vm564 = vmand %vm532, %vm500
      %vm565 = vmand %vm533, %vm501
      %vm566 = vmand %vm534, %vm502
      %vm567 = vmand %vm535, %vm503
      %vm568 = vmand %vm536, %vm504
      %vm569 = vmand %vm537, %vm505
      %vm570 = vmand %vm538, %vm506
      %vm571 = vmand %vm539, %vm507
      %vm572 = vmand %vm540, %vm508
      %vm573 = vmand %vm541, %vm509
      %vm574 = vmand %vm542, %vm510
      %vm575 = vmand %vm543, %vm511
      %vm576 = vmand %vm544, %vm512
      %vm577 = vmand %vm545, %vm513
      %vm578 = vmand %vm546, %vm514
      %vm579 = vmand %vm547, %vm515
      %vm580 = vmand %vm548, %vm516
      %vm581 = vmand %vm549, %vm517
      %vm582 = vmand %vm550, %vm518
      %vm583 = vmand %vm551, %vm519
      %vm584 = vmand %vm552, %vm520
      %vm585 = vmand %vm553, %vm521
      %vm586 = vmand %vm554, %vm522
      %vm587 = vmand %vm555, %vm523
      %vm588 = vmand %vm556, %vm524
      %vm589 = vmand %vm557, %vm525
      %vm590 = vmand %vm558, %vm526
      %vm591 = vmand %vm559, %vm527
      %v592 = vadd.s32 %v278, 16
      %v593 = vadd.s32 %v285, 16
      %v594 = vadd.s32 %v292, 16
      %v595 = vadd.s32 %v299, 16
      %v596 = vadd.s32 %v306, 16
      %v597 = vadd.s32 %v313, 16
      %v598 = vadd.s32 %v320, 16
      %v599 = vadd.s32 %v327, 16
      %v600 = vadd.s32 %v334, 16
      %v601 = vadd.s32 %v341, 16
      %v602 = vadd.s32 %v348, 16
      %v603 = vadd.s32 %v355, 16
      %v604 = vadd.s32 %v362, 16
      %v605 = vadd.s32 %v369, 16
      %v606 = vadd.s32 %v376, 16
      %v607 = vadd.s32 %v383, 16
      %v608 = vadd.s32 %v390, 16
      %v609 = vadd.s32 %v397, 16
      %v610 = vadd.s32 %v404, 16
      %v611 = vadd.s32 %v411, 16
      %v612 = vadd.s32 %v418, 16
      %v613 = vadd.s32 %v425, 16
      %v614 = vadd.s32 %v432, 16
      %v615 = vadd.s32 %v439, 16
      %v616 = vadd.s32 %v446, 16
      %v617 = vadd.s32 %v453, 16
      %v618 = vadd.s32 %v460, 16
      %v619 = vadd.s32 %v467, 16
      %v620 = vadd.s32 %v474, 16
      %v621 = vadd.s32 %v481, 16
      %v622 = vadd.s32 %v488, 16
      %v623 = vadd.s32 %v495, 16
      %v624 = vsel %vm560, %v592, %v278
      %v625 = vsel %vm561, %v593, %v285
      %v626 = vsel %vm562, %v594, %v292
      %v627 = vsel %vm563, %v595, %v299
      %v628 = vsel %vm564, %v596, %v306
      %v629 = vsel %vm565, %v597, %v313
      %v630 = vsel %vm566, %v598, %v320
      %v631 = vsel %vm567, %v599, %v327
      %v632 = vsel %vm568, %v600, %v334
      %v633 = vsel %vm569, %v601, %v341
      %v634 = vsel %vm570, %v602, %v348
      %v635 = vsel %vm571, %v603, %v355
      %v636 = vsel %vm572, %v604, %v362
      %v637 = vsel %vm573, %v605, %v369
      %v638 = vsel %vm574, %v606, %v376
      %v639 = vsel %vm575, %v607, %v383
      %v640 = vsel %vm576, %v608, %v390
      %v641 = vsel %vm577, %v609, %v397
      %v642 = vsel %vm578, %v610, %v404
      %v643 = vsel %vm579, %v611, %v411
      %v644 = vsel %vm580, %v612, %v418
      %v645 = vsel %vm581, %v613, %v425
      %v646 = vsel %vm582, %v614, %v432
      %v647 = vsel %vm583, %v615, %v439
      %v648 = vsel %vm584, %v616, %v446
      %v649 = vsel %vm585, %v617, %v453
      %v650 = vsel %vm586, %v618, %v460
      %v651 = vsel %vm587, %v619, %v467
      %v652 = vsel %vm588, %v620, %v474
      %v653 = vsel %vm589, %v621, %v481
      %v654 = vsel %vm590, %v622, %v488
      %v655 = vsel %vm591, %v623, %v495
      %v656 = vld [vmem:[%s219] sm:$0xff]
      %v657 = vld [vmem:[%s219 + $0x8] sm:$0xff]
      %v658 = vld [vmem:[%s219 + $0x10] sm:$0xff]
      %v659 = vld [vmem:[%s219 + $0x18] sm:$0xff]
      %v660 = vld [vmem:[%s219 + $0x20] sm:$0xff]
      %v661 = vld [vmem:[%s219 + $0x28] sm:$0xff]
      %v662 = vld [vmem:[%s219 + $0x30] sm:$0xff]
      %v663 = vld [vmem:[%s219 + $0x38] sm:$0xff]
      %v664 = vld [vmem:[%s219 + $0x40] sm:$0xff]
      %v665 = vld [vmem:[%s219 + $0x48] sm:$0xff]
      %v666 = vld [vmem:[%s219 + $0x50] sm:$0xff]
      %v667 = vld [vmem:[%s219 + $0x58] sm:$0xff]
      %v668 = vld [vmem:[%s219 + $0x60] sm:$0xff]
      %v669 = vld [vmem:[%s219 + $0x68] sm:$0xff]
      %v670 = vld [vmem:[%s219 + $0x70] sm:$0xff]
      %v671 = vld [vmem:[%s219 + $0x78] sm:$0xff]
      %v672 = vld [vmem:[%s219 + $0x80] sm:$0xff]
      %v673 = vld [vmem:[%s219 + $0x88] sm:$0xff]
      %v674 = vld [vmem:[%s219 + $0x90] sm:$0xff]
      %v675 = vld [vmem:[%s219 + $0x98] sm:$0xff]
      %v676 = vld [vmem:[%s219 + $0xa0] sm:$0xff]
      %v677 = vld [vmem:[%s219 + $0xa8] sm:$0xff]
      %v678 = vld [vmem:[%s219 + $0xb0] sm:$0xff]
      %v679 = vld [vmem:[%s219 + $0xb8] sm:$0xff]
      %v680 = vld [vmem:[%s219 + $0xc0] sm:$0xff]
      %v681 = vld [vmem:[%s219 + $0xc8] sm:$0xff]
      %v682 = vld [vmem:[%s219 + $0xd0] sm:$0xff]
      %v683 = vld [vmem:[%s219 + $0xd8] sm:$0xff]
      %v684 = vld [vmem:[%s219 + $0xe0] sm:$0xff]
      %v685 = vld [vmem:[%s219 + $0xe8] sm:$0xff]
      %v686 = vld [vmem:[%s219 + $0xf0] sm:$0xff]
      %v687 = vld [vmem:[%s219 + $0xf8] sm:$0xff]
      %v688 = vpack.c.bf16 %v657, %v656
      %v689 = vpack.c.bf16 %v659, %v658
      %v690 = vpack.c.bf16 %v661, %v660
      %v691 = vpack.c.bf16 %v663, %v662
      %v692 = vpack.c.bf16 %v665, %v664
      %v693 = vpack.c.bf16 %v667, %v666
      %v694 = vpack.c.bf16 %v669, %v668
      %v695 = vpack.c.bf16 %v671, %v670
      %v696 = vpack.c.bf16 %v673, %v672
      %v697 = vpack.c.bf16 %v675, %v674
      %v698 = vpack.c.bf16 %v677, %v676
      %v699 = vpack.c.bf16 %v679, %v678
      %v700 = vpack.c.bf16 %v681, %v680
      %v701 = vpack.c.bf16 %v683, %v682
      %v702 = vpack.c.bf16 %v685, %v684
      %v703 = vpack.c.bf16 %v687, %v686
      %v704 = vld [vmem:[%s1] sm:$0xf]
      %v705 = vld [vmem:[%s2] sm:$0x1]
      %v707 = vlaneseq
      %v708 = vshrl.u32 %v707, 7
      %v709 = vsub.s32 0, %v708
      %v710 = vrot.slane %v705, %v709
      %v713 = vsel %vm226, %v688, 0
      %v716 = vsel %vm226, %v689, 0
      %v719 = vsel %vm226, %v690, 0
      %v722 = vsel %vm226, %v691, 0
      %v725 = vsel %vm226, %v692, 0
      %v728 = vsel %vm226, %v693, 0
      %v731 = vsel %vm226, %v694, 0
      %v734 = vsel %vm226, %v695, 0
      %v737 = vsel %vm226, %v696, 0
      %v740 = vsel %vm226, %v697, 0
      %v743 = vsel %vm226, %v698, 0
      %v746 = vsel %vm226, %v699, 0
      %v749 = vsel %vm226, %v700, 0
      %v752 = vsel %vm226, %v701, 0
      %v755 = vsel %vm226, %v702, 0
      %v758 = vsel %vm226, %v703, 0
      %vm760 = vcmask 1043456
      %v762 = vsel %vm760, %v704, 0
      %764 = vmatprep.subr.bf16.mxu0 0
      %765 = vmatpush1.bf16.msra.mxu0 %v762
      %766 = vmatprep.subr.bf16.mxu0 0
      %767 = vmatpush1.bf16.msra.mxu0 0
      %768 = vmatprep.subr.bf16.mxu0 0
      %769 = vmatpush1.bf16.msra.mxu0 0
      %770 = vmatprep.subr.bf16.mxu0 0
      %771 = vmatpush1.bf16.msra.mxu0 0
      %772 = vmatprep.subr.bf16.mxu0 0
      %773 = vmatpush1.bf16.msra.mxu0 0
      %774 = vmatprep.subr.bf16.mxu0 0
      %775 = vmatpush1.bf16.msra.mxu0 0
      %776 = vmatprep.subr.bf16.mxu0 0
      %777 = vmatpush1.bf16.msra.mxu0 0
      %778 = vmatprep.subr.bf16.mxu0 0
      %779 = vmatpush1.bf16.msra.mxu0 0
      %780 = vmatprep.subr.bf16.mxu0 0
      %781 = vmatpush1.bf16.msra.mxu0 0
      %782 = vmatprep.subr.bf16.mxu0 0
      %783 = vmatpush1.bf16.msra.mxu0 0
      %784 = vmatprep.subr.bf16.mxu0 0
      %785 = vmatpush1.bf16.msra.mxu0 0
      %786 = vmatprep.subr.bf16.mxu0 0
      %787 = vmatpush1.bf16.msra.mxu0 0
      %788 = vmatprep.subr.bf16.mxu0 0
      %789 = vmatpush1.bf16.msra.mxu0 0
      %790 = vmatprep.subr.bf16.mxu0 0
      %791 = vmatpush1.bf16.msra.mxu0 0
      %792 = vmatprep.subr.bf16.mxu0 0
      %793 = vmatpush1.bf16.msra.mxu0 0
      %794 = vmatprep.subr.bf16.mxu0 0
      %795 = vmatpush1.bf16.msra.mxu0 0
      %796 = vmatprep.mubr.bf16.mxu0 0
      %797 = vmatmul.mubr.bf16.gmra.mrb[0].mxu0 %v713
      %v798 = vpop.f32.mrb[0].mxu0
      %v799 = vadd.f32 %v710, %v798
      %v800 = vpop.f32.mrb[0].mxu0
      %v801 = vpop.f32.mrb[0].mxu0
      %v802 = vadd.f32 %v710, %v801
      %v803 = vpop.f32.mrb[0].mxu0
      %804 = vmatprep.mubr.bf16.mxu0 0
      %805 = vmatmul.mubr.bf16.gmra.mrb[0].mxu0 %v716
      %v806 = vpop.f32.mrb[0].mxu0
      %v807 = vadd.f32 %v710, %v806
      %v808 = vpop.f32.mrb[0].mxu0
      %v809 = vpop.f32.mrb[0].mxu0
      %v810 = vadd.f32 %v710, %v809
      %v811 = vpop.f32.mrb[0].mxu0
      %812 = vmatprep.mubr.bf16.mxu0 0
      %813 = vmatmul.mubr.bf16.gmra.mrb[0].mxu0 %v719
      %v814 = vpop.f32.mrb[0].mxu0
      %v815 = vadd.f32 %v710, %v814
      %v816 = vpop.f32.mrb[0].mxu0
      %v817 = vpop.f32.mrb[0].mxu0
      %v818 = vadd.f32 %v710, %v817
      %v819 = vpop.f32.mrb[0].mxu0
      %820 = vmatprep.mubr.bf16.mxu0 0
      %821 = vmatmul.mubr.bf16.gmra.mrb[0].mxu0 %v722
      %v822 = vpop.f32.mrb[0].mxu0
      %v823 = vadd.f32 %v710, %v822
      %v824 = vpop.f32.mrb[0].mxu0
      %v825 = vpop.f32.mrb[0].mxu0
      %v826 = vadd.f32 %v710, %v825
      %v827 = vpop.f32.mrb[0].mxu0
      %828 = vmatprep.mubr.bf16.mxu0 0
      %829 = vmatmul.mubr.bf16.gmra.mrb[0].mxu0 %v725
      %v830 = vpop.f32.mrb[0].mxu0
      %v831 = vadd.f32 %v710, %v830
      %v832 = vpop.f32.mrb[0].mxu0
      %v833 = vpop.f32.mrb[0].mxu0
      %v834 = vadd.f32 %v710, %v833
      %v835 = vpop.f32.mrb[0].mxu0
      %836 = vmatprep.mubr.bf16.mxu0 0
      %837 = vmatmul.mubr.bf16.gmra.mrb[0].mxu0 %v728
      %v838 = vpop.f32.mrb[0].mxu0
      %v839 = vadd.f32 %v710, %v838
      %v840 = vpop.f32.mrb[0].mxu0
      %v841 = vpop.f32.mrb[0].mxu0
      %v842 = vadd.f32 %v710, %v841
      %v843 = vpop.f32.mrb[0].mxu0
      %844 = vmatprep.mubr.bf16.mxu0 0
      %845 = vmatmul.mubr.bf16.gmra.mrb[0].mxu0 %v731
      %v846 = vpop.f32.mrb[0].mxu0
      %v847 = vadd.f32 %v710, %v846
      %v848 = vpop.f32.mrb[0].mxu0
      %v849 = vpop.f32.mrb[0].mxu0
      %v850 = vadd.f32 %v710, %v849
      %v851 = vpop.f32.mrb[0].mxu0
      %852 = vmatprep.mubr.bf16.mxu0 0
      %853 = vmatmul.mubr.bf16.gmra.mrb[0].mxu0 %v734
      %v854 = vpop.f32.mrb[0].mxu0
      %v855 = vadd.f32 %v710, %v854
      %v856 = vpop.f32.mrb[0].mxu0
      %v857 = vpop.f32.mrb[0].mxu0
      %v858 = vadd.f32 %v710, %v857
      %v859 = vpop.f32.mrb[0].mxu0
      %860 = vmatprep.mubr.bf16.mxu0 0
      %861 = vmatmul.mubr.bf16.gmra.mrb[0].mxu0 %v737
      %v862 = vpop.f32.mrb[0].mxu0
      %v863 = vadd.f32 %v710, %v862
      %v864 = vpop.f32.mrb[0].mxu0
      %v865 = vpop.f32.mrb[0].mxu0
      %v866 = vadd.f32 %v710, %v865
      %v867 = vpop.f32.mrb[0].mxu0
      %868 = vmatprep.mubr.bf16.mxu0 0
      %869 = vmatmul.mubr.bf16.gmra.mrb[0].mxu0 %v740
      %v870 = vpop.f32.mrb[0].mxu0
      %v871 = vadd.f32 %v710, %v870
      %v872 = vpop.f32.mrb[0].mxu0
      %v873 = vpop.f32.mrb[0].mxu0
      %v874 = vadd.f32 %v710, %v873
      %v875 = vpop.f32.mrb[0].mxu0
      %876 = vmatprep.mubr.bf16.mxu0 0
      %877 = vmatmul.mubr.bf16.gmra.mrb[0].mxu0 %v743
      %v878 = vpop.f32.mrb[0].mxu0
      %v879 = vadd.f32 %v710, %v878
      %v880 = vpop.f32.mrb[0].mxu0
      %v881 = vpop.f32.mrb[0].mxu0
      %v882 = vadd.f32 %v710, %v881
      %v883 = vpop.f32.mrb[0].mxu0
      %884 = vmatprep.mubr.bf16.mxu0 0
      %885 = vmatmul.mubr.bf16.gmra.mrb[0].mxu0 %v746
      %v886 = vpop.f32.mrb[0].mxu0
      %v887 = vadd.f32 %v710, %v886
      %v888 = vpop.f32.mrb[0].mxu0
      %v889 = vpop.f32.mrb[0].mxu0
      %v890 = vadd.f32 %v710, %v889
      %v891 = vpop.f32.mrb[0].mxu0
      %892 = vmatprep.mubr.bf16.mxu0 0
      %893 = vmatmul.mubr.bf16.gmra.mrb[0].mxu0 %v749
      %v894 = vpop.f32.mrb[0].mxu0
      %v895 = vadd.f32 %v710, %v894
      %v896 = vpop.f32.mrb[0].mxu0
      %v897 = vpop.f32.mrb[0].mxu0
      %v898 = vadd.f32 %v710, %v897
      %v899 = vpop.f32.mrb[0].mxu0
      %900 = vmatprep.mubr.bf16.mxu0 0
      %901 = vmatmul.mubr.bf16.gmra.mrb[0].mxu0 %v752
      %v902 = vpop.f32.mrb[0].mxu0
      %v903 = vadd.f32 %v710, %v902
      %v904 = vpop.f32.mrb[0].mxu0
      %v905 = vpop.f32.mrb[0].mxu0
      %v906 = vadd.f32 %v710, %v905
      %v907 = vpop.f32.mrb[0].mxu0
      %908 = vmatprep.mubr.bf16.mxu0 0
      %909 = vmatmul.mubr.bf16.gmra.mrb[0].mxu0 %v755
      %v910 = vpop.f32.mrb[0].mxu0
      %v911 = vadd.f32 %v710, %v910
      %v912 = vpop.f32.mrb[0].mxu0
      %v913 = vpop.f32.mrb[0].mxu0
      %v914 = vadd.f32 %v710, %v913
      %v915 = vpop.f32.mrb[0].mxu0
      %916 = vmatprep.mubr.bf16.mxu0 0
      %917 = vmatmul.mubr.bf16.gmra.mrb[0].mxu0 %v758
      %v918 = vpop.f32.mrb[0].mxu0
      %v919 = vadd.f32 %v710, %v918
      %v920 = vpop.f32.mrb[0].mxu0
      %v921 = vpop.f32.mrb[0].mxu0
      %v922 = vadd.f32 %v710, %v921
      %v923 = vpop.f32.mrb[0].mxu0
      %924 = vdwg.mxu0
      %v925 = vxor.u32 %v799, 2147483648
      %v926 = vxor.u32 %v802, 2147483648
      %v927 = vxor.u32 %v807, 2147483648
      %v928 = vxor.u32 %v810, 2147483648
      %v929 = vxor.u32 %v815, 2147483648
      %v930 = vxor.u32 %v818, 2147483648
      %v931 = vxor.u32 %v823, 2147483648
      %v932 = vxor.u32 %v826, 2147483648
      %v933 = vxor.u32 %v831, 2147483648
      %v934 = vxor.u32 %v834, 2147483648
      %v935 = vxor.u32 %v839, 2147483648
      %v936 = vxor.u32 %v842, 2147483648
      %v937 = vxor.u32 %v847, 2147483648
      %v938 = vxor.u32 %v850, 2147483648
      %v939 = vxor.u32 %v855, 2147483648
      %v940 = vxor.u32 %v858, 2147483648
      %v941 = vxor.u32 %v863, 2147483648
      %v942 = vxor.u32 %v866, 2147483648
      %v943 = vxor.u32 %v871, 2147483648
      %v944 = vxor.u32 %v874, 2147483648
      %v945 = vxor.u32 %v879, 2147483648
      %v946 = vxor.u32 %v882, 2147483648
      %v947 = vxor.u32 %v887, 2147483648
      %v948 = vxor.u32 %v890, 2147483648
      %v949 = vxor.u32 %v895, 2147483648
      %v950 = vxor.u32 %v898, 2147483648
      %v951 = vxor.u32 %v903, 2147483648
      %v952 = vxor.u32 %v906, 2147483648
      %v953 = vxor.u32 %v911, 2147483648
      %v954 = vxor.u32 %v914, 2147483648
      %v955 = vxor.u32 %v919, 2147483648
      %v956 = vxor.u32 %v922, 2147483648
      %v957 = vmul.f32 %v925, 1.442695
      %v958 = vpow.pop %v957
      %v959 = vmul.f32 %v926, 1.442695
      %v960 = vpow.pop %v959
      %v961 = vmul.f32 %v927, 1.442695
      %v962 = vpow.pop %v961
      %v963 = vmul.f32 %v928, 1.442695
      %v964 = vpow.pop %v963
      %v965 = vmul.f32 %v929, 1.442695
      %v966 = vpow.pop %v965
      %v967 = vmul.f32 %v930, 1.442695
      %v968 = vpow.pop %v967
      %v969 = vmul.f32 %v931, 1.442695
      %v970 = vpow.pop %v969
      %v971 = vmul.f32 %v932, 1.442695
      %v972 = vpow.pop %v971
      %v973 = vmul.f32 %v933, 1.442695
      %v974 = vpow.pop %v973
      %v975 = vmul.f32 %v934, 1.442695
      %v976 = vpow.pop %v975
      %v977 = vmul.f32 %v935, 1.442695
      %v978 = vpow.pop %v977
      %v979 = vmul.f32 %v936, 1.442695
      %v980 = vpow.pop %v979
      %v981 = vmul.f32 %v937, 1.442695
      %v982 = vpow.pop %v981
      %v983 = vmul.f32 %v938, 1.442695
      %v984 = vpow.pop %v983
      %v985 = vmul.f32 %v939, 1.442695
      %v986 = vpow.pop %v985
      %v987 = vmul.f32 %v940, 1.442695
      %v988 = vpow.pop %v987
      %v989 = vmul.f32 %v941, 1.442695
      %v990 = vpow.pop %v989
      %v991 = vmul.f32 %v942, 1.442695
      %v992 = vpow.pop %v991
      %v993 = vmul.f32 %v943, 1.442695
      %v994 = vpow.pop %v993
      %v995 = vmul.f32 %v944, 1.442695
      %v996 = vpow.pop %v995
      %v997 = vmul.f32 %v945, 1.442695
      %v998 = vpow.pop %v997
      %v999 = vmul.f32 %v946, 1.442695
      %v1000 = vpow.pop %v999
      %v1001 = vmul.f32 %v947, 1.442695
      %v1002 = vpow.pop %v1001
      %v1003 = vmul.f32 %v948, 1.442695
      %v1004 = vpow.pop %v1003
      %v1005 = vmul.f32 %v949, 1.442695
      %v1006 = vpow.pop %v1005
      %v1007 = vmul.f32 %v950, 1.442695
      %v1008 = vpow.pop %v1007
      %v1009 = vmul.f32 %v951, 1.442695
      %v1010 = vpow.pop %v1009
      %v1011 = vmul.f32 %v952, 1.442695
      %v1012 = vpow.pop %v1011
      %v1013 = vmul.f32 %v953, 1.442695
      %v1014 = vpow.pop %v1013
      %v1015 = vmul.f32 %v954, 1.442695
      %v1016 = vpow.pop %v1015
      %v1017 = vmul.f32 %v955, 1.442695
      %v1018 = vpow.pop %v1017
      %v1019 = vmul.f32 %v956, 1.442695
      %v1020 = vpow.pop %v1019
      %v1021 = vadd.f32 %v958, 1.0
      %v1022 = vadd.f32 %v960, 1.0
      %v1023 = vadd.f32 %v962, 1.0
      %v1024 = vadd.f32 %v964, 1.0
      %v1025 = vadd.f32 %v966, 1.0
      %v1026 = vadd.f32 %v968, 1.0
      %v1027 = vadd.f32 %v970, 1.0
      %v1028 = vadd.f32 %v972, 1.0
      %v1029 = vadd.f32 %v974, 1.0
      %v1030 = vadd.f32 %v976, 1.0
      %v1031 = vadd.f32 %v978, 1.0
      %v1032 = vadd.f32 %v980, 1.0
      %v1033 = vadd.f32 %v982, 1.0
      %v1034 = vadd.f32 %v984, 1.0
      %v1035 = vadd.f32 %v986, 1.0
      %v1036 = vadd.f32 %v988, 1.0
      %v1037 = vadd.f32 %v990, 1.0
      %v1038 = vadd.f32 %v992, 1.0
      %v1039 = vadd.f32 %v994, 1.0
      %v1040 = vadd.f32 %v996, 1.0
      %v1041 = vadd.f32 %v998, 1.0
      %v1042 = vadd.f32 %v1000, 1.0
      %v1043 = vadd.f32 %v1002, 1.0
      %v1044 = vadd.f32 %v1004, 1.0
      %v1045 = vadd.f32 %v1006, 1.0
      %v1046 = vadd.f32 %v1008, 1.0
      %v1047 = vadd.f32 %v1010, 1.0
      %v1048 = vadd.f32 %v1012, 1.0
      %v1049 = vadd.f32 %v1014, 1.0
      %v1050 = vadd.f32 %v1016, 1.0
      %v1051 = vadd.f32 %v1018, 1.0
      %v1052 = vadd.f32 %v1020, 1.0
      %v1053 = vrcp.pop %v1021
      %v1054 = vmul.f32 1.0, %v1053
      %v1055 = vrcp.pop %v1022
      %v1056 = vmul.f32 1.0, %v1055
      %v1057 = vrcp.pop %v1023
      %v1058 = vmul.f32 1.0, %v1057
      %v1059 = vrcp.pop %v1024
      %v1060 = vmul.f32 1.0, %v1059
      %v1061 = vrcp.pop %v1025
      %v1062 = vmul.f32 1.0, %v1061
      %v1063 = vrcp.pop %v1026
      %v1064 = vmul.f32 1.0, %v1063
      %v1065 = vrcp.pop %v1027
      %v1066 = vmul.f32 1.0, %v1065
      %v1067 = vrcp.pop %v1028
      %v1068 = vmul.f32 1.0, %v1067
      %v1069 = vrcp.pop %v1029
      %v1070 = vmul.f32 1.0, %v1069
      %v1071 = vrcp.pop %v1030
      %v1072 = vmul.f32 1.0, %v1071
      %v1073 = vrcp.pop %v1031
      %v1074 = vmul.f32 1.0, %v1073
      %v1075 = vrcp.pop %v1032
      %v1076 = vmul.f32 1.0, %v1075
      %v1077 = vrcp.pop %v1033
      %v1078 = vmul.f32 1.0, %v1077
      %v1079 = vrcp.pop %v1034
      %v1080 = vmul.f32 1.0, %v1079
      %v1081 = vrcp.pop %v1035
      %v1082 = vmul.f32 1.0, %v1081
      %v1083 = vrcp.pop %v1036
      %v1084 = vmul.f32 1.0, %v1083
      %v1085 = vrcp.pop %v1037
      %v1086 = vmul.f32 1.0, %v1085
      %v1087 = vrcp.pop %v1038
      %v1088 = vmul.f32 1.0, %v1087
      %v1089 = vrcp.pop %v1039
      %v1090 = vmul.f32 1.0, %v1089
      %v1091 = vrcp.pop %v1040
      %v1092 = vmul.f32 1.0, %v1091
      %v1093 = vrcp.pop %v1041
      %v1094 = vmul.f32 1.0, %v1093
      %v1095 = vrcp.pop %v1042
      %v1096 = vmul.f32 1.0, %v1095
      %v1097 = vrcp.pop %v1043
      %v1098 = vmul.f32 1.0, %v1097
      %v1099 = vrcp.pop %v1044
      %v1100 = vmul.f32 1.0, %v1099
      %v1101 = vrcp.pop %v1045
      %v1102 = vmul.f32 1.0, %v1101
      %v1103 = vrcp.pop %v1046
      %v1104 = vmul.f32 1.0, %v1103
      %v1105 = vrcp.pop %v1047
      %v1106 = vmul.f32 1.0, %v1105
      %v1107 = vrcp.pop %v1048
      %v1108 = vmul.f32 1.0, %v1107
      %v1109 = vrcp.pop %v1049
      %v1110 = vmul.f32 1.0, %v1109
      %v1111 = vrcp.pop %v1050
      %v1112 = vmul.f32 1.0, %v1111
      %v1113 = vrcp.pop %v1051
      %v1114 = vmul.f32 1.0, %v1113
      %v1115 = vrcp.pop %v1052
      %v1116 = vmul.f32 1.0, %v1115
      %v1117 = vmul.f32 %v799, %v1054
      %v1118 = vmul.f32 %v802, %v1056
      %v1119 = vmul.f32 %v807, %v1058
      %v1120 = vmul.f32 %v810, %v1060
      %v1121 = vmul.f32 %v815, %v1062
      %v1122 = vmul.f32 %v818, %v1064
      %v1123 = vmul.f32 %v823, %v1066
      %v1124 = vmul.f32 %v826, %v1068
      %v1125 = vmul.f32 %v831, %v1070
      %v1126 = vmul.f32 %v834, %v1072
      %v1127 = vmul.f32 %v839, %v1074
      %v1128 = vmul.f32 %v842, %v1076
      %v1129 = vmul.f32 %v847, %v1078
      %v1130 = vmul.f32 %v850, %v1080
      %v1131 = vmul.f32 %v855, %v1082
      %v1132 = vmul.f32 %v858, %v1084
      %v1133 = vmul.f32 %v863, %v1086
      %v1134 = vmul.f32 %v866, %v1088
      %v1135 = vmul.f32 %v871, %v1090
      %v1136 = vmul.f32 %v874, %v1092
      %v1137 = vmul.f32 %v879, %v1094
      %v1138 = vmul.f32 %v882, %v1096
      %v1139 = vmul.f32 %v887, %v1098
      %v1140 = vmul.f32 %v890, %v1100
      %v1141 = vmul.f32 %v895, %v1102
      %v1142 = vmul.f32 %v898, %v1104
      %v1143 = vmul.f32 %v903, %v1106
      %v1144 = vmul.f32 %v906, %v1108
      %v1145 = vmul.f32 %v911, %v1110
      %v1146 = vmul.f32 %v914, %v1112
      %v1147 = vmul.f32 %v919, %v1114
      %v1148 = vmul.f32 %v922, %v1116
      %1149 = vst.msk [vmem:[#allocation2 + $0x30] sm:$0xff] %vm226, %v1117
      %1150 = vst.msk [vmem:[#allocation2 + $0x38] sm:$0xff] %vm226, %v1118
      %1151 = vst.msk [vmem:[#allocation2 + $0x40] sm:$0xff] %vm226, %v1119
      %1152 = vst.msk [vmem:[#allocation2 + $0x48] sm:$0xff] %vm226, %v1120
      %1153 = vst.msk [vmem:[#allocation2 + $0x50] sm:$0xff] %vm226, %v1121
      %1154 = vst.msk [vmem:[#allocation2 + $0x58] sm:$0xff] %vm226, %v1122
      %1155 = vst.msk [vmem:[#allocation2 + $0x60] sm:$0xff] %vm226, %v1123
      %1156 = vst.msk [vmem:[#allocation2 + $0x68] sm:$0xff] %vm226, %v1124
      %1157 = vst.msk [vmem:[#allocation2 + $0x70] sm:$0xff] %vm226, %v1125
      %1158 = vst.msk [vmem:[#allocation2 + $0x78] sm:$0xff] %vm226, %v1126
      %1159 = vst.msk [vmem:[#allocation2 + $0x80] sm:$0xff] %vm226, %v1127
      %1160 = vst.msk [vmem:[#allocation2 + $0x88] sm:$0xff] %vm226, %v1128
      %1161 = vst.msk [vmem:[#allocation2 + $0x90] sm:$0xff] %vm226, %v1129
      %1162 = vst.msk [vmem:[#allocation2 + $0x98] sm:$0xff] %vm226, %v1130
      %1163 = vst.msk [vmem:[#allocation2 + $0xa0] sm:$0xff] %vm226, %v1131
      %1164 = vst.msk [vmem:[#allocation2 + $0xa8] sm:$0xff] %vm226, %v1132
      %1165 = vst.msk [vmem:[#allocation2 + $0xb0] sm:$0xff] %vm226, %v1133
      %1166 = vst.msk [vmem:[#allocation2 + $0xb8] sm:$0xff] %vm226, %v1134
      %1167 = vst.msk [vmem:[#allocation2 + $0xc0] sm:$0xff] %vm226, %v1135
      %1168 = vst.msk [vmem:[#allocation2 + $0xc8] sm:$0xff] %vm226, %v1136
      %1169 = vst.msk [vmem:[#allocation2 + $0xd0] sm:$0xff] %vm226, %v1137
      %1170 = vst.msk [vmem:[#allocation2 + $0xd8] sm:$0xff] %vm226, %v1138
      %1171 = vst.msk [vmem:[#allocation2 + $0xe0] sm:$0xff] %vm226, %v1139
      %1172 = vst.msk [vmem:[#allocation2 + $0xe8] sm:$0xff] %vm226, %v1140
      %1173 = vst.msk [vmem:[#allocation2 + $0xf0] sm:$0xff] %vm226, %v1141
      %1174 = vst.msk [vmem:[#allocation2 + $0xf8] sm:$0xff] %vm226, %v1142
      %1175 = vst.msk [vmem:[#allocation2 + $0x100] sm:$0xff] %vm226, %v1143
      %1176 = vst.msk [vmem:[#allocation2 + $0x108] sm:$0xff] %vm226, %v1144
      %1177 = vst.msk [vmem:[#allocation2 + $0x110] sm:$0xff] %vm226, %v1145
      %1178 = vst.msk [vmem:[#allocation2 + $0x118] sm:$0xff] %vm226, %v1146
      %1179 = vst.msk [vmem:[#allocation2 + $0x120] sm:$0xff] %vm226, %v1147
      %1180 = vst.msk [vmem:[#allocation2 + $0x128] sm:$0xff] %vm226, %v1148
      %v1181 = vld [vmem:[#allocation2 + $0x31] sm:$0xff]
      %v1182 = vld [vmem:[#allocation2 + $0x39] sm:$0xff]
      %v1183 = vld [vmem:[#allocation2 + $0x41] sm:$0xff]
      %v1184 = vld [vmem:[#allocation2 + $0x49] sm:$0xff]
      %v1185 = vld [vmem:[#allocation2 + $0x51] sm:$0xff]
      %v1186 = vld [vmem:[#allocation2 + $0x59] sm:$0xff]
      %v1187 = vld [vmem:[#allocation2 + $0x61] sm:$0xff]
      %v1188 = vld [vmem:[#allocation2 + $0x69] sm:$0xff]
      %v1189 = vld [vmem:[#allocation2 + $0x71] sm:$0xff]
      %v1190 = vld [vmem:[#allocation2 + $0x79] sm:$0xff]
      %v1191 = vld [vmem:[#allocation2 + $0x81] sm:$0xff]
      %v1192 = vld [vmem:[#allocation2 + $0x89] sm:$0xff]
      %v1193 = vld [vmem:[#allocation2 + $0x91] sm:$0xff]
      %v1194 = vld [vmem:[#allocation2 + $0x99] sm:$0xff]
      %v1195 = vld [vmem:[#allocation2 + $0xa1] sm:$0xff]
      %v1196 = vld [vmem:[#allocation2 + $0xa9] sm:$0xff]
      %v1197 = vld [vmem:[#allocation2 + $0xb1] sm:$0xff]
      %v1198 = vld [vmem:[#allocation2 + $0xb9] sm:$0xff]
      %v1199 = vld [vmem:[#allocation2 + $0xc1] sm:$0xff]
      %v1200 = vld [vmem:[#allocation2 + $0xc9] sm:$0xff]
      %v1201 = vld [vmem:[#allocation2 + $0xd1] sm:$0xff]
      %v1202 = vld [vmem:[#allocation2 + $0xd9] sm:$0xff]
      %v1203 = vld [vmem:[#allocation2 + $0xe1] sm:$0xff]
      %v1204 = vld [vmem:[#allocation2 + $0xe9] sm:$0xff]
      %v1205 = vld [vmem:[#allocation2 + $0xf1] sm:$0xff]
      %v1206 = vld [vmem:[#allocation2 + $0xf9] sm:$0xff]
      %v1207 = vld [vmem:[#allocation2 + $0x101] sm:$0xff]
      %v1208 = vld [vmem:[#allocation2 + $0x109] sm:$0xff]
      %v1209 = vld [vmem:[#allocation2 + $0x111] sm:$0xff]
      %v1210 = vld [vmem:[#allocation2 + $0x119] sm:$0xff]
      %v1211 = vld [vmem:[#allocation2 + $0x121] sm:$0xff]
      %v1212 = vld [vmem:[#allocation2 + $0x129] sm:$0xff]
      %vm1213 = vcmp.lt.s32.totalorder %v624, 15
      %vm1214 = vcmp.lt.s32.totalorder %v625, 15
      %vm1215 = vcmp.lt.s32.totalorder %v626, 15
      %vm1216 = vcmp.lt.s32.totalorder %v627, 15
      %vm1217 = vcmp.lt.s32.totalorder %v628, 15
      %vm1218 = vcmp.lt.s32.totalorder %v629, 15
      %vm1219 = vcmp.lt.s32.totalorder %v630, 15
      %vm1220 = vcmp.lt.s32.totalorder %v631, 15
      %vm1221 = vcmp.lt.s32.totalorder %v632, 15
      %vm1222 = vcmp.lt.s32.totalorder %v633, 15
      %vm1223 = vcmp.lt.s32.totalorder %v634, 15
      %vm1224 = vcmp.lt.s32.totalorder %v635, 15
      %vm1225 = vcmp.lt.s32.totalorder %v636, 15
      %vm1226 = vcmp.lt.s32.totalorder %v637, 15
      %vm1227 = vcmp.lt.s32.totalorder %v638, 15
      %vm1228 = vcmp.lt.s32.totalorder %v639, 15
      %vm1229 = vcmp.lt.s32.totalorder %v640, 15
      %vm1230 = vcmp.lt.s32.totalorder %v641, 15
      %vm1231 = vcmp.lt.s32.totalorder %v642, 15
      %vm1232 = vcmp.lt.s32.totalorder %v643, 15
      %vm1233 = vcmp.lt.s32.totalorder %v644, 15
      %vm1234 = vcmp.lt.s32.totalorder %v645, 15
      %vm1235 = vcmp.lt.s32.totalorder %v646, 15
      %vm1236 = vcmp.lt.s32.totalorder %v647, 15
      %vm1237 = vcmp.lt.s32.totalorder %v648, 15
      %vm1238 = vcmp.lt.s32.totalorder %v649, 15
      %vm1239 = vcmp.lt.s32.totalorder %v650, 15
      %vm1240 = vcmp.lt.s32.totalorder %v651, 15
      %vm1241 = vcmp.lt.s32.totalorder %v652, 15
      %vm1242 = vcmp.lt.s32.totalorder %v653, 15
      %vm1243 = vcmp.lt.s32.totalorder %v654, 15
      %vm1244 = vcmp.lt.s32.totalorder %v655, 15
      %v1245 = vsel %vm1213, %v1181, -inf
      %v1246 = vsel %vm1214, %v1182, -inf
      %v1247 = vsel %vm1215, %v1183, -inf
      %v1248 = vsel %vm1216, %v1184, -inf
      %v1249 = vsel %vm1217, %v1185, -inf
      %v1250 = vsel %vm1218, %v1186, -inf
      %v1251 = vsel %vm1219, %v1187, -inf
      %v1252 = vsel %vm1220, %v1188, -inf
      %v1253 = vsel %vm1221, %v1189, -inf
      %v1254 = vsel %vm1222, %v1190, -inf
      %v1255 = vsel %vm1223, %v1191, -inf
      %v1256 = vsel %vm1224, %v1192, -inf
      %v1257 = vsel %vm1225, %v1193, -inf
      %v1258 = vsel %vm1226, %v1194, -inf
      %v1259 = vsel %vm1227, %v1195, -inf
      %v1260 = vsel %vm1228, %v1196, -inf
      %v1261 = vsel %vm1229, %v1197, -inf
      %v1262 = vsel %vm1230, %v1198, -inf
      %v1263 = vsel %vm1231, %v1199, -inf
      %v1264 = vsel %vm1232, %v1200, -inf
      %v1265 = vsel %vm1233, %v1201, -inf
      %v1266 = vsel %vm1234, %v1202, -inf
      %v1267 = vsel %vm1235, %v1203, -inf
      %v1268 = vsel %vm1236, %v1204, -inf
      %v1269 = vsel %vm1237, %v1205, -inf
      %v1270 = vsel %vm1238, %v1206, -inf
      %v1271 = vsel %vm1239, %v1207, -inf
      %v1272 = vsel %vm1240, %v1208, -inf
      %v1273 = vsel %vm1241, %v1209, -inf
      %v1274 = vsel %vm1242, %v1210, -inf
      %v1275 = vsel %vm1243, %v1211, -inf
      %v1276 = vsel %vm1244, %v1212, -inf
      %v1277 = vmax.f32 %v1117, %v1245
      %v1278 = vmax.f32 %v1118, %v1246
      %v1279 = vmax.f32 %v1119, %v1247
      %v1280 = vmax.f32 %v1120, %v1248
      %v1281 = vmax.f32 %v1121, %v1249
      %v1282 = vmax.f32 %v1122, %v1250
      %v1283 = vmax.f32 %v1123, %v1251
      %v1284 = vmax.f32 %v1124, %v1252
      %v1285 = vmax.f32 %v1125, %v1253
      %v1286 = vmax.f32 %v1126, %v1254
      %v1287 = vmax.f32 %v1127, %v1255
      %v1288 = vmax.f32 %v1128, %v1256
      %v1289 = vmax.f32 %v1129, %v1257
      %v1290 = vmax.f32 %v1130, %v1258
      %v1291 = vmax.f32 %v1131, %v1259
      %v1292 = vmax.f32 %v1132, %v1260
      %v1293 = vmax.f32 %v1133, %v1261
      %v1294 = vmax.f32 %v1134, %v1262
      %v1295 = vmax.f32 %v1135, %v1263
      %v1296 = vmax.f32 %v1136, %v1264
      %v1297 = vmax.f32 %v1137, %v1265
      %v1298 = vmax.f32 %v1138, %v1266
      %v1299 = vmax.f32 %v1139, %v1267
      %v1300 = vmax.f32 %v1140, %v1268
      %v1301 = vmax.f32 %v1141, %v1269
      %v1302 = vmax.f32 %v1142, %v1270
      %v1303 = vmax.f32 %v1143, %v1271
      %v1304 = vmax.f32 %v1144, %v1272
      %v1305 = vmax.f32 %v1145, %v1273
      %v1306 = vmax.f32 %v1146, %v1274
      %v1307 = vmax.f32 %v1147, %v1275
      %v1308 = vmax.f32 %v1148, %v1276
      %v1309 = vld [vmem:[#allocation2 + $0x2f] sm:$0xff]
      %v1310 = vld [vmem:[#allocation2 + $0x37] sm:$0xff]
      %v1311 = vld [vmem:[#allocation2 + $0x3f] sm:$0xff]
      %v1312 = vld [vmem:[#allocation2 + $0x47] sm:$0xff]
      %v1313 = vld [vmem:[#allocation2 + $0x4f] sm:$0xff]
      %v1314 = vld [vmem:[#allocation2 + $0x57] sm:$0xff]
      %v1315 = vld [vmem:[#allocation2 + $0x5f] sm:$0xff]
      %v1316 = vld [vmem:[#allocation2 + $0x67] sm:$0xff]
      %v1317 = vld [vmem:[#allocation2 + $0x6f] sm:$0xff]
      %v1318 = vld [vmem:[#allocation2 + $0x77] sm:$0xff]
      %v1319 = vld [vmem:[#allocation2 + $0x7f] sm:$0xff]
      %v1320 = vld [vmem:[#allocation2 + $0x87] sm:$0xff]
      %v1321 = vld [vmem:[#allocation2 + $0x8f] sm:$0xff]
      %v1322 = vld [vmem:[#allocation2 + $0x97] sm:$0xff]
      %v1323 = vld [vmem:[#allocation2 + $0x9f] sm:$0xff]
      %v1324 = vld [vmem:[#allocation2 + $0xa7] sm:$0xff]
      %v1325 = vld [vmem:[#allocation2 + $0xaf] sm:$0xff]
      %v1326 = vld [vmem:[#allocation2 + $0xb7] sm:$0xff]
      %v1327 = vld [vmem:[#allocation2 + $0xbf] sm:$0xff]
      %v1328 = vld [vmem:[#allocation2 + $0xc7] sm:$0xff]
      %v1329 = vld [vmem:[#allocation2 + $0xcf] sm:$0xff]
      %v1330 = vld [vmem:[#allocation2 + $0xd7] sm:$0xff]
      %v1331 = vld [vmem:[#allocation2 + $0xdf] sm:$0xff]
      %v1332 = vld [vmem:[#allocation2 + $0xe7] sm:$0xff]
      %v1333 = vld [vmem:[#allocation2 + $0xef] sm:$0xff]
      %v1334 = vld [vmem:[#allocation2 + $0xf7] sm:$0xff]
      %v1335 = vld [vmem:[#allocation2 + $0xff] sm:$0xff]
      %v1336 = vld [vmem:[#allocation2 + $0x107] sm:$0xff]
      %v1337 = vld [vmem:[#allocation2 + $0x10f] sm:$0xff]
      %v1338 = vld [vmem:[#allocation2 + $0x117] sm:$0xff]
      %v1339 = vld [vmem:[#allocation2 + $0x11f] sm:$0xff]
      %v1340 = vld [vmem:[#allocation2 + $0x127] sm:$0xff]
      %vm1341 = vcmp.ge.s32.totalorder %v624, 1
      %vm1342 = vcmp.ge.s32.totalorder %v625, 1
      %vm1343 = vcmp.ge.s32.totalorder %v626, 1
      %vm1344 = vcmp.ge.s32.totalorder %v627, 1
      %vm1345 = vcmp.ge.s32.totalorder %v628, 1
      %vm1346 = vcmp.ge.s32.totalorder %v629, 1
      %vm1347 = vcmp.ge.s32.totalorder %v630, 1
      %vm1348 = vcmp.ge.s32.totalorder %v631, 1
      %vm1349 = vcmp.ge.s32.totalorder %v632, 1
      %vm1350 = vcmp.ge.s32.totalorder %v633, 1
      %vm1351 = vcmp.ge.s32.totalorder %v634, 1
      %vm1352 = vcmp.ge.s32.totalorder %v635, 1
      %vm1353 = vcmp.ge.s32.totalorder %v636, 1
      %vm1354 = vcmp.ge.s32.totalorder %v637, 1
      %vm1355 = vcmp.ge.s32.totalorder %v638, 1
      %vm1356 = vcmp.ge.s32.totalorder %v639, 1
      %vm1357 = vcmp.ge.s32.totalorder %v640, 1
      %vm1358 = vcmp.ge.s32.totalorder %v641, 1
      %vm1359 = vcmp.ge.s32.totalorder %v642, 1
      %vm1360 = vcmp.ge.s32.totalorder %v643, 1
      %vm1361 = vcmp.ge.s32.totalorder %v644, 1
      %vm1362 = vcmp.ge.s32.totalorder %v645, 1
      %vm1363 = vcmp.ge.s32.totalorder %v646, 1
      %vm1364 = vcmp.ge.s32.totalorder %v647, 1
      %vm1365 = vcmp.ge.s32.totalorder %v648, 1
      %vm1366 = vcmp.ge.s32.totalorder %v649, 1
      %vm1367 = vcmp.ge.s32.totalorder %v650, 1
      %vm1368 = vcmp.ge.s32.totalorder %v651, 1
      %vm1369 = vcmp.ge.s32.totalorder %v652, 1
      %vm1370 = vcmp.ge.s32.totalorder %v653, 1
      %vm1371 = vcmp.ge.s32.totalorder %v654, 1
      %vm1372 = vcmp.ge.s32.totalorder %v655, 1
      %v1373 = vsel %vm1341, %v1309, -inf
      %v1374 = vsel %vm1342, %v1310, -inf
      %v1375 = vsel %vm1343, %v1311, -inf
      %v1376 = vsel %vm1344, %v1312, -inf
      %v1377 = vsel %vm1345, %v1313, -inf
      %v1378 = vsel %vm1346, %v1314, -inf
      %v1379 = vsel %vm1347, %v1315, -inf
      %v1380 = vsel %vm1348, %v1316, -inf
      %v1381 = vsel %vm1349, %v1317, -inf
      %v1382 = vsel %vm1350, %v1318, -inf
      %v1383 = vsel %vm1351, %v1319, -inf
      %v1384 = vsel %vm1352, %v1320, -inf
      %v1385 = vsel %vm1353, %v1321, -inf
      %v1386 = vsel %vm1354, %v1322, -inf
      %v1387 = vsel %vm1355, %v1323, -inf
      %v1388 = vsel %vm1356, %v1324, -inf
      %v1389 = vsel %vm1357, %v1325, -inf
      %v1390 = vsel %vm1358, %v1326, -inf
      %v1391 = vsel %vm1359, %v1327, -inf
      %v1392 = vsel %vm1360, %v1328, -inf
      %v1393 = vsel %vm1361, %v1329, -inf
      %v1394 = vsel %vm1362, %v1330, -inf
      %v1395 = vsel %vm1363, %v1331, -inf
      %v1396 = vsel %vm1364, %v1332, -inf
      %v1397 = vsel %vm1365, %v1333, -inf
      %v1398 = vsel %vm1366, %v1334, -inf
      %v1399 = vsel %vm1367, %v1335, -inf
      %v1400 = vsel %vm1368, %v1336, -inf
      %v1401 = vsel %vm1369, %v1337, -inf
      %v1402 = vsel %vm1370, %v1338, -inf
      %v1403 = vsel %vm1371, %v1339, -inf
      %v1404 = vsel %vm1372, %v1340, -inf
      %v1405 = vmax.f32 %v1277, %v1373
      %v1406 = vmax.f32 %v1278, %v1374
      %v1407 = vmax.f32 %v1279, %v1375
      %v1408 = vmax.f32 %v1280, %v1376
      %v1409 = vmax.f32 %v1281, %v1377
      %v1410 = vmax.f32 %v1282, %v1378
      %v1411 = vmax.f32 %v1283, %v1379
      %v1412 = vmax.f32 %v1284, %v1380
      %v1413 = vmax.f32 %v1285, %v1381
      %v1414 = vmax.f32 %v1286, %v1382
      %v1415 = vmax.f32 %v1287, %v1383
      %v1416 = vmax.f32 %v1288, %v1384
      %v1417 = vmax.f32 %v1289, %v1385
      %v1418 = vmax.f32 %v1290, %v1386
      %v1419 = vmax.f32 %v1291, %v1387
      %v1420 = vmax.f32 %v1292, %v1388
      %v1421 = vmax.f32 %v1293, %v1389
      %v1422 = vmax.f32 %v1294, %v1390
      %v1423 = vmax.f32 %v1295, %v1391
      %v1424 = vmax.f32 %v1296, %v1392
      %v1425 = vmax.f32 %v1297, %v1393
      %v1426 = vmax.f32 %v1298, %v1394
      %v1427 = vmax.f32 %v1299, %v1395
      %v1428 = vmax.f32 %v1300, %v1396
      %v1429 = vmax.f32 %v1301, %v1397
      %v1430 = vmax.f32 %v1302, %v1398
      %v1431 = vmax.f32 %v1303, %v1399
      %v1432 = vmax.f32 %v1304, %v1400
      %v1433 = vmax.f32 %v1305, %v1401
      %v1434 = vmax.f32 %v1306, %v1402
      %v1435 = vmax.f32 %v1307, %v1403
      %v1436 = vmax.f32 %v1308, %v1404
      %1437 = vst.msk [vmem:[#allocation2 + $0x30] sm:$0xff] %vm226, %v1405
      %1438 = vst.msk [vmem:[#allocation2 + $0x38] sm:$0xff] %vm226, %v1406
      %1439 = vst.msk [vmem:[#allocation2 + $0x40] sm:$0xff] %vm226, %v1407
      %1440 = vst.msk [vmem:[#allocation2 + $0x48] sm:$0xff] %vm226, %v1408
      %1441 = vst.msk [vmem:[#allocation2 + $0x50] sm:$0xff] %vm226, %v1409
      %1442 = vst.msk [vmem:[#allocation2 + $0x58] sm:$0xff] %vm226, %v1410
      %1443 = vst.msk [vmem:[#allocation2 + $0x60] sm:$0xff] %vm226, %v1411
      %1444 = vst.msk [vmem:[#allocation2 + $0x68] sm:$0xff] %vm226, %v1412
      %1445 = vst.msk [vmem:[#allocation2 + $0x70] sm:$0xff] %vm226, %v1413
      %1446 = vst.msk [vmem:[#allocation2 + $0x78] sm:$0xff] %vm226, %v1414
      %1447 = vst.msk [vmem:[#allocation2 + $0x80] sm:$0xff] %vm226, %v1415
      %1448 = vst.msk [vmem:[#allocation2 + $0x88] sm:$0xff] %vm226, %v1416
      %1449 = vst.msk [vmem:[#allocation2 + $0x90] sm:$0xff] %vm226, %v1417
      %1450 = vst.msk [vmem:[#allocation2 + $0x98] sm:$0xff] %vm226, %v1418
      %1451 = vst.msk [vmem:[#allocation2 + $0xa0] sm:$0xff] %vm226, %v1419
      %1452 = vst.msk [vmem:[#allocation2 + $0xa8] sm:$0xff] %vm226, %v1420
      %1453 = vst.msk [vmem:[#allocation2 + $0xb0] sm:$0xff] %vm226, %v1421
      %1454 = vst.msk [vmem:[#allocation2 + $0xb8] sm:$0xff] %vm226, %v1422
      %1455 = vst.msk [vmem:[#allocation2 + $0xc0] sm:$0xff] %vm226, %v1423
      %1456 = vst.msk [vmem:[#allocation2 + $0xc8] sm:$0xff] %vm226, %v1424
      %1457 = vst.msk [vmem:[#allocation2 + $0xd0] sm:$0xff] %vm226, %v1425
      %1458 = vst.msk [vmem:[#allocation2 + $0xd8] sm:$0xff] %vm226, %v1426
      %1459 = vst.msk [vmem:[#allocation2 + $0xe0] sm:$0xff] %vm226, %v1427
      %1460 = vst.msk [vmem:[#allocation2 + $0xe8] sm:$0xff] %vm226, %v1428
      %1461 = vst.msk [vmem:[#allocation2 + $0xf0] sm:$0xff] %vm226, %v1429
      %1462 = vst.msk [vmem:[#allocation2 + $0xf8] sm:$0xff] %vm226, %v1430
      %1463 = vst.msk [vmem:[#allocation2 + $0x100] sm:$0xff] %vm226, %v1431
      %1464 = vst.msk [vmem:[#allocation2 + $0x108] sm:$0xff] %vm226, %v1432
      %1465 = vst.msk [vmem:[#allocation2 + $0x110] sm:$0xff] %vm226, %v1433
      %1466 = vst.msk [vmem:[#allocation2 + $0x118] sm:$0xff] %vm226, %v1434
      %1467 = vst.msk [vmem:[#allocation2 + $0x120] sm:$0xff] %vm226, %v1435
      %1468 = vst.msk [vmem:[#allocation2 + $0x128] sm:$0xff] %vm226, %v1436
      %v1469 = vld [vmem:[#allocation2 + $0x40] sm:$0xff]
      %v1470 = vld [vmem:[#allocation2 + $0x48] sm:$0xff]
      %v1471 = vld [vmem:[#allocation2 + $0x50] sm:$0xff]
      %v1472 = vld [vmem:[#allocation2 + $0x58] sm:$0xff]
      %v1473 = vld [vmem:[#allocation2 + $0x60] sm:$0xff]
      %v1474 = vld [vmem:[#allocation2 + $0x68] sm:$0xff]
      %v1475 = vld [vmem:[#allocation2 + $0x70] sm:$0xff]
      %v1476 = vld [vmem:[#allocation2 + $0x78] sm:$0xff]
      %v1477 = vld [vmem:[#allocation2 + $0x80] sm:$0xff]
      %v1478 = vld [vmem:[#allocation2 + $0x88] sm:$0xff]
      %v1479 = vld [vmem:[#allocation2 + $0x90] sm:$0xff]
      %v1480 = vld [vmem:[#allocation2 + $0x98] sm:$0xff]
      %v1481 = vld [vmem:[#allocation2 + $0xa0] sm:$0xff]
      %v1482 = vld [vmem:[#allocation2 + $0xa8] sm:$0xff]
      %v1483 = vld [vmem:[#allocation2 + $0xb0] sm:$0xff]
      %v1484 = vld [vmem:[#allocation2 + $0xb8] sm:$0xff]
      %v1485 = vld [vmem:[#allocation2 + $0xc0] sm:$0xff]
      %v1486 = vld [vmem:[#allocation2 + $0xc8] sm:$0xff]
      %v1487 = vld [vmem:[#allocation2 + $0xd0] sm:$0xff]
      %v1488 = vld [vmem:[#allocation2 + $0xd8] sm:$0xff]
      %v1489 = vld [vmem:[#allocation2 + $0xe0] sm:$0xff]
      %v1490 = vld [vmem:[#allocation2 + $0xe8] sm:$0xff]
      %v1491 = vld [vmem:[#allocation2 + $0xf0] sm:$0xff]
      %v1492 = vld [vmem:[#allocation2 + $0xf8] sm:$0xff]
      %v1493 = vld [vmem:[#allocation2 + $0x100] sm:$0xff]
      %v1494 = vld [vmem:[#allocation2 + $0x108] sm:$0xff]
      %v1495 = vld [vmem:[#allocation2 + $0x110] sm:$0xff]
      %v1496 = vld [vmem:[#allocation2 + $0x118] sm:$0xff]
      %v1497 = vld [vmem:[#allocation2 + $0x120] sm:$0xff]
      %v1498 = vld [vmem:[#allocation2 + $0x128] sm:$0xff]
      %v1499 = vld [vmem:[#allocation2 + $0x130] sm:$0xff]
      %v1500 = vld [vmem:[#allocation2 + $0x138] sm:$0xff]
      %v1501 = vmax.f32 %v1405, %v1469
      %v1502 = vmax.f32 %v1406, %v1470
      %v1503 = vmax.f32 %v1407, %v1471
      %v1504 = vmax.f32 %v1408, %v1472
      %v1505 = vmax.f32 %v1409, %v1473
      %v1506 = vmax.f32 %v1410, %v1474
      %v1507 = vmax.f32 %v1411, %v1475
      %v1508 = vmax.f32 %v1412, %v1476
      %v1509 = vmax.f32 %v1413, %v1477
      %v1510 = vmax.f32 %v1414, %v1478
      %v1511 = vmax.f32 %v1415, %v1479
      %v1512 = vmax.f32 %v1416, %v1480
      %v1513 = vmax.f32 %v1417, %v1481
      %v1514 = vmax.f32 %v1418, %v1482
      %v1515 = vmax.f32 %v1419, %v1483
      %v1516 = vmax.f32 %v1420, %v1484
      %v1517 = vmax.f32 %v1421, %v1485
      %v1518 = vmax.f32 %v1422, %v1486
      %v1519 = vmax.f32 %v1423, %v1487
      %v1520 = vmax.f32 %v1424, %v1488
      %v1521 = vmax.f32 %v1425, %v1489
      %v1522 = vmax.f32 %v1426, %v1490
      %v1523 = vmax.f32 %v1427, %v1491
      %v1524 = vmax.f32 %v1428, %v1492
      %v1525 = vmax.f32 %v1429, %v1493
      %v1526 = vmax.f32 %v1430, %v1494
      %v1527 = vmax.f32 %v1431, %v1495
      %v1528 = vmax.f32 %v1432, %v1496
      %v1529 = vmax.f32 %v1433, %v1497
      %v1530 = vmax.f32 %v1434, %v1498
      %v1531 = vmax.f32 %v1435, %v1499
      %v1532 = vmax.f32 %v1436, %v1500
      %v1533 = vld [vmem:[#allocation2 + $0x20] sm:$0xff]
      %v1534 = vld [vmem:[#allocation2 + $0x28] sm:$0xff]
      %v1535 = vld [vmem:[#allocation2 + $0x30] sm:$0xff]
      %v1536 = vld [vmem:[#allocation2 + $0x38] sm:$0xff]
      %v1537 = vmax.f32 %v1501, %v1533
      %v1538 = vmax.f32 %v1502, %v1534
      %v1539 = vmax.f32 %v1503, %v1535
      %v1540 = vmax.f32 %v1504, %v1536
      %v1541 = vmax.f32 %v1505, %v1469
      %v1542 = vmax.f32 %v1506, %v1470
      %v1543 = vmax.f32 %v1507, %v1471
      %v1544 = vmax.f32 %v1508, %v1472
      %v1545 = vmax.f32 %v1509, %v1473
      %v1546 = vmax.f32 %v1510, %v1474
      %v1547 = vmax.f32 %v1511, %v1475
      %v1548 = vmax.f32 %v1512, %v1476
      %v1549 = vmax.f32 %v1513, %v1477
      %v1550 = vmax.f32 %v1514, %v1478
      %v1551 = vmax.f32 %v1515, %v1479
      %v1552 = vmax.f32 %v1516, %v1480
      %v1553 = vmax.f32 %v1517, %v1481
      %v1554 = vmax.f32 %v1518, %v1482
      %v1555 = vmax.f32 %v1519, %v1483
      %v1556 = vmax.f32 %v1520, %v1484
      %v1557 = vmax.f32 %v1521, %v1485
      %v1558 = vmax.f32 %v1522, %v1486
      %v1559 = vmax.f32 %v1523, %v1487
      %v1560 = vmax.f32 %v1524, %v1488
      %v1561 = vmax.f32 %v1525, %v1489
      %v1562 = vmax.f32 %v1526, %v1490
      %v1563 = vmax.f32 %v1527, %v1491
      %v1564 = vmax.f32 %v1528, %v1492
      %v1565 = vmax.f32 %v1529, %v1493
      %v1566 = vmax.f32 %v1530, %v1494
      %v1567 = vmax.f32 %v1531, %v1495
      %v1568 = vmax.f32 %v1532, %v1496
      %1569 = vst.msk [vmem:[#allocation2 + $0x30] sm:$0xff] %vm226, %v1537
      %1570 = vst.msk [vmem:[#allocation2 + $0x38] sm:$0xff] %vm226, %v1538
      %1571 = vst.msk [vmem:[#allocation2 + $0x40] sm:$0xff] %vm226, %v1539
      %1572 = vst.msk [vmem:[#allocation2 + $0x48] sm:$0xff] %vm226, %v1540
      %1573 = vst.msk [vmem:[#allocation2 + $0x50] sm:$0xff] %vm226, %v1541
      %1574 = vst.msk [vmem:[#allocation2 + $0x58] sm:$0xff] %vm226, %v1542
      %1575 = vst.msk [vmem:[#allocation2 + $0x60] sm:$0xff] %vm226, %v1543
      %1576 = vst.msk [vmem:[#allocation2 + $0x68] sm:$0xff] %vm226, %v1544
      %1577 = vst.msk [vmem:[#allocation2 + $0x70] sm:$0xff] %vm226, %v1545
      %1578 = vst.msk [vmem:[#allocation2 + $0x78] sm:$0xff] %vm226, %v1546
      %1579 = vst.msk [vmem:[#allocation2 + $0x80] sm:$0xff] %vm226, %v1547
      %1580 = vst.msk [vmem:[#allocation2 + $0x88] sm:$0xff] %vm226, %v1548
      %1581 = vst.msk [vmem:[#allocation2 + $0x90] sm:$0xff] %vm226, %v1549
      %1582 = vst.msk [vmem:[#allocation2 + $0x98] sm:$0xff] %vm226, %v1550
      %1583 = vst.msk [vmem:[#allocation2 + $0xa0] sm:$0xff] %vm226, %v1551
      %1584 = vst.msk [vmem:[#allocation2 + $0xa8] sm:$0xff] %vm226, %v1552
      %1585 = vst.msk [vmem:[#allocation2 + $0xb0] sm:$0xff] %vm226, %v1553
      %1586 = vst.msk [vmem:[#allocation2 + $0xb8] sm:$0xff] %vm226, %v1554
      %1587 = vst.msk [vmem:[#allocation2 + $0xc0] sm:$0xff] %vm226, %v1555
      %1588 = vst.msk [vmem:[#allocation2 + $0xc8] sm:$0xff] %vm226, %v1556
      %1589 = vst.msk [vmem:[#allocation2 + $0xd0] sm:$0xff] %vm226, %v1557
      %1590 = vst.msk [vmem:[#allocation2 + $0xd8] sm:$0xff] %vm226, %v1558
      %1591 = vst.msk [vmem:[#allocation2 + $0xe0] sm:$0xff] %vm226, %v1559
      %1592 = vst.msk [vmem:[#allocation2 + $0xe8] sm:$0xff] %vm226, %v1560
      %1593 = vst.msk [vmem:[#allocation2 + $0xf0] sm:$0xff] %vm226, %v1561
      %1594 = vst.msk [vmem:[#allocation2 + $0xf8] sm:$0xff] %vm226, %v1562
      %1595 = vst.msk [vmem:[#allocation2 + $0x100] sm:$0xff] %vm226, %v1563
      %1596 = vst.msk [vmem:[#allocation2 + $0x108] sm:$0xff] %vm226, %v1564
      %1597 = vst.msk [vmem:[#allocation2 + $0x110] sm:$0xff] %vm226, %v1565
      %1598 = vst.msk [vmem:[#allocation2 + $0x118] sm:$0xff] %vm226, %v1566
      %1599 = vst.msk [vmem:[#allocation2 + $0x120] sm:$0xff] %vm226, %v1567
      %1600 = vst.msk [vmem:[#allocation2 + $0x128] sm:$0xff] %vm226, %v1568
      %v1601 = vld [vmem:[#allocation2 + $0x31] sm:$0xff]
      %v1602 = vld [vmem:[#allocation2 + $0x39] sm:$0xff]
      %v1603 = vld [vmem:[#allocation2 + $0x41] sm:$0xff]
      %v1604 = vld [vmem:[#allocation2 + $0x49] sm:$0xff]
      %v1605 = vld [vmem:[#allocation2 + $0x51] sm:$0xff]
      %v1606 = vld [vmem:[#allocation2 + $0x59] sm:$0xff]
      %v1607 = vld [vmem:[#allocation2 + $0x61] sm:$0xff]
      %v1608 = vld [vmem:[#allocation2 + $0x69] sm:$0xff]
      %v1609 = vld [vmem:[#allocation2 + $0x71] sm:$0xff]
      %v1610 = vld [vmem:[#allocation2 + $0x79] sm:$0xff]
      %v1611 = vld [vmem:[#allocation2 + $0x81] sm:$0xff]
      %v1612 = vld [vmem:[#allocation2 + $0x89] sm:$0xff]
      %v1613 = vld [vmem:[#allocation2 + $0x91] sm:$0xff]
      %v1614 = vld [vmem:[#allocation2 + $0x99] sm:$0xff]
      %v1615 = vld [vmem:[#allocation2 + $0xa1] sm:$0xff]
      %v1616 = vld [vmem:[#allocation2 + $0xa9] sm:$0xff]
      %v1617 = vld [vmem:[#allocation2 + $0xb1] sm:$0xff]
      %v1618 = vld [vmem:[#allocation2 + $0xb9] sm:$0xff]
      %v1619 = vld [vmem:[#allocation2 + $0xc1] sm:$0xff]
      %v1620 = vld [vmem:[#allocation2 + $0xc9] sm:$0xff]
      %v1621 = vld [vmem:[#allocation2 + $0xd1] sm:$0xff]
      %v1622 = vld [vmem:[#allocation2 + $0xd9] sm:$0xff]
      %v1623 = vld [vmem:[#allocation2 + $0xe1] sm:$0xff]
      %v1624 = vld [vmem:[#allocation2 + $0xe9] sm:$0xff]
      %v1625 = vld [vmem:[#allocation2 + $0xf1] sm:$0xff]
      %v1626 = vld [vmem:[#allocation2 + $0xf9] sm:$0xff]
      %v1627 = vld [vmem:[#allocation2 + $0x101] sm:$0xff]
      %v1628 = vld [vmem:[#allocation2 + $0x109] sm:$0xff]
      %v1629 = vld [vmem:[#allocation2 + $0x111] sm:$0xff]
      %v1630 = vld [vmem:[#allocation2 + $0x119] sm:$0xff]
      %v1631 = vld [vmem:[#allocation2 + $0x121] sm:$0xff]
      %v1632 = vld [vmem:[#allocation2 + $0x129] sm:$0xff]
      %v1633 = vsel %vm1213, %v1601, -inf
      %v1634 = vsel %vm1214, %v1602, -inf
      %v1635 = vsel %vm1215, %v1603, -inf
      %v1636 = vsel %vm1216, %v1604, -inf
      %v1637 = vsel %vm1217, %v1605, -inf
      %v1638 = vsel %vm1218, %v1606, -inf
      %v1639 = vsel %vm1219, %v1607, -inf
      %v1640 = vsel %vm1220, %v1608, -inf
      %v1641 = vsel %vm1221, %v1609, -inf
      %v1642 = vsel %vm1222, %v1610, -inf
      %v1643 = vsel %vm1223, %v1611, -inf
      %v1644 = vsel %vm1224, %v1612, -inf
      %v1645 = vsel %vm1225, %v1613, -inf
      %v1646 = vsel %vm1226, %v1614, -inf
      %v1647 = vsel %vm1227, %v1615, -inf
      %v1648 = vsel %vm1228, %v1616, -inf
      %v1649 = vsel %vm1229, %v1617, -inf
      %v1650 = vsel %vm1230, %v1618, -inf
      %v1651 = vsel %vm1231, %v1619, -inf
      %v1652 = vsel %vm1232, %v1620, -inf
      %v1653 = vsel %vm1233, %v1621, -inf
      %v1654 = vsel %vm1234, %v1622, -inf
      %v1655 = vsel %vm1235, %v1623, -inf
      %v1656 = vsel %vm1236, %v1624, -inf
      %v1657 = vsel %vm1237, %v1625, -inf
      %v1658 = vsel %vm1238, %v1626, -inf
      %v1659 = vsel %vm1239, %v1627, -inf
      %v1660 = vsel %vm1240, %v1628, -inf
      %v1661 = vsel %vm1241, %v1629, -inf
      %v1662 = vsel %vm1242, %v1630, -inf
      %v1663 = vsel %vm1243, %v1631, -inf
      %v1664 = vsel %vm1244, %v1632, -inf
      %v1665 = vmax.f32 %v1537, %v1633
      %v1666 = vmax.f32 %v1538, %v1634
      %v1667 = vmax.f32 %v1539, %v1635
      %v1668 = vmax.f32 %v1540, %v1636
      %v1669 = vmax.f32 %v1541, %v1637
      %v1670 = vmax.f32 %v1542, %v1638
      %v1671 = vmax.f32 %v1543, %v1639
      %v1672 = vmax.f32 %v1544, %v1640
      %v1673 = vmax.f32 %v1545, %v1641
      %v1674 = vmax.f32 %v1546, %v1642
      %v1675 = vmax.f32 %v1547, %v1643
      %v1676 = vmax.f32 %v1548, %v1644
      %v1677 = vmax.f32 %v1549, %v1645
      %v1678 = vmax.f32 %v1550, %v1646
      %v1679 = vmax.f32 %v1551, %v1647
      %v1680 = vmax.f32 %v1552, %v1648
      %v1681 = vmax.f32 %v1553, %v1649
      %v1682 = vmax.f32 %v1554, %v1650
      %v1683 = vmax.f32 %v1555, %v1651
      %v1684 = vmax.f32 %v1556, %v1652
      %v1685 = vmax.f32 %v1557, %v1653
      %v1686 = vmax.f32 %v1558, %v1654
      %v1687 = vmax.f32 %v1559, %v1655
      %v1688 = vmax.f32 %v1560, %v1656
      %v1689 = vmax.f32 %v1561, %v1657
      %v1690 = vmax.f32 %v1562, %v1658
      %v1691 = vmax.f32 %v1563, %v1659
      %v1692 = vmax.f32 %v1564, %v1660
      %v1693 = vmax.f32 %v1565, %v1661
      %v1694 = vmax.f32 %v1566, %v1662
      %v1695 = vmax.f32 %v1567, %v1663
      %v1696 = vmax.f32 %v1568, %v1664
      %v1697 = vld [vmem:[#allocation2 + $0x2f] sm:$0xff]
      %v1698 = vld [vmem:[#allocation2 + $0x37] sm:$0xff]
      %v1699 = vld [vmem:[#allocation2 + $0x3f] sm:$0xff]
      %v1700 = vld [vmem:[#allocation2 + $0x47] sm:$0xff]
      %v1701 = vld [vmem:[#allocation2 + $0x4f] sm:$0xff]
      %v1702 = vld [vmem:[#allocation2 + $0x57] sm:$0xff]
      %v1703 = vld [vmem:[#allocation2 + $0x5f] sm:$0xff]
      %v1704 = vld [vmem:[#allocation2 + $0x67] sm:$0xff]
      %v1705 = vld [vmem:[#allocation2 + $0x6f] sm:$0xff]
      %v1706 = vld [vmem:[#allocation2 + $0x77] sm:$0xff]
      %v1707 = vld [vmem:[#allocation2 + $0x7f] sm:$0xff]
      %v1708 = vld [vmem:[#allocation2 + $0x87] sm:$0xff]
      %v1709 = vld [vmem:[#allocation2 + $0x8f] sm:$0xff]
      %v1710 = vld [vmem:[#allocation2 + $0x97] sm:$0xff]
      %v1711 = vld [vmem:[#allocation2 + $0x9f] sm:$0xff]
      %v1712 = vld [vmem:[#allocation2 + $0xa7] sm:$0xff]
      %v1713 = vld [vmem:[#allocation2 + $0xaf] sm:$0xff]
      %v1714 = vld [vmem:[#allocation2 + $0xb7] sm:$0xff]
      %v1715 = vld [vmem:[#allocation2 + $0xbf] sm:$0xff]
      %v1716 = vld [vmem:[#allocation2 + $0xc7] sm:$0xff]
      %v1717 = vld [vmem:[#allocation2 + $0xcf] sm:$0xff]
      %v1718 = vld [vmem:[#allocation2 + $0xd7] sm:$0xff]
      %v1719 = vld [vmem:[#allocation2 + $0xdf] sm:$0xff]
      %v1720 = vld [vmem:[#allocation2 + $0xe7] sm:$0xff]
      %v1721 = vld [vmem:[#allocation2 + $0xef] sm:$0xff]
      %v1722 = vld [vmem:[#allocation2 + $0xf7] sm:$0xff]
      %v1723 = vld [vmem:[#allocation2 + $0xff] sm:$0xff]
      %v1724 = vld [vmem:[#allocation2 + $0x107] sm:$0xff]
      %v1725 = vld [vmem:[#allocation2 + $0x10f] sm:$0xff]
      %v1726 = vld [vmem:[#allocation2 + $0x117] sm:$0xff]
      %v1727 = vld [vmem:[#allocation2 + $0x11f] sm:$0xff]
      %v1728 = vld [vmem:[#allocation2 + $0x127] sm:$0xff]
      %v1729 = vsel %vm1341, %v1697, -inf
      %v1730 = vsel %vm1342, %v1698, -inf
      %v1731 = vsel %vm1343, %v1699, -inf
      %v1732 = vsel %vm1344, %v1700, -inf
      %v1733 = vsel %vm1345, %v1701, -inf
      %v1734 = vsel %vm1346, %v1702, -inf
      %v1735 = vsel %vm1347, %v1703, -inf
      %v1736 = vsel %vm1348, %v1704, -inf
      %v1737 = vsel %vm1349, %v1705, -inf
      %v1738 = vsel %vm1350, %v1706, -inf
      %v1739 = vsel %vm1351, %v1707, -inf
      %v1740 = vsel %vm1352, %v1708, -inf
      %v1741 = vsel %vm1353, %v1709, -inf
      %v1742 = vsel %vm1354, %v1710, -inf
      %v1743 = vsel %vm1355, %v1711, -inf
      %v1744 = vsel %vm1356, %v1712, -inf
      %v1745 = vsel %vm1357, %v1713, -inf
      %v1746 = vsel %vm1358, %v1714, -inf
      %v1747 = vsel %vm1359, %v1715, -inf
      %v1748 = vsel %vm1360, %v1716, -inf
      %v1749 = vsel %vm1361, %v1717, -inf
      %v1750 = vsel %vm1362, %v1718, -inf
      %v1751 = vsel %vm1363, %v1719, -inf
      %v1752 = vsel %vm1364, %v1720, -inf
      %v1753 = vsel %vm1365, %v1721, -inf
      %v1754 = vsel %vm1366, %v1722, -inf
      %v1755 = vsel %vm1367, %v1723, -inf
      %v1756 = vsel %vm1368, %v1724, -inf
      %v1757 = vsel %vm1369, %v1725, -inf
      %v1758 = vsel %vm1370, %v1726, -inf
      %v1759 = vsel %vm1371, %v1727, -inf
      %v1760 = vsel %vm1372, %v1728, -inf
      %v1761 = vmax.f32 %v1665, %v1729
      %v1762 = vmax.f32 %v1666, %v1730
      %v1763 = vmax.f32 %v1667, %v1731
      %v1764 = vmax.f32 %v1668, %v1732
      %v1765 = vmax.f32 %v1669, %v1733
      %v1766 = vmax.f32 %v1670, %v1734
      %v1767 = vmax.f32 %v1671, %v1735
      %v1768 = vmax.f32 %v1672, %v1736
      %v1769 = vmax.f32 %v1673, %v1737
      %v1770 = vmax.f32 %v1674, %v1738
      %v1771 = vmax.f32 %v1675, %v1739
      %v1772 = vmax.f32 %v1676, %v1740
      %v1773 = vmax.f32 %v1677, %v1741
      %v1774 = vmax.f32 %v1678, %v1742
      %v1775 = vmax.f32 %v1679, %v1743
      %v1776 = vmax.f32 %v1680, %v1744
      %v1777 = vmax.f32 %v1681, %v1745
      %v1778 = vmax.f32 %v1682, %v1746
      %v1779 = vmax.f32 %v1683, %v1747
      %v1780 = vmax.f32 %v1684, %v1748
      %v1781 = vmax.f32 %v1685, %v1749
      %v1782 = vmax.f32 %v1686, %v1750
      %v1783 = vmax.f32 %v1687, %v1751
      %v1784 = vmax.f32 %v1688, %v1752
      %v1785 = vmax.f32 %v1689, %v1753
      %v1786 = vmax.f32 %v1690, %v1754
      %v1787 = vmax.f32 %v1691, %v1755
      %v1788 = vmax.f32 %v1692, %v1756
      %v1789 = vmax.f32 %v1693, %v1757
      %v1790 = vmax.f32 %v1694, %v1758
      %v1791 = vmax.f32 %v1695, %v1759
      %v1792 = vmax.f32 %v1696, %v1760
      %v1793 = vld [vmem:[#allocation2 + $0x32] sm:$0xff]
      %v1794 = vld [vmem:[#allocation2 + $0x3a] sm:$0xff]
      %v1795 = vld [vmem:[#allocation2 + $0x42] sm:$0xff]
      %v1796 = vld [vmem:[#allocation2 + $0x4a] sm:$0xff]
      %v1797 = vld [vmem:[#allocation2 + $0x52] sm:$0xff]
      %v1798 = vld [vmem:[#allocation2 + $0x5a] sm:$0xff]
      %v1799 = vld [vmem:[#allocation2 + $0x62] sm:$0xff]
      %v1800 = vld [vmem:[#allocation2 + $0x6a] sm:$0xff]
      %v1801 = vld [vmem:[#allocation2 + $0x72] sm:$0xff]
      %v1802 = vld [vmem:[#allocation2 + $0x7a] sm:$0xff]
      %v1803 = vld [vmem:[#allocation2 + $0x82] sm:$0xff]
      %v1804 = vld [vmem:[#allocation2 + $0x8a] sm:$0xff]
      %v1805 = vld [vmem:[#allocation2 + $0x92] sm:$0xff]
      %v1806 = vld [vmem:[#allocation2 + $0x9a] sm:$0xff]
      %v1807 = vld [vmem:[#allocation2 + $0xa2] sm:$0xff]
      %v1808 = vld [vmem:[#allocation2 + $0xaa] sm:$0xff]
      %v1809 = vld [vmem:[#allocation2 + $0xb2] sm:$0xff]
      %v1810 = vld [vmem:[#allocation2 + $0xba] sm:$0xff]
      %v1811 = vld [vmem:[#allocation2 + $0xc2] sm:$0xff]
      %v1812 = vld [vmem:[#allocation2 + $0xca] sm:$0xff]
      %v1813 = vld [vmem:[#allocation2 + $0xd2] sm:$0xff]
      %v1814 = vld [vmem:[#allocation2 + $0xda] sm:$0xff]
      %v1815 = vld [vmem:[#allocation2 + $0xe2] sm:$0xff]
      %v1816 = vld [vmem:[#allocation2 + $0xea] sm:$0xff]
      %v1817 = vld [vmem:[#allocation2 + $0xf2] sm:$0xff]
      %v1818 = vld [vmem:[#allocation2 + $0xfa] sm:$0xff]
      %v1819 = vld [vmem:[#allocation2 + $0x102] sm:$0xff]
      %v1820 = vld [vmem:[#allocation2 + $0x10a] sm:$0xff]
      %v1821 = vld [vmem:[#allocation2 + $0x112] sm:$0xff]
      %v1822 = vld [vmem:[#allocation2 + $0x11a] sm:$0xff]
      %v1823 = vld [vmem:[#allocation2 + $0x122] sm:$0xff]
      %v1824 = vld [vmem:[#allocation2 + $0x12a] sm:$0xff]
      %vm1825 = vcmp.lt.s32.totalorder %v624, 14
      %vm1826 = vcmp.lt.s32.totalorder %v625, 14
      %vm1827 = vcmp.lt.s32.totalorder %v626, 14
      %vm1828 = vcmp.lt.s32.totalorder %v627, 14
      %vm1829 = vcmp.lt.s32.totalorder %v628, 14
      %vm1830 = vcmp.lt.s32.totalorder %v629, 14
      %vm1831 = vcmp.lt.s32.totalorder %v630, 14
      %vm1832 = vcmp.lt.s32.totalorder %v631, 14
      %vm1833 = vcmp.lt.s32.totalorder %v632, 14
      %vm1834 = vcmp.lt.s32.totalorder %v633, 14
      %vm1835 = vcmp.lt.s32.totalorder %v634, 14
      %vm1836 = vcmp.lt.s32.totalorder %v635, 14
      %vm1837 = vcmp.lt.s32.totalorder %v636, 14
      %vm1838 = vcmp.lt.s32.totalorder %v637, 14
      %vm1839 = vcmp.lt.s32.totalorder %v638, 14
      %vm1840 = vcmp.lt.s32.totalorder %v639, 14
      %vm1841 = vcmp.lt.s32.totalorder %v640, 14
      %vm1842 = vcmp.lt.s32.totalorder %v641, 14
      %vm1843 = vcmp.lt.s32.totalorder %v642, 14
      %vm1844 = vcmp.lt.s32.totalorder %v643, 14
      %vm1845 = vcmp.lt.s32.totalorder %v644, 14
      %vm1846 = vcmp.lt.s32.totalorder %v645, 14
      %vm1847 = vcmp.lt.s32.totalorder %v646, 14
      %vm1848 = vcmp.lt.s32.totalorder %v647, 14
      %vm1849 = vcmp.lt.s32.totalorder %v648, 14
      %vm1850 = vcmp.lt.s32.totalorder %v649, 14
      %vm1851 = vcmp.lt.s32.totalorder %v650, 14
      %vm1852 = vcmp.lt.s32.totalorder %v651, 14
      %vm1853 = vcmp.lt.s32.totalorder %v652, 14
      %vm1854 = vcmp.lt.s32.totalorder %v653, 14
      %vm1855 = vcmp.lt.s32.totalorder %v654, 14
      %vm1856 = vcmp.lt.s32.totalorder %v655, 14
      %v1857 = vsel %vm1825, %v1793, -inf
      %v1858 = vsel %vm1826, %v1794, -inf
      %v1859 = vsel %vm1827, %v1795, -inf
      %v1860 = vsel %vm1828, %v1796, -inf
      %v1861 = vsel %vm1829, %v1797, -inf
      %v1862 = vsel %vm1830, %v1798, -inf
      %v1863 = vsel %vm1831, %v1799, -inf
      %v1864 = vsel %vm1832, %v1800, -inf
      %v1865 = vsel %vm1833, %v1801, -inf
      %v1866 = vsel %vm1834, %v1802, -inf
      %v1867 = vsel %vm1835, %v1803, -inf
      %v1868 = vsel %vm1836, %v1804, -inf
      %v1869 = vsel %vm1837, %v1805, -inf
      %v1870 = vsel %vm1838, %v1806, -inf
      %v1871 = vsel %vm1839, %v1807, -inf
      %v1872 = vsel %vm1840, %v1808, -inf
      %v1873 = vsel %vm1841, %v1809, -inf
      %v1874 = vsel %vm1842, %v1810, -inf
      %v1875 = vsel %vm1843, %v1811, -inf
      %v1876 = vsel %vm1844, %v1812, -inf
      %v1877 = vsel %vm1845, %v1813, -inf
      %v1878 = vsel %vm1846, %v1814, -inf
      %v1879 = vsel %vm1847, %v1815, -inf
      %v1880 = vsel %vm1848, %v1816, -inf
      %v1881 = vsel %vm1849, %v1817, -inf
      %v1882 = vsel %vm1850, %v1818, -inf
      %v1883 = vsel %vm1851, %v1819, -inf
      %v1884 = vsel %vm1852, %v1820, -inf
      %v1885 = vsel %vm1853, %v1821, -inf
      %v1886 = vsel %vm1854, %v1822, -inf
      %v1887 = vsel %vm1855, %v1823, -inf
      %v1888 = vsel %vm1856, %v1824, -inf
      %v1889 = vmax.f32 %v1761, %v1857
      %v1890 = vmax.f32 %v1762, %v1858
      %v1891 = vmax.f32 %v1763, %v1859
      %v1892 = vmax.f32 %v1764, %v1860
      %v1893 = vmax.f32 %v1765, %v1861
      %v1894 = vmax.f32 %v1766, %v1862
      %v1895 = vmax.f32 %v1767, %v1863
      %v1896 = vmax.f32 %v1768, %v1864
      %v1897 = vmax.f32 %v1769, %v1865
      %v1898 = vmax.f32 %v1770, %v1866
      %v1899 = vmax.f32 %v1771, %v1867
      %v1900 = vmax.f32 %v1772, %v1868
      %v1901 = vmax.f32 %v1773, %v1869
      %v1902 = vmax.f32 %v1774, %v1870
      %v1903 = vmax.f32 %v1775, %v1871
      %v1904 = vmax.f32 %v1776, %v1872
      %v1905 = vmax.f32 %v1777, %v1873
      %v1906 = vmax.f32 %v1778, %v1874
      %v1907 = vmax.f32 %v1779, %v1875
      %v1908 = vmax.f32 %v1780, %v1876
      %v1909 = vmax.f32 %v1781, %v1877
      %v1910 = vmax.f32 %v1782, %v1878
      %v1911 = vmax.f32 %v1783, %v1879
      %v1912 = vmax.f32 %v1784, %v1880
      %v1913 = vmax.f32 %v1785, %v1881
      %v1914 = vmax.f32 %v1786, %v1882
      %v1915 = vmax.f32 %v1787, %v1883
      %v1916 = vmax.f32 %v1788, %v1884
      %v1917 = vmax.f32 %v1789, %v1885
      %v1918 = vmax.f32 %v1790, %v1886
      %v1919 = vmax.f32 %v1791, %v1887
      %v1920 = vmax.f32 %v1792, %v1888
      %v1921 = vld [vmem:[#allocation2 + $0x2e] sm:$0xff]
      %v1922 = vld [vmem:[#allocation2 + $0x36] sm:$0xff]
      %v1923 = vld [vmem:[#allocation2 + $0x3e] sm:$0xff]
      %v1924 = vld [vmem:[#allocation2 + $0x46] sm:$0xff]
      %v1925 = vld [vmem:[#allocation2 + $0x4e] sm:$0xff]
      %v1926 = vld [vmem:[#allocation2 + $0x56] sm:$0xff]
      %v1927 = vld [vmem:[#allocation2 + $0x5e] sm:$0xff]
      %v1928 = vld [vmem:[#allocation2 + $0x66] sm:$0xff]
      %v1929 = vld [vmem:[#allocation2 + $0x6e] sm:$0xff]
      %v1930 = vld [vmem:[#allocation2 + $0x76] sm:$0xff]
      %v1931 = vld [vmem:[#allocation2 + $0x7e] sm:$0xff]
      %v1932 = vld [vmem:[#allocation2 + $0x86] sm:$0xff]
      %v1933 = vld [vmem:[#allocation2 + $0x8e] sm:$0xff]
      %v1934 = vld [vmem:[#allocation2 + $0x96] sm:$0xff]
      %v1935 = vld [vmem:[#allocation2 + $0x9e] sm:$0xff]
      %v1936 = vld [vmem:[#allocation2 + $0xa6] sm:$0xff]
      %v1937 = vld [vmem:[#allocation2 + $0xae] sm:$0xff]
      %v1938 = vld [vmem:[#allocation2 + $0xb6] sm:$0xff]
      %v1939 = vld [vmem:[#allocation2 + $0xbe] sm:$0xff]
      %v1940 = vld [vmem:[#allocation2 + $0xc6] sm:$0xff]
      %v1941 = vld [vmem:[#allocation2 + $0xce] sm:$0xff]
      %v1942 = vld [vmem:[#allocation2 + $0xd6] sm:$0xff]
      %v1943 = vld [vmem:[#allocation2 + $0xde] sm:$0xff]
      %v1944 = vld [vmem:[#allocation2 + $0xe6] sm:$0xff]
      %v1945 = vld [vmem:[#allocation2 + $0xee] sm:$0xff]
      %v1946 = vld [vmem:[#allocation2 + $0xf6] sm:$0xff]
      %v1947 = vld [vmem:[#allocation2 + $0xfe] sm:$0xff]
      %v1948 = vld [vmem:[#allocation2 + $0x106] sm:$0xff]
      %v1949 = vld [vmem:[#allocation2 + $0x10e] sm:$0xff]
      %v1950 = vld [vmem:[#allocation2 + $0x116] sm:$0xff]
      %v1951 = vld [vmem:[#allocation2 + $0x11e] sm:$0xff]
      %v1952 = vld [vmem:[#allocation2 + $0x126] sm:$0xff]
      %vm1953 = vcmp.ge.s32.totalorder %v624, 2
      %vm1954 = vcmp.ge.s32.totalorder %v625, 2
      %vm1955 = vcmp.ge.s32.totalorder %v626, 2
      %vm1956 = vcmp.ge.s32.totalorder %v627, 2
      %vm1957 = vcmp.ge.s32.totalorder %v628, 2
      %vm1958 = vcmp.ge.s32.totalorder %v629, 2
      %vm1959 = vcmp.ge.s32.totalorder %v630, 2
      %vm1960 = vcmp.ge.s32.totalorder %v631, 2
      %vm1961 = vcmp.ge.s32.totalorder %v632, 2
      %vm1962 = vcmp.ge.s32.totalorder %v633, 2
      %vm1963 = vcmp.ge.s32.totalorder %v634, 2
      %vm1964 = vcmp.ge.s32.totalorder %v635, 2
      %vm1965 = vcmp.ge.s32.totalorder %v636, 2
      %vm1966 = vcmp.ge.s32.totalorder %v637, 2
      %vm1967 = vcmp.ge.s32.totalorder %v638, 2
      %vm1968 = vcmp.ge.s32.totalorder %v639, 2
      %vm1969 = vcmp.ge.s32.totalorder %v640, 2
      %vm1970 = vcmp.ge.s32.totalorder %v641, 2
      %vm1971 = vcmp.ge.s32.totalorder %v642, 2
      %vm1972 = vcmp.ge.s32.totalorder %v643, 2
      %vm1973 = vcmp.ge.s32.totalorder %v644, 2
      %vm1974 = vcmp.ge.s32.totalorder %v645, 2
      %vm1975 = vcmp.ge.s32.totalorder %v646, 2
      %vm1976 = vcmp.ge.s32.totalorder %v647, 2
      %vm1977 = vcmp.ge.s32.totalorder %v648, 2
      %vm1978 = vcmp.ge.s32.totalorder %v649, 2
      %vm1979 = vcmp.ge.s32.totalorder %v650, 2
      %vm1980 = vcmp.ge.s32.totalorder %v651, 2
      %vm1981 = vcmp.ge.s32.totalorder %v652, 2
      %vm1982 = vcmp.ge.s32.totalorder %v653, 2
      %vm1983 = vcmp.ge.s32.totalorder %v654, 2
      %vm1984 = vcmp.ge.s32.totalorder %v655, 2
      %v1985 = vsel %vm1953, %v1921, -inf
      %v1986 = vsel %vm1954, %v1922, -inf
      %v1987 = vsel %vm1955, %v1923, -inf
      %v1988 = vsel %vm1956, %v1924, -inf
      %v1989 = vsel %vm1957, %v1925, -inf
      %v1990 = vsel %vm1958, %v1926, -inf
      %v1991 = vsel %vm1959, %v1927, -inf
      %v1992 = vsel %vm1960, %v1928, -inf
      %v1993 = vsel %vm1961, %v1929, -inf
      %v1994 = vsel %vm1962, %v1930, -inf
      %v1995 = vsel %vm1963, %v1931, -inf
      %v1996 = vsel %vm1964, %v1932, -inf
      %v1997 = vsel %vm1965, %v1933, -inf
      %v1998 = vsel %vm1966, %v1934, -inf
      %v1999 = vsel %vm1967, %v1935, -inf
      %v2000 = vsel %vm1968, %v1936, -inf
      %v2001 = vsel %vm1969, %v1937, -inf
      %v2002 = vsel %vm1970, %v1938, -inf
      %v2003 = vsel %vm1971, %v1939, -inf
      %v2004 = vsel %vm1972, %v1940, -inf
      %v2005 = vsel %vm1973, %v1941, -inf
      %v2006 = vsel %vm1974, %v1942, -inf
      %v2007 = vsel %vm1975, %v1943, -inf
      %v2008 = vsel %vm1976, %v1944, -inf
      %v2009 = vsel %vm1977, %v1945, -inf
      %v2010 = vsel %vm1978, %v1946, -inf
      %v2011 = vsel %vm1979, %v1947, -inf
      %v2012 = vsel %vm1980, %v1948, -inf
      %v2013 = vsel %vm1981, %v1949, -inf
      %v2014 = vsel %vm1982, %v1950, -inf
      %v2015 = vsel %vm1983, %v1951, -inf
      %v2016 = vsel %vm1984, %v1952, -inf
      %v2017 = vmax.f32 %v1889, %v1985
      %v2018 = vmax.f32 %v1890, %v1986
      %v2019 = vmax.f32 %v1891, %v1987
      %v2020 = vmax.f32 %v1892, %v1988
      %v2021 = vmax.f32 %v1893, %v1989
      %v2022 = vmax.f32 %v1894, %v1990
      %v2023 = vmax.f32 %v1895, %v1991
      %v2024 = vmax.f32 %v1896, %v1992
      %v2025 = vmax.f32 %v1897, %v1993
      %v2026 = vmax.f32 %v1898, %v1994
      %v2027 = vmax.f32 %v1899, %v1995
      %v2028 = vmax.f32 %v1900, %v1996
      %v2029 = vmax.f32 %v1901, %v1997
      %v2030 = vmax.f32 %v1902, %v1998
      %v2031 = vmax.f32 %v1903, %v1999
      %v2032 = vmax.f32 %v1904, %v2000
      %v2033 = vmax.f32 %v1905, %v2001
      %v2034 = vmax.f32 %v1906, %v2002
      %v2035 = vmax.f32 %v1907, %v2003
      %v2036 = vmax.f32 %v1908, %v2004
      %v2037 = vmax.f32 %v1909, %v2005
      %v2038 = vmax.f32 %v1910, %v2006
      %v2039 = vmax.f32 %v1911, %v2007
      %v2040 = vmax.f32 %v1912, %v2008
      %v2041 = vmax.f32 %v1913, %v2009
      %v2042 = vmax.f32 %v1914, %v2010
      %v2043 = vmax.f32 %v1915, %v2011
      %v2044 = vmax.f32 %v1916, %v2012
      %v2045 = vmax.f32 %v1917, %v2013
      %v2046 = vmax.f32 %v1918, %v2014
      %v2047 = vmax.f32 %v1919, %v2015
      %v2048 = vmax.f32 %v1920, %v2016
      %2049 = vst.msk [vmem:[#allocation2 + $0x30] sm:$0xff] %vm226, %v2017
      %2050 = vst.msk [vmem:[#allocation2 + $0x38] sm:$0xff] %vm226, %v2018
      %2051 = vst.msk [vmem:[#allocation2 + $0x40] sm:$0xff] %vm226, %v2019
      %2052 = vst.msk [vmem:[#allocation2 + $0x48] sm:$0xff] %vm226, %v2020
      %2053 = vst.msk [vmem:[#allocation2 + $0x50] sm:$0xff] %vm226, %v2021
      %2054 = vst.msk [vmem:[#allocation2 + $0x58] sm:$0xff] %vm226, %v2022
      %2055 = vst.msk [vmem:[#allocation2 + $0x60] sm:$0xff] %vm226, %v2023
      %2056 = vst.msk [vmem:[#allocation2 + $0x68] sm:$0xff] %vm226, %v2024
      %2057 = vst.msk [vmem:[#allocation2 + $0x70] sm:$0xff] %vm226, %v2025
      %2058 = vst.msk [vmem:[#allocation2 + $0x78] sm:$0xff] %vm226, %v2026
      %2059 = vst.msk [vmem:[#allocation2 + $0x80] sm:$0xff] %vm226, %v2027
      %2060 = vst.msk [vmem:[#allocation2 + $0x88] sm:$0xff] %vm226, %v2028
      %2061 = vst.msk [vmem:[#allocation2 + $0x90] sm:$0xff] %vm226, %v2029
      %2062 = vst.msk [vmem:[#allocation2 + $0x98] sm:$0xff] %vm226, %v2030
      %2063 = vst.msk [vmem:[#allocation2 + $0xa0] sm:$0xff] %vm226, %v2031
      %2064 = vst.msk [vmem:[#allocation2 + $0xa8] sm:$0xff] %vm226, %v2032
      %2065 = vst.msk [vmem:[#allocation2 + $0xb0] sm:$0xff] %vm226, %v2033
      %2066 = vst.msk [vmem:[#allocation2 + $0xb8] sm:$0xff] %vm226, %v2034
      %2067 = vst.msk [vmem:[#allocation2 + $0xc0] sm:$0xff] %vm226, %v2035
      %2068 = vst.msk [vmem:[#allocation2 + $0xc8] sm:$0xff] %vm226, %v2036
      %2069 = vst.msk [vmem:[#allocation2 + $0xd0] sm:$0xff] %vm226, %v2037
      %2070 = vst.msk [vmem:[#allocation2 + $0xd8] sm:$0xff] %vm226, %v2038
      %2071 = vst.msk [vmem:[#allocation2 + $0xe0] sm:$0xff] %vm226, %v2039
      %2072 = vst.msk [vmem:[#allocation2 + $0xe8] sm:$0xff] %vm226, %v2040
      %2073 = vst.msk [vmem:[#allocation2 + $0xf0] sm:$0xff] %vm226, %v2041
      %2074 = vst.msk [vmem:[#allocation2 + $0xf8] sm:$0xff] %vm226, %v2042
      %2075 = vst.msk [vmem:[#allocation2 + $0x100] sm:$0xff] %vm226, %v2043
      %2076 = vst.msk [vmem:[#allocation2 + $0x108] sm:$0xff] %vm226, %v2044
      %2077 = vst.msk [vmem:[#allocation2 + $0x110] sm:$0xff] %vm226, %v2045
      %2078 = vst.msk [vmem:[#allocation2 + $0x118] sm:$0xff] %vm226, %v2046
      %2079 = vst.msk [vmem:[#allocation2 + $0x120] sm:$0xff] %vm226, %v2047
      %2080 = vst.msk [vmem:[#allocation2 + $0x128] sm:$0xff] %vm226, %v2048
      %v2081 = vld [vmem:[#allocation2 + $0x40] sm:$0xff]
      %v2082 = vld [vmem:[#allocation2 + $0x48] sm:$0xff]
      %v2083 = vld [vmem:[#allocation2 + $0x50] sm:$0xff]
      %v2084 = vld [vmem:[#allocation2 + $0x58] sm:$0xff]
      %v2085 = vld [vmem:[#allocation2 + $0x60] sm:$0xff]
      %v2086 = vld [vmem:[#allocation2 + $0x68] sm:$0xff]
      %v2087 = vld [vmem:[#allocation2 + $0x70] sm:$0xff]
      %v2088 = vld [vmem:[#allocation2 + $0x78] sm:$0xff]
      %v2089 = vld [vmem:[#allocation2 + $0x80] sm:$0xff]
      %v2090 = vld [vmem:[#allocation2 + $0x88] sm:$0xff]
      %v2091 = vld [vmem:[#allocation2 + $0x90] sm:$0xff]
      %v2092 = vld [vmem:[#allocation2 + $0x98] sm:$0xff]
      %v2093 = vld [vmem:[#allocation2 + $0xa0] sm:$0xff]
      %v2094 = vld [vmem:[#allocation2 + $0xa8] sm:$0xff]
      %v2095 = vld [vmem:[#allocation2 + $0xb0] sm:$0xff]
      %v2096 = vld [vmem:[#allocation2 + $0xb8] sm:$0xff]
      %v2097 = vld [vmem:[#allocation2 + $0xc0] sm:$0xff]
      %v2098 = vld [vmem:[#allocation2 + $0xc8] sm:$0xff]
      %v2099 = vld [vmem:[#allocation2 + $0xd0] sm:$0xff]
      %v2100 = vld [vmem:[#allocation2 + $0xd8] sm:$0xff]
      %v2101 = vld [vmem:[#allocation2 + $0xe0] sm:$0xff]
      %v2102 = vld [vmem:[#allocation2 + $0xe8] sm:$0xff]
      %v2103 = vld [vmem:[#allocation2 + $0xf0] sm:$0xff]
      %v2104 = vld [vmem:[#allocation2 + $0xf8] sm:$0xff]
      %v2105 = vld [vmem:[#allocation2 + $0x100] sm:$0xff]
      %v2106 = vld [vmem:[#allocation2 + $0x108] sm:$0xff]
      %v2107 = vld [vmem:[#allocation2 + $0x110] sm:$0xff]
      %v2108 = vld [vmem:[#allocation2 + $0x118] sm:$0xff]
      %v2109 = vld [vmem:[#allocation2 + $0x120] sm:$0xff]
      %v2110 = vld [vmem:[#allocation2 + $0x128] sm:$0xff]
      %v2111 = vld [vmem:[#allocation2 + $0x130] sm:$0xff]
      %v2112 = vld [vmem:[#allocation2 + $0x138] sm:$0xff]
      %v2113 = vmax.f32 %v2017, %v2081
      %v2114 = vmax.f32 %v2018, %v2082
      %v2115 = vmax.f32 %v2019, %v2083
      %v2116 = vmax.f32 %v2020, %v2084
      %v2117 = vmax.f32 %v2021, %v2085
      %v2118 = vmax.f32 %v2022, %v2086
      %v2119 = vmax.f32 %v2023, %v2087
      %v2120 = vmax.f32 %v2024, %v2088
      %v2121 = vmax.f32 %v2025, %v2089
      %v2122 = vmax.f32 %v2026, %v2090
      %v2123 = vmax.f32 %v2027, %v2091
      %v2124 = vmax.f32 %v2028, %v2092
      %v2125 = vmax.f32 %v2029, %v2093
      %v2126 = vmax.f32 %v2030, %v2094
      %v2127 = vmax.f32 %v2031, %v2095
      %v2128 = vmax.f32 %v2032, %v2096
      %v2129 = vmax.f32 %v2033, %v2097
      %v2130 = vmax.f32 %v2034, %v2098
      %v2131 = vmax.f32 %v2035, %v2099
      %v2132 = vmax.f32 %v2036, %v2100
      %v2133 = vmax.f32 %v2037, %v2101
      %v2134 = vmax.f32 %v2038, %v2102
      %v2135 = vmax.f32 %v2039, %v2103
      %v2136 = vmax.f32 %v2040, %v2104
      %v2137 = vmax.f32 %v2041, %v2105
      %v2138 = vmax.f32 %v2042, %v2106
      %v2139 = vmax.f32 %v2043, %v2107
      %v2140 = vmax.f32 %v2044, %v2108
      %v2141 = vmax.f32 %v2045, %v2109
      %v2142 = vmax.f32 %v2046, %v2110
      %v2143 = vmax.f32 %v2047, %v2111
      %v2144 = vmax.f32 %v2048, %v2112
      %v2145 = vld [vmem:[#allocation2 + $0x20] sm:$0xff]
      %v2146 = vld [vmem:[#allocation2 + $0x28] sm:$0xff]
      %v2147 = vld [vmem:[#allocation2 + $0x30] sm:$0xff]
      %v2148 = vld [vmem:[#allocation2 + $0x38] sm:$0xff]
      %v2149 = vmax.f32 %v2113, %v2145
      %v2150 = vmax.f32 %v2114, %v2146
      %v2151 = vmax.f32 %v2115, %v2147
      %v2152 = vmax.f32 %v2116, %v2148
      %v2153 = vmax.f32 %v2117, %v2081
      %v2154 = vmax.f32 %v2118, %v2082
      %v2155 = vmax.f32 %v2119, %v2083
      %v2156 = vmax.f32 %v2120, %v2084
      %v2157 = vmax.f32 %v2121, %v2085
      %v2158 = vmax.f32 %v2122, %v2086
      %v2159 = vmax.f32 %v2123, %v2087
      %v2160 = vmax.f32 %v2124, %v2088
      %v2161 = vmax.f32 %v2125, %v2089
      %v2162 = vmax.f32 %v2126, %v2090
      %v2163 = vmax.f32 %v2127, %v2091
      %v2164 = vmax.f32 %v2128, %v2092
      %v2165 = vmax.f32 %v2129, %v2093
      %v2166 = vmax.f32 %v2130, %v2094
      %v2167 = vmax.f32 %v2131, %v2095
      %v2168 = vmax.f32 %v2132, %v2096
      %v2169 = vmax.f32 %v2133, %v2097
      %v2170 = vmax.f32 %v2134, %v2098
      %v2171 = vmax.f32 %v2135, %v2099
      %v2172 = vmax.f32 %v2136, %v2100
      %v2173 = vmax.f32 %v2137, %v2101
      %v2174 = vmax.f32 %v2138, %v2102
      %v2175 = vmax.f32 %v2139, %v2103
      %v2176 = vmax.f32 %v2140, %v2104
      %v2177 = vmax.f32 %v2141, %v2105
      %v2178 = vmax.f32 %v2142, %v2106
      %v2179 = vmax.f32 %v2143, %v2107
      %v2180 = vmax.f32 %v2144, %v2108
      %v2181 = vld [vmem:[#allocation2 + $0x140] sm:$0xff]
      %v2182 = vld [vmem:[#allocation2 + $0x148] sm:$0xff]
      %v2183 = vmax.f32 %v2149, %v2083
      %v2184 = vmax.f32 %v2150, %v2084
      %v2185 = vmax.f32 %v2151, %v2085
      %v2186 = vmax.f32 %v2152, %v2086
      %v2187 = vmax.f32 %v2153, %v2087
      %v2188 = vmax.f32 %v2154, %v2088
      %v2189 = vmax.f32 %v2155, %v2089
      %v2190 = vmax.f32 %v2156, %v2090
      %v2191 = vmax.f32 %v2157, %v2091
      %v2192 = vmax.f32 %v2158, %v2092
      %v2193 = vmax.f32 %v2159, %v2093
      %v2194 = vmax.f32 %v2160, %v2094
      %v2195 = vmax.f32 %v2161, %v2095
      %v2196 = vmax.f32 %v2162, %v2096
      %v2197 = vmax.f32 %v2163, %v2097
      %v2198 = vmax.f32 %v2164, %v2098
      %v2199 = vmax.f32 %v2165, %v2099
      %v2200 = vmax.f32 %v2166, %v2100
      %v2201 = vmax.f32 %v2167, %v2101
      %v2202 = vmax.f32 %v2168, %v2102
      %v2203 = vmax.f32 %v2169, %v2103
      %v2204 = vmax.f32 %v2170, %v2104
      %v2205 = vmax.f32 %v2171, %v2105
      %v2206 = vmax.f32 %v2172, %v2106
      %v2207 = vmax.f32 %v2173, %v2107
      %v2208 = vmax.f32 %v2174, %v2108
      %v2209 = vmax.f32 %v2175, %v2109
      %v2210 = vmax.f32 %v2176, %v2110
      %v2211 = vmax.f32 %v2177, %v2111
      %v2212 = vmax.f32 %v2178, %v2112
      %v2213 = vmax.f32 %v2179, %v2181
      %v2214 = vmax.f32 %v2180, %v2182
      %v2215 = vld [vmem:[#allocation2 + $0x10] sm:$0xff]
      %v2216 = vld [vmem:[#allocation2 + $0x18] sm:$0xff]
      %v2217 = vmax.f32 %v2183, %v2215
      %v2218 = vmax.f32 %v2184, %v2216
      %v2219 = vmax.f32 %v2185, %v2145
      %v2220 = vmax.f32 %v2186, %v2146
      %v2221 = vmax.f32 %v2187, %v2147
      %v2222 = vmax.f32 %v2188, %v2148
      %v2223 = vmax.f32 %v2189, %v2081
      %v2224 = vmax.f32 %v2190, %v2082
      %v2225 = vmax.f32 %v2191, %v2083
      %v2226 = vmax.f32 %v2192, %v2084
      %v2227 = vmax.f32 %v2193, %v2085
      %v2228 = vmax.f32 %v2194, %v2086
      %v2229 = vmax.f32 %v2195, %v2087
      %v2230 = vmax.f32 %v2196, %v2088
      %v2231 = vmax.f32 %v2197, %v2089
      %v2232 = vmax.f32 %v2198, %v2090
      %v2233 = vmax.f32 %v2199, %v2091
      %v2234 = vmax.f32 %v2200, %v2092
      %v2235 = vmax.f32 %v2201, %v2093
      %v2236 = vmax.f32 %v2202, %v2094
      %v2237 = vmax.f32 %v2203, %v2095
      %v2238 = vmax.f32 %v2204, %v2096
      %v2239 = vmax.f32 %v2205, %v2097
      %v2240 = vmax.f32 %v2206, %v2098
      %v2241 = vmax.f32 %v2207, %v2099
      %v2242 = vmax.f32 %v2208, %v2100
      %v2243 = vmax.f32 %v2209, %v2101
      %v2244 = vmax.f32 %v2210, %v2102
      %v2245 = vmax.f32 %v2211, %v2103
      %v2246 = vmax.f32 %v2212, %v2104
      %v2247 = vmax.f32 %v2213, %v2105
      %v2248 = vmax.f32 %v2214, %v2106
      %2249 = vst.msk [vmem:[#allocation2 + $0x30] sm:$0xff] %vm226, %v2217
      %2250 = vst.msk [vmem:[#allocation2 + $0x38] sm:$0xff] %vm226, %v2218
      %2251 = vst.msk [vmem:[#allocation2 + $0x40] sm:$0xff] %vm226, %v2219
      %2252 = vst.msk [vmem:[#allocation2 + $0x48] sm:$0xff] %vm226, %v2220
      %2253 = vst.msk [vmem:[#allocation2 + $0x50] sm:$0xff] %vm226, %v2221
      %2254 = vst.msk [vmem:[#allocation2 + $0x58] sm:$0xff] %vm226, %v2222
      %2255 = vst.msk [vmem:[#allocation2 + $0x60] sm:$0xff] %vm226, %v2223
      %2256 = vst.msk [vmem:[#allocation2 + $0x68] sm:$0xff] %vm226, %v2224
      %2257 = vst.msk [vmem:[#allocation2 + $0x70] sm:$0xff] %vm226, %v2225
      %2258 = vst.msk [vmem:[#allocation2 + $0x78] sm:$0xff] %vm226, %v2226
      %2259 = vst.msk [vmem:[#allocation2 + $0x80] sm:$0xff] %vm226, %v2227
      %2260 = vst.msk [vmem:[#allocation2 + $0x88] sm:$0xff] %vm226, %v2228
      %2261 = vst.msk [vmem:[#allocation2 + $0x90] sm:$0xff] %vm226, %v2229
      %2262 = vst.msk [vmem:[#allocation2 + $0x98] sm:$0xff] %vm226, %v2230
      %2263 = vst.msk [vmem:[#allocation2 + $0xa0] sm:$0xff] %vm226, %v2231
      %2264 = vst.msk [vmem:[#allocation2 + $0xa8] sm:$0xff] %vm226, %v2232
      %2265 = vst.msk [vmem:[#allocation2 + $0xb0] sm:$0xff] %vm226, %v2233
      %2266 = vst.msk [vmem:[#allocation2 + $0xb8] sm:$0xff] %vm226, %v2234
      %2267 = vst.msk [vmem:[#allocation2 + $0xc0] sm:$0xff] %vm226, %v2235
      %2268 = vst.msk [vmem:[#allocation2 + $0xc8] sm:$0xff] %vm226, %v2236
      %2269 = vst.msk [vmem:[#allocation2 + $0xd0] sm:$0xff] %vm226, %v2237
      %2270 = vst.msk [vmem:[#allocation2 + $0xd8] sm:$0xff] %vm226, %v2238
      %2271 = vst.msk [vmem:[#allocation2 + $0xe0] sm:$0xff] %vm226, %v2239
      %2272 = vst.msk [vmem:[#allocation2 + $0xe8] sm:$0xff] %vm226, %v2240
      %2273 = vst.msk [vmem:[#allocation2 + $0xf0] sm:$0xff] %vm226, %v2241
      %2274 = vst.msk [vmem:[#allocation2 + $0xf8] sm:$0xff] %vm226, %v2242
      %2275 = vst.msk [vmem:[#allocation2 + $0x100] sm:$0xff] %vm226, %v2243
      %2276 = vst.msk [vmem:[#allocation2 + $0x108] sm:$0xff] %vm226, %v2244
      %2277 = vst.msk [vmem:[#allocation2 + $0x110] sm:$0xff] %vm226, %v2245
      %2278 = vst.msk [vmem:[#allocation2 + $0x118] sm:$0xff] %vm226, %v2246
      %2279 = vst.msk [vmem:[#allocation2 + $0x120] sm:$0xff] %vm226, %v2247
      %2280 = vst.msk [vmem:[#allocation2 + $0x128] sm:$0xff] %vm226, %v2248
      %v2281 = vld [vmem:[#allocation2 + $0x31] sm:$0xff]
      %v2282 = vld [vmem:[#allocation2 + $0x39] sm:$0xff]
      %v2283 = vld [vmem:[#allocation2 + $0x41] sm:$0xff]
      %v2284 = vld [vmem:[#allocation2 + $0x49] sm:$0xff]
      %v2285 = vld [vmem:[#allocation2 + $0x51] sm:$0xff]
      %v2286 = vld [vmem:[#allocation2 + $0x59] sm:$0xff]
      %v2287 = vld [vmem:[#allocation2 + $0x61] sm:$0xff]
      %v2288 = vld [vmem:[#allocation2 + $0x69] sm:$0xff]
      %v2289 = vld [vmem:[#allocation2 + $0x71] sm:$0xff]
      %v2290 = vld [vmem:[#allocation2 + $0x79] sm:$0xff]
      %v2291 = vld [vmem:[#allocation2 + $0x81] sm:$0xff]
      %v2292 = vld [vmem:[#allocation2 + $0x89] sm:$0xff]
      %v2293 = vld [vmem:[#allocation2 + $0x91] sm:$0xff]
      %v2294 = vld [vmem:[#allocation2 + $0x99] sm:$0xff]
      %v2295 = vld [vmem:[#allocation2 + $0xa1] sm:$0xff]
      %v2296 = vld [vmem:[#allocation2 + $0xa9] sm:$0xff]
      %v2297 = vld [vmem:[#allocation2 + $0xb1] sm:$0xff]
      %v2298 = vld [vmem:[#allocation2 + $0xb9] sm:$0xff]
      %v2299 = vld [vmem:[#allocation2 + $0xc1] sm:$0xff]
      %v2300 = vld [vmem:[#allocation2 + $0xc9] sm:$0xff]
      %v2301 = vld [vmem:[#allocation2 + $0xd1] sm:$0xff]
      %v2302 = vld [vmem:[#allocation2 + $0xd9] sm:$0xff]
      %v2303 = vld [vmem:[#allocation2 + $0xe1] sm:$0xff]
      %v2304 = vld [vmem:[#allocation2 + $0xe9] sm:$0xff]
      %v2305 = vld [vmem:[#allocation2 + $0xf1] sm:$0xff]
      %v2306 = vld [vmem:[#allocation2 + $0xf9] sm:$0xff]
      %v2307 = vld [vmem:[#allocation2 + $0x101] sm:$0xff]
      %v2308 = vld [vmem:[#allocation2 + $0x109] sm:$0xff]
      %v2309 = vld [vmem:[#allocation2 + $0x111] sm:$0xff]
      %v2310 = vld [vmem:[#allocation2 + $0x119] sm:$0xff]
      %v2311 = vld [vmem:[#allocation2 + $0x121] sm:$0xff]
      %v2312 = vld [vmem:[#allocation2 + $0x129] sm:$0xff]
      %v2313 = vsel %vm1213, %v2281, -inf
      %v2314 = vsel %vm1214, %v2282, -inf
      %v2315 = vsel %vm1215, %v2283, -inf
      %v2316 = vsel %vm1216, %v2284, -inf
      %v2317 = vsel %vm1217, %v2285, -inf
      %v2318 = vsel %vm1218, %v2286, -inf
      %v2319 = vsel %vm1219, %v2287, -inf
      %v2320 = vsel %vm1220, %v2288, -inf
      %v2321 = vsel %vm1221, %v2289, -inf
      %v2322 = vsel %vm1222, %v2290, -inf
      %v2323 = vsel %vm1223, %v2291, -inf
      %v2324 = vsel %vm1224, %v2292, -inf
      %v2325 = vsel %vm1225, %v2293, -inf
      %v2326 = vsel %vm1226, %v2294, -inf
      %v2327 = vsel %vm1227, %v2295, -inf
      %v2328 = vsel %vm1228, %v2296, -inf
      %v2329 = vsel %vm1229, %v2297, -inf
      %v2330 = vsel %vm1230, %v2298, -inf
      %v2331 = vsel %vm1231, %v2299, -inf
      %v2332 = vsel %vm1232, %v2300, -inf
      %v2333 = vsel %vm1233, %v2301, -inf
      %v2334 = vsel %vm1234, %v2302, -inf
      %v2335 = vsel %vm1235, %v2303, -inf
      %v2336 = vsel %vm1236, %v2304, -inf
      %v2337 = vsel %vm1237, %v2305, -inf
      %v2338 = vsel %vm1238, %v2306, -inf
      %v2339 = vsel %vm1239, %v2307, -inf
      %v2340 = vsel %vm1240, %v2308, -inf
      %v2341 = vsel %vm1241, %v2309, -inf
      %v2342 = vsel %vm1242, %v2310, -inf
      %v2343 = vsel %vm1243, %v2311, -inf
      %v2344 = vsel %vm1244, %v2312, -inf
      %v2345 = vmax.f32 %v2217, %v2313
      %v2346 = vmax.f32 %v2218, %v2314
      %v2347 = vmax.f32 %v2219, %v2315
      %v2348 = vmax.f32 %v2220, %v2316
      %v2349 = vmax.f32 %v2221, %v2317
      %v2350 = vmax.f32 %v2222, %v2318
      %v2351 = vmax.f32 %v2223, %v2319
      %v2352 = vmax.f32 %v2224, %v2320
      %v2353 = vmax.f32 %v2225, %v2321
      %v2354 = vmax.f32 %v2226, %v2322
      %v2355 = vmax.f32 %v2227, %v2323
      %v2356 = vmax.f32 %v2228, %v2324
      %v2357 = vmax.f32 %v2229, %v2325
      %v2358 = vmax.f32 %v2230, %v2326
      %v2359 = vmax.f32 %v2231, %v2327
      %v2360 = vmax.f32 %v2232, %v2328
      %v2361 = vmax.f32 %v2233, %v2329
      %v2362 = vmax.f32 %v2234, %v2330
      %v2363 = vmax.f32 %v2235, %v2331
      %v2364 = vmax.f32 %v2236, %v2332
      %v2365 = vmax.f32 %v2237, %v2333
      %v2366 = vmax.f32 %v2238, %v2334
      %v2367 = vmax.f32 %v2239, %v2335
      %v2368 = vmax.f32 %v2240, %v2336
      %v2369 = vmax.f32 %v2241, %v2337
      %v2370 = vmax.f32 %v2242, %v2338
      %v2371 = vmax.f32 %v2243, %v2339
      %v2372 = vmax.f32 %v2244, %v2340
      %v2373 = vmax.f32 %v2245, %v2341
      %v2374 = vmax.f32 %v2246, %v2342
      %v2375 = vmax.f32 %v2247, %v2343
      %v2376 = vmax.f32 %v2248, %v2344
      %v2377 = vld [vmem:[#allocation2 + $0x2f] sm:$0xff]
      %v2378 = vld [vmem:[#allocation2 + $0x37] sm:$0xff]
      %v2379 = vld [vmem:[#allocation2 + $0x3f] sm:$0xff]
      %v2380 = vld [vmem:[#allocation2 + $0x47] sm:$0xff]
      %v2381 = vld [vmem:[#allocation2 + $0x4f] sm:$0xff]
      %v2382 = vld [vmem:[#allocation2 + $0x57] sm:$0xff]
      %v2383 = vld [vmem:[#allocation2 + $0x5f] sm:$0xff]
      %v2384 = vld [vmem:[#allocation2 + $0x67] sm:$0xff]
      %v2385 = vld [vmem:[#allocation2 + $0x6f] sm:$0xff]
      %v2386 = vld [vmem:[#allocation2 + $0x77] sm:$0xff]
      %v2387 = vld [vmem:[#allocation2 + $0x7f] sm:$0xff]
      %v2388 = vld [vmem:[#allocation2 + $0x87] sm:$0xff]
      %v2389 = vld [vmem:[#allocation2 + $0x8f] sm:$0xff]
      %v2390 = vld [vmem:[#allocation2 + $0x97] sm:$0xff]
      %v2391 = vld [vmem:[#allocation2 + $0x9f] sm:$0xff]
      %v2392 = vld [vmem:[#allocation2 + $0xa7] sm:$0xff]
      %v2393 = vld [vmem:[#allocation2 + $0xaf] sm:$0xff]
      %v2394 = vld [vmem:[#allocation2 + $0xb7] sm:$0xff]
      %v2395 = vld [vmem:[#allocation2 + $0xbf] sm:$0xff]
      %v2396 = vld [vmem:[#allocation2 + $0xc7] sm:$0xff]
      %v2397 = vld [vmem:[#allocation2 + $0xcf] sm:$0xff]
      %v2398 = vld [vmem:[#allocation2 + $0xd7] sm:$0xff]
      %v2399 = vld [vmem:[#allocation2 + $0xdf] sm:$0xff]
      %v2400 = vld [vmem:[#allocation2 + $0xe7] sm:$0xff]
      %v2401 = vld [vmem:[#allocation2 + $0xef] sm:$0xff]
      %v2402 = vld [vmem:[#allocation2 + $0xf7] sm:$0xff]
      %v2403 = vld [vmem:[#allocation2 + $0xff] sm:$0xff]
      %v2404 = vld [vmem:[#allocation2 + $0x107] sm:$0xff]
      %v2405 = vld [vmem:[#allocation2 + $0x10f] sm:$0xff]
      %v2406 = vld [vmem:[#allocation2 + $0x117] sm:$0xff]
      %v2407 = vld [vmem:[#allocation2 + $0x11f] sm:$0xff]
      %v2408 = vld [vmem:[#allocation2 + $0x127] sm:$0xff]
      %v2409 = vsel %vm1341, %v2377, -inf
      %v2410 = vsel %vm1342, %v2378, -inf
      %v2411 = vsel %vm1343, %v2379, -inf
      %v2412 = vsel %vm1344, %v2380, -inf
      %v2413 = vsel %vm1345, %v2381, -inf
      %v2414 = vsel %vm1346, %v2382, -inf
      %v2415 = vsel %vm1347, %v2383, -inf
      %v2416 = vsel %vm1348, %v2384, -inf
      %v2417 = vsel %vm1349, %v2385, -inf
      %v2418 = vsel %vm1350, %v2386, -inf
      %v2419 = vsel %vm1351, %v2387, -inf
      %v2420 = vsel %vm1352, %v2388, -inf
      %v2421 = vsel %vm1353, %v2389, -inf
      %v2422 = vsel %vm1354, %v2390, -inf
      %v2423 = vsel %vm1355, %v2391, -inf
      %v2424 = vsel %vm1356, %v2392, -inf
      %v2425 = vsel %vm1357, %v2393, -inf
      %v2426 = vsel %vm1358, %v2394, -inf
      %v2427 = vsel %vm1359, %v2395, -inf
      %v2428 = vsel %vm1360, %v2396, -inf
      %v2429 = vsel %vm1361, %v2397, -inf
      %v2430 = vsel %vm1362, %v2398, -inf
      %v2431 = vsel %vm1363, %v2399, -inf
      %v2432 = vsel %vm1364, %v2400, -inf
      %v2433 = vsel %vm1365, %v2401, -inf
      %v2434 = vsel %vm1366, %v2402, -inf
      %v2435 = vsel %vm1367, %v2403, -inf
      %v2436 = vsel %vm1368, %v2404, -inf
      %v2437 = vsel %vm1369, %v2405, -inf
      %v2438 = vsel %vm1370, %v2406, -inf
      %v2439 = vsel %vm1371, %v2407, -inf
      %v2440 = vsel %vm1372, %v2408, -inf
      %v2441 = vmax.f32 %v2345, %v2409
      %v2442 = vmax.f32 %v2346, %v2410
      %v2443 = vmax.f32 %v2347, %v2411
      %v2444 = vmax.f32 %v2348, %v2412
      %v2445 = vmax.f32 %v2349, %v2413
      %v2446 = vmax.f32 %v2350, %v2414
      %v2447 = vmax.f32 %v2351, %v2415
      %v2448 = vmax.f32 %v2352, %v2416
      %v2449 = vmax.f32 %v2353, %v2417
      %v2450 = vmax.f32 %v2354, %v2418
      %v2451 = vmax.f32 %v2355, %v2419
      %v2452 = vmax.f32 %v2356, %v2420
      %v2453 = vmax.f32 %v2357, %v2421
      %v2454 = vmax.f32 %v2358, %v2422
      %v2455 = vmax.f32 %v2359, %v2423
      %v2456 = vmax.f32 %v2360, %v2424
      %v2457 = vmax.f32 %v2361, %v2425
      %v2458 = vmax.f32 %v2362, %v2426
      %v2459 = vmax.f32 %v2363, %v2427
      %v2460 = vmax.f32 %v2364, %v2428
      %v2461 = vmax.f32 %v2365, %v2429
      %v2462 = vmax.f32 %v2366, %v2430
      %v2463 = vmax.f32 %v2367, %v2431
      %v2464 = vmax.f32 %v2368, %v2432
      %v2465 = vmax.f32 %v2369, %v2433
      %v2466 = vmax.f32 %v2370, %v2434
      %v2467 = vmax.f32 %v2371, %v2435
      %v2468 = vmax.f32 %v2372, %v2436
      %v2469 = vmax.f32 %v2373, %v2437
      %v2470 = vmax.f32 %v2374, %v2438
      %v2471 = vmax.f32 %v2375, %v2439
      %v2472 = vmax.f32 %v2376, %v2440
      %v2473 = vld [vmem:[#allocation2 + $0x32] sm:$0xff]
      %v2474 = vld [vmem:[#allocation2 + $0x3a] sm:$0xff]
      %v2475 = vld [vmem:[#allocation2 + $0x42] sm:$0xff]
      %v2476 = vld [vmem:[#allocation2 + $0x4a] sm:$0xff]
      %v2477 = vld [vmem:[#allocation2 + $0x52] sm:$0xff]
      %v2478 = vld [vmem:[#allocation2 + $0x5a] sm:$0xff]
      %v2479 = vld [vmem:[#allocation2 + $0x62] sm:$0xff]
      %v2480 = vld [vmem:[#allocation2 + $0x6a] sm:$0xff]
      %v2481 = vld [vmem:[#allocation2 + $0x72] sm:$0xff]
      %v2482 = vld [vmem:[#allocation2 + $0x7a] sm:$0xff]
      %v2483 = vld [vmem:[#allocation2 + $0x82] sm:$0xff]
      %v2484 = vld [vmem:[#allocation2 + $0x8a] sm:$0xff]
      %v2485 = vld [vmem:[#allocation2 + $0x92] sm:$0xff]
      %v2486 = vld [vmem:[#allocation2 + $0x9a] sm:$0xff]
      %v2487 = vld [vmem:[#allocation2 + $0xa2] sm:$0xff]
      %v2488 = vld [vmem:[#allocation2 + $0xaa] sm:$0xff]
      %v2489 = vld [vmem:[#allocation2 + $0xb2] sm:$0xff]
      %v2490 = vld [vmem:[#allocation2 + $0xba] sm:$0xff]
      %v2491 = vld [vmem:[#allocation2 + $0xc2] sm:$0xff]
      %v2492 = vld [vmem:[#allocation2 + $0xca] sm:$0xff]
      %v2493 = vld [vmem:[#allocation2 + $0xd2] sm:$0xff]
      %v2494 = vld [vmem:[#allocation2 + $0xda] sm:$0xff]
      %v2495 = vld [vmem:[#allocation2 + $0xe2] sm:$0xff]
      %v2496 = vld [vmem:[#allocation2 + $0xea] sm:$0xff]
      %v2497 = vld [vmem:[#allocation2 + $0xf2] sm:$0xff]
      %v2498 = vld [vmem:[#allocation2 + $0xfa] sm:$0xff]
      %v2499 = vld [vmem:[#allocation2 + $0x102] sm:$0xff]
      %v2500 = vld [vmem:[#allocation2 + $0x10a] sm:$0xff]
      %v2501 = vld [vmem:[#allocation2 + $0x112] sm:$0xff]
      %v2502 = vld [vmem:[#allocation2 + $0x11a] sm:$0xff]
      %v2503 = vld [vmem:[#allocation2 + $0x122] sm:$0xff]
      %v2504 = vld [vmem:[#allocation2 + $0x12a] sm:$0xff]
      %v2505 = vsel %vm1825, %v2473, -inf
      %v2506 = vsel %vm1826, %v2474, -inf
      %v2507 = vsel %vm1827, %v2475, -inf
      %v2508 = vsel %vm1828, %v2476, -inf
      %v2509 = vsel %vm1829, %v2477, -inf
      %v2510 = vsel %vm1830, %v2478, -inf
      %v2511 = vsel %vm1831, %v2479, -inf
      %v2512 = vsel %vm1832, %v2480, -inf
      %v2513 = vsel %vm1833, %v2481, -inf
      %v2514 = vsel %vm1834, %v2482, -inf
      %v2515 = vsel %vm1835, %v2483, -inf
      %v2516 = vsel %vm1836, %v2484, -inf
      %v2517 = vsel %vm1837, %v2485, -inf
      %v2518 = vsel %vm1838, %v2486, -inf
      %v2519 = vsel %vm1839, %v2487, -inf
      %v2520 = vsel %vm1840, %v2488, -inf
      %v2521 = vsel %vm1841, %v2489, -inf
      %v2522 = vsel %vm1842, %v2490, -inf
      %v2523 = vsel %vm1843, %v2491, -inf
      %v2524 = vsel %vm1844, %v2492, -inf
      %v2525 = vsel %vm1845, %v2493, -inf
      %v2526 = vsel %vm1846, %v2494, -inf
      %v2527 = vsel %vm1847, %v2495, -inf
      %v2528 = vsel %vm1848, %v2496, -inf
      %v2529 = vsel %vm1849, %v2497, -inf
      %v2530 = vsel %vm1850, %v2498, -inf
      %v2531 = vsel %vm1851, %v2499, -inf
      %v2532 = vsel %vm1852, %v2500, -inf
      %v2533 = vsel %vm1853, %v2501, -inf
      %v2534 = vsel %vm1854, %v2502, -inf
      %v2535 = vsel %vm1855, %v2503, -inf
      %v2536 = vsel %vm1856, %v2504, -inf
      %v2537 = vmax.f32 %v2441, %v2505
      %v2538 = vmax.f32 %v2442, %v2506
      %v2539 = vmax.f32 %v2443, %v2507
      %v2540 = vmax.f32 %v2444, %v2508
      %v2541 = vmax.f32 %v2445, %v2509
      %v2542 = vmax.f32 %v2446, %v2510
      %v2543 = vmax.f32 %v2447, %v2511
      %v2544 = vmax.f32 %v2448, %v2512
      %v2545 = vmax.f32 %v2449, %v2513
      %v2546 = vmax.f32 %v2450, %v2514
      %v2547 = vmax.f32 %v2451, %v2515
      %v2548 = vmax.f32 %v2452, %v2516
      %v2549 = vmax.f32 %v2453, %v2517
      %v2550 = vmax.f32 %v2454, %v2518
      %v2551 = vmax.f32 %v2455, %v2519
      %v2552 = vmax.f32 %v2456, %v2520
      %v2553 = vmax.f32 %v2457, %v2521
      %v2554 = vmax.f32 %v2458, %v2522
      %v2555 = vmax.f32 %v2459, %v2523
      %v2556 = vmax.f32 %v2460, %v2524
      %v2557 = vmax.f32 %v2461, %v2525
      %v2558 = vmax.f32 %v2462, %v2526
      %v2559 = vmax.f32 %v2463, %v2527
      %v2560 = vmax.f32 %v2464, %v2528
      %v2561 = vmax.f32 %v2465, %v2529
      %v2562 = vmax.f32 %v2466, %v2530
      %v2563 = vmax.f32 %v2467, %v2531
      %v2564 = vmax.f32 %v2468, %v2532
      %v2565 = vmax.f32 %v2469, %v2533
      %v2566 = vmax.f32 %v2470, %v2534
      %v2567 = vmax.f32 %v2471, %v2535
      %v2568 = vmax.f32 %v2472, %v2536
      %v2569 = vld [vmem:[#allocation2 + $0x2e] sm:$0xff]
      %v2570 = vld [vmem:[#allocation2 + $0x36] sm:$0xff]
      %v2571 = vld [vmem:[#allocation2 + $0x3e] sm:$0xff]
      %v2572 = vld [vmem:[#allocation2 + $0x46] sm:$0xff]
      %v2573 = vld [vmem:[#allocation2 + $0x4e] sm:$0xff]
      %v2574 = vld [vmem:[#allocation2 + $0x56] sm:$0xff]
      %v2575 = vld [vmem:[#allocation2 + $0x5e] sm:$0xff]
      %v2576 = vld [vmem:[#allocation2 + $0x66] sm:$0xff]
      %v2577 = vld [vmem:[#allocation2 + $0x6e] sm:$0xff]
      %v2578 = vld [vmem:[#allocation2 + $0x76] sm:$0xff]
      %v2579 = vld [vmem:[#allocation2 + $0x7e] sm:$0xff]
      %v2580 = vld [vmem:[#allocation2 + $0x86] sm:$0xff]
      %v2581 = vld [vmem:[#allocation2 + $0x8e] sm:$0xff]
      %v2582 = vld [vmem:[#allocation2 + $0x96] sm:$0xff]
      %v2583 = vld [vmem:[#allocation2 + $0x9e] sm:$0xff]
      %v2584 = vld [vmem:[#allocation2 + $0xa6] sm:$0xff]
      %v2585 = vld [vmem:[#allocation2 + $0xae] sm:$0xff]
      %v2586 = vld [vmem:[#allocation2 + $0xb6] sm:$0xff]
      %v2587 = vld [vmem:[#allocation2 + $0xbe] sm:$0xff]
      %v2588 = vld [vmem:[#allocation2 + $0xc6] sm:$0xff]
      %v2589 = vld [vmem:[#allocation2 + $0xce] sm:$0xff]
      %v2590 = vld [vmem:[#allocation2 + $0xd6] sm:$0xff]
      %v2591 = vld [vmem:[#allocation2 + $0xde] sm:$0xff]
      %v2592 = vld [vmem:[#allocation2 + $0xe6] sm:$0xff]
      %v2593 = vld [vmem:[#allocation2 + $0xee] sm:$0xff]
      %v2594 = vld [vmem:[#allocation2 + $0xf6] sm:$0xff]
      %v2595 = vld [vmem:[#allocation2 + $0xfe] sm:$0xff]
      %v2596 = vld [vmem:[#allocation2 + $0x106] sm:$0xff]
      %v2597 = vld [vmem:[#allocation2 + $0x10e] sm:$0xff]
      %v2598 = vld [vmem:[#allocation2 + $0x116] sm:$0xff]
      %v2599 = vld [vmem:[#allocation2 + $0x11e] sm:$0xff]
      %v2600 = vld [vmem:[#allocation2 + $0x126] sm:$0xff]
      %v2601 = vsel %vm1953, %v2569, -inf
      %v2602 = vsel %vm1954, %v2570, -inf
      %v2603 = vsel %vm1955, %v2571, -inf
      %v2604 = vsel %vm1956, %v2572, -inf
      %v2605 = vsel %vm1957, %v2573, -inf
      %v2606 = vsel %vm1958, %v2574, -inf
      %v2607 = vsel %vm1959, %v2575, -inf
      %v2608 = vsel %vm1960, %v2576, -inf
      %v2609 = vsel %vm1961, %v2577, -inf
      %v2610 = vsel %vm1962, %v2578, -inf
      %v2611 = vsel %vm1963, %v2579, -inf
      %v2612 = vsel %vm1964, %v2580, -inf
      %v2613 = vsel %vm1965, %v2581, -inf
      %v2614 = vsel %vm1966, %v2582, -inf
      %v2615 = vsel %vm1967, %v2583, -inf
      %v2616 = vsel %vm1968, %v2584, -inf
      %v2617 = vsel %vm1969, %v2585, -inf
      %v2618 = vsel %vm1970, %v2586, -inf
      %v2619 = vsel %vm1971, %v2587, -inf
      %v2620 = vsel %vm1972, %v2588, -inf
      %v2621 = vsel %vm1973, %v2589, -inf
      %v2622 = vsel %vm1974, %v2590, -inf
      %v2623 = vsel %vm1975, %v2591, -inf
      %v2624 = vsel %vm1976, %v2592, -inf
      %v2625 = vsel %vm1977, %v2593, -inf
      %v2626 = vsel %vm1978, %v2594, -inf
      %v2627 = vsel %vm1979, %v2595, -inf
      %v2628 = vsel %vm1980, %v2596, -inf
      %v2629 = vsel %vm1981, %v2597, -inf
      %v2630 = vsel %vm1982, %v2598, -inf
      %v2631 = vsel %vm1983, %v2599, -inf
      %v2632 = vsel %vm1984, %v2600, -inf
      %v2633 = vmax.f32 %v2537, %v2601
      %v2634 = vmax.f32 %v2538, %v2602
      %v2635 = vmax.f32 %v2539, %v2603
      %v2636 = vmax.f32 %v2540, %v2604
      %v2637 = vmax.f32 %v2541, %v2605
      %v2638 = vmax.f32 %v2542, %v2606
      %v2639 = vmax.f32 %v2543, %v2607
      %v2640 = vmax.f32 %v2544, %v2608
      %v2641 = vmax.f32 %v2545, %v2609
      %v2642 = vmax.f32 %v2546, %v2610
      %v2643 = vmax.f32 %v2547, %v2611
      %v2644 = vmax.f32 %v2548, %v2612
      %v2645 = vmax.f32 %v2549, %v2613
      %v2646 = vmax.f32 %v2550, %v2614
      %v2647 = vmax.f32 %v2551, %v2615
      %v2648 = vmax.f32 %v2552, %v2616
      %v2649 = vmax.f32 %v2553, %v2617
      %v2650 = vmax.f32 %v2554, %v2618
      %v2651 = vmax.f32 %v2555, %v2619
      %v2652 = vmax.f32 %v2556, %v2620
      %v2653 = vmax.f32 %v2557, %v2621
      %v2654 = vmax.f32 %v2558, %v2622
      %v2655 = vmax.f32 %v2559, %v2623
      %v2656 = vmax.f32 %v2560, %v2624
      %v2657 = vmax.f32 %v2561, %v2625
      %v2658 = vmax.f32 %v2562, %v2626
      %v2659 = vmax.f32 %v2563, %v2627
      %v2660 = vmax.f32 %v2564, %v2628
      %v2661 = vmax.f32 %v2565, %v2629
      %v2662 = vmax.f32 %v2566, %v2630
      %v2663 = vmax.f32 %v2567, %v2631
      %v2664 = vmax.f32 %v2568, %v2632
      %v2665 = vld [vmem:[#allocation2 + $0x33] sm:$0xff]
      %v2666 = vld [vmem:[#allocation2 + $0x3b] sm:$0xff]
      %v2667 = vld [vmem:[#allocation2 + $0x43] sm:$0xff]
      %v2668 = vld [vmem:[#allocation2 + $0x4b] sm:$0xff]
      %v2669 = vld [vmem:[#allocation2 + $0x53] sm:$0xff]
      %v2670 = vld [vmem:[#allocation2 + $0x5b] sm:$0xff]
      %v2671 = vld [vmem:[#allocation2 + $0x63] sm:$0xff]
      %v2672 = vld [vmem:[#allocation2 + $0x6b] sm:$0xff]
      %v2673 = vld [vmem:[#allocation2 + $0x73] sm:$0xff]
      %v2674 = vld [vmem:[#allocation2 + $0x7b] sm:$0xff]
      %v2675 = vld [vmem:[#allocation2 + $0x83] sm:$0xff]
      %v2676 = vld [vmem:[#allocation2 + $0x8b] sm:$0xff]
      %v2677 = vld [vmem:[#allocation2 + $0x93] sm:$0xff]
      %v2678 = vld [vmem:[#allocation2 + $0x9b] sm:$0xff]
      %v2679 = vld [vmem:[#allocation2 + $0xa3] sm:$0xff]
      %v2680 = vld [vmem:[#allocation2 + $0xab] sm:$0xff]
      %v2681 = vld [vmem:[#allocation2 + $0xb3] sm:$0xff]
      %v2682 = vld [vmem:[#allocation2 + $0xbb] sm:$0xff]
      %v2683 = vld [vmem:[#allocation2 + $0xc3] sm:$0xff]
      %v2684 = vld [vmem:[#allocation2 + $0xcb] sm:$0xff]
      %v2685 = vld [vmem:[#allocation2 + $0xd3] sm:$0xff]
      %v2686 = vld [vmem:[#allocation2 + $0xdb] sm:$0xff]
      %v2687 = vld [vmem:[#allocation2 + $0xe3] sm:$0xff]
      %v2688 = vld [vmem:[#allocation2 + $0xeb] sm:$0xff]
      %v2689 = vld [vmem:[#allocation2 + $0xf3] sm:$0xff]
      %v2690 = vld [vmem:[#allocation2 + $0xfb] sm:$0xff]
      %v2691 = vld [vmem:[#allocation2 + $0x103] sm:$0xff]
      %v2692 = vld [vmem:[#allocation2 + $0x10b] sm:$0xff]
      %v2693 = vld [vmem:[#allocation2 + $0x113] sm:$0xff]
      %v2694 = vld [vmem:[#allocation2 + $0x11b] sm:$0xff]
      %v2695 = vld [vmem:[#allocation2 + $0x123] sm:$0xff]
      %v2696 = vld [vmem:[#allocation2 + $0x12b] sm:$0xff]
      %vm2697 = vcmp.lt.s32.totalorder %v624, 13
      %vm2698 = vcmp.lt.s32.totalorder %v625, 13
      %vm2699 = vcmp.lt.s32.totalorder %v626, 13
      %vm2700 = vcmp.lt.s32.totalorder %v627, 13
      %vm2701 = vcmp.lt.s32.totalorder %v628, 13
      %vm2702 = vcmp.lt.s32.totalorder %v629, 13
      %vm2703 = vcmp.lt.s32.totalorder %v630, 13
      %vm2704 = vcmp.lt.s32.totalorder %v631, 13
      %vm2705 = vcmp.lt.s32.totalorder %v632, 13
      %vm2706 = vcmp.lt.s32.totalorder %v633, 13
      %vm2707 = vcmp.lt.s32.totalorder %v634, 13
      %vm2708 = vcmp.lt.s32.totalorder %v635, 13
      %vm2709 = vcmp.lt.s32.totalorder %v636, 13
      %vm2710 = vcmp.lt.s32.totalorder %v637, 13
      %vm2711 = vcmp.lt.s32.totalorder %v638, 13
      %vm2712 = vcmp.lt.s32.totalorder %v639, 13
      %vm2713 = vcmp.lt.s32.totalorder %v640, 13
      %vm2714 = vcmp.lt.s32.totalorder %v641, 13
      %vm2715 = vcmp.lt.s32.totalorder %v642, 13
      %vm2716 = vcmp.lt.s32.totalorder %v643, 13
      %vm2717 = vcmp.lt.s32.totalorder %v644, 13
      %vm2718 = vcmp.lt.s32.totalorder %v645, 13
      %vm2719 = vcmp.lt.s32.totalorder %v646, 13
      %vm2720 = vcmp.lt.s32.totalorder %v647, 13
      %vm2721 = vcmp.lt.s32.totalorder %v648, 13
      %vm2722 = vcmp.lt.s32.totalorder %v649, 13
      %vm2723 = vcmp.lt.s32.totalorder %v650, 13
      %vm2724 = vcmp.lt.s32.totalorder %v651, 13
      %vm2725 = vcmp.lt.s32.totalorder %v652, 13
      %vm2726 = vcmp.lt.s32.totalorder %v653, 13
      %vm2727 = vcmp.lt.s32.totalorder %v654, 13
      %vm2728 = vcmp.lt.s32.totalorder %v655, 13
      %v2729 = vsel %vm2697, %v2665, -inf
      %v2730 = vsel %vm2698, %v2666, -inf
      %v2731 = vsel %vm2699, %v2667, -inf
      %v2732 = vsel %vm2700, %v2668, -inf
      %v2733 = vsel %vm2701, %v2669, -inf
      %v2734 = vsel %vm2702, %v2670, -inf
      %v2735 = vsel %vm2703, %v2671, -inf
      %v2736 = vsel %vm2704, %v2672, -inf
      %v2737 = vsel %vm2705, %v2673, -inf
      %v2738 = vsel %vm2706, %v2674, -inf
      %v2739 = vsel %vm2707, %v2675, -inf
      %v2740 = vsel %vm2708, %v2676, -inf
      %v2741 = vsel %vm2709, %v2677, -inf
      %v2742 = vsel %vm2710, %v2678, -inf
      %v2743 = vsel %vm2711, %v2679, -inf
      %v2744 = vsel %vm2712, %v2680, -inf
      %v2745 = vsel %vm2713, %v2681, -inf
      %v2746 = vsel %vm2714, %v2682, -inf
      %v2747 = vsel %vm2715, %v2683, -inf
      %v2748 = vsel %vm2716, %v2684, -inf
      %v2749 = vsel %vm2717, %v2685, -inf
      %v2750 = vsel %vm2718, %v2686, -inf
      %v2751 = vsel %vm2719, %v2687, -inf
      %v2752 = vsel %vm2720, %v2688, -inf
      %v2753 = vsel %vm2721, %v2689, -inf
      %v2754 = vsel %vm2722, %v2690, -inf
      %v2755 = vsel %vm2723, %v2691, -inf
      %v2756 = vsel %vm2724, %v2692, -inf
      %v2757 = vsel %vm2725, %v2693, -inf
      %v2758 = vsel %vm2726, %v2694, -inf
      %v2759 = vsel %vm2727, %v2695, -inf
      %v2760 = vsel %vm2728, %v2696, -inf
      %v2761 = vmax.f32 %v2633, %v2729
      %v2762 = vmax.f32 %v2634, %v2730
      %v2763 = vmax.f32 %v2635, %v2731
      %v2764 = vmax.f32 %v2636, %v2732
      %v2765 = vmax.f32 %v2637, %v2733
      %v2766 = vmax.f32 %v2638, %v2734
      %v2767 = vmax.f32 %v2639, %v2735
      %v2768 = vmax.f32 %v2640, %v2736
      %v2769 = vmax.f32 %v2641, %v2737
      %v2770 = vmax.f32 %v2642, %v2738
      %v2771 = vmax.f32 %v2643, %v2739
      %v2772 = vmax.f32 %v2644, %v2740
      %v2773 = vmax.f32 %v2645, %v2741
      %v2774 = vmax.f32 %v2646, %v2742
      %v2775 = vmax.f32 %v2647, %v2743
      %v2776 = vmax.f32 %v2648, %v2744
      %v2777 = vmax.f32 %v2649, %v2745
      %v2778 = vmax.f32 %v2650, %v2746
      %v2779 = vmax.f32 %v2651, %v2747
      %v2780 = vmax.f32 %v2652, %v2748
      %v2781 = vmax.f32 %v2653, %v2749
      %v2782 = vmax.f32 %v2654, %v2750
      %v2783 = vmax.f32 %v2655, %v2751
      %v2784 = vmax.f32 %v2656, %v2752
      %v2785 = vmax.f32 %v2657, %v2753
      %v2786 = vmax.f32 %v2658, %v2754
      %v2787 = vmax.f32 %v2659, %v2755
      %v2788 = vmax.f32 %v2660, %v2756
      %v2789 = vmax.f32 %v2661, %v2757
      %v2790 = vmax.f32 %v2662, %v2758
      %v2791 = vmax.f32 %v2663, %v2759
      %v2792 = vmax.f32 %v2664, %v2760
      %v2793 = vld [vmem:[#allocation2 + $0x2d] sm:$0xff]
      %v2794 = vld [vmem:[#allocation2 + $0x35] sm:$0xff]
      %v2795 = vld [vmem:[#allocation2 + $0x3d] sm:$0xff]
      %v2796 = vld [vmem:[#allocation2 + $0x45] sm:$0xff]
      %v2797 = vld [vmem:[#allocation2 + $0x4d] sm:$0xff]
      %v2798 = vld [vmem:[#allocation2 + $0x55] sm:$0xff]
      %v2799 = vld [vmem:[#allocation2 + $0x5d] sm:$0xff]
      %v2800 = vld [vmem:[#allocation2 + $0x65] sm:$0xff]
      %v2801 = vld [vmem:[#allocation2 + $0x6d] sm:$0xff]
      %v2802 = vld [vmem:[#allocation2 + $0x75] sm:$0xff]
      %v2803 = vld [vmem:[#allocation2 + $0x7d] sm:$0xff]
      %v2804 = vld [vmem:[#allocation2 + $0x85] sm:$0xff]
      %v2805 = vld [vmem:[#allocation2 + $0x8d] sm:$0xff]
      %v2806 = vld [vmem:[#allocation2 + $0x95] sm:$0xff]
      %v2807 = vld [vmem:[#allocation2 + $0x9d] sm:$0xff]
      %v2808 = vld [vmem:[#allocation2 + $0xa5] sm:$0xff]
      %v2809 = vld [vmem:[#allocation2 + $0xad] sm:$0xff]
      %v2810 = vld [vmem:[#allocation2 + $0xb5] sm:$0xff]
      %v2811 = vld [vmem:[#allocation2 + $0xbd] sm:$0xff]
      %v2812 = vld [vmem:[#allocation2 + $0xc5] sm:$0xff]
      %v2813 = vld [vmem:[#allocation2 + $0xcd] sm:$0xff]
      %v2814 = vld [vmem:[#allocation2 + $0xd5] sm:$0xff]
      %v2815 = vld [vmem:[#allocation2 + $0xdd] sm:$0xff]
      %v2816 = vld [vmem:[#allocation2 + $0xe5] sm:$0xff]
      %v2817 = vld [vmem:[#allocation2 + $0xed] sm:$0xff]
      %v2818 = vld [vmem:[#allocation2 + $0xf5] sm:$0xff]
      %v2819 = vld [vmem:[#allocation2 + $0xfd] sm:$0xff]
      %v2820 = vld [vmem:[#allocation2 + $0x105] sm:$0xff]
      %v2821 = vld [vmem:[#allocation2 + $0x10d] sm:$0xff]
      %v2822 = vld [vmem:[#allocation2 + $0x115] sm:$0xff]
      %v2823 = vld [vmem:[#allocation2 + $0x11d] sm:$0xff]
      %v2824 = vld [vmem:[#allocation2 + $0x125] sm:$0xff]
      %vm2825 = vcmp.ge.s32.totalorder %v624, 3
      %vm2826 = vcmp.ge.s32.totalorder %v625, 3
      %vm2827 = vcmp.ge.s32.totalorder %v626, 3
      %vm2828 = vcmp.ge.s32.totalorder %v627, 3
      %vm2829 = vcmp.ge.s32.totalorder %v628, 3
      %vm2830 = vcmp.ge.s32.totalorder %v629, 3
      %vm2831 = vcmp.ge.s32.totalorder %v630, 3
      %vm2832 = vcmp.ge.s32.totalorder %v631, 3
      %vm2833 = vcmp.ge.s32.totalorder %v632, 3
      %vm2834 = vcmp.ge.s32.totalorder %v633, 3
      %vm2835 = vcmp.ge.s32.totalorder %v634, 3
      %vm2836 = vcmp.ge.s32.totalorder %v635, 3
      %vm2837 = vcmp.ge.s32.totalorder %v636, 3
      %vm2838 = vcmp.ge.s32.totalorder %v637, 3
      %vm2839 = vcmp.ge.s32.totalorder %v638, 3
      %vm2840 = vcmp.ge.s32.totalorder %v639, 3
      %vm2841 = vcmp.ge.s32.totalorder %v640, 3
      %vm2842 = vcmp.ge.s32.totalorder %v641, 3
      %vm2843 = vcmp.ge.s32.totalorder %v642, 3
      %vm2844 = vcmp.ge.s32.totalorder %v643, 3
      %vm2845 = vcmp.ge.s32.totalorder %v644, 3
      %vm2846 = vcmp.ge.s32.totalorder %v645, 3
      %vm2847 = vcmp.ge.s32.totalorder %v646, 3
      %vm2848 = vcmp.ge.s32.totalorder %v647, 3
      %vm2849 = vcmp.ge.s32.totalorder %v648, 3
      %vm2850 = vcmp.ge.s32.totalorder %v649, 3
      %vm2851 = vcmp.ge.s32.totalorder %v650, 3
      %vm2852 = vcmp.ge.s32.totalorder %v651, 3
      %vm2853 = vcmp.ge.s32.totalorder %v652, 3
      %vm2854 = vcmp.ge.s32.totalorder %v653, 3
      %vm2855 = vcmp.ge.s32.totalorder %v654, 3
      %vm2856 = vcmp.ge.s32.totalorder %v655, 3
      %v2857 = vsel %vm2825, %v2793, -inf
      %v2858 = vsel %vm2826, %v2794, -inf
      %v2859 = vsel %vm2827, %v2795, -inf
      %v2860 = vsel %vm2828, %v2796, -inf
      %v2861 = vsel %vm2829, %v2797, -inf
      %v2862 = vsel %vm2830, %v2798, -inf
      %v2863 = vsel %vm2831, %v2799, -inf
      %v2864 = vsel %vm2832, %v2800, -inf
      %v2865 = vsel %vm2833, %v2801, -inf
      %v2866 = vsel %vm2834, %v2802, -inf
      %v2867 = vsel %vm2835, %v2803, -inf
      %v2868 = vsel %vm2836, %v2804, -inf
      %v2869 = vsel %vm2837, %v2805, -inf
      %v2870 = vsel %vm2838, %v2806, -inf
      %v2871 = vsel %vm2839, %v2807, -inf
      %v2872 = vsel %vm2840, %v2808, -inf
      %v2873 = vsel %vm2841, %v2809, -inf
      %v2874 = vsel %vm2842, %v2810, -inf
      %v2875 = vsel %vm2843, %v2811, -inf
      %v2876 = vsel %vm2844, %v2812, -inf
      %v2877 = vsel %vm2845, %v2813, -inf
      %v2878 = vsel %vm2846, %v2814, -inf
      %v2879 = vsel %vm2847, %v2815, -inf
      %v2880 = vsel %vm2848, %v2816, -inf
      %v2881 = vsel %vm2849, %v2817, -inf
      %v2882 = vsel %vm2850, %v2818, -inf
      %v2883 = vsel %vm2851, %v2819, -inf
      %v2884 = vsel %vm2852, %v2820, -inf
      %v2885 = vsel %vm2853, %v2821, -inf
      %v2886 = vsel %vm2854, %v2822, -inf
      %v2887 = vsel %vm2855, %v2823, -inf
      %v2888 = vsel %vm2856, %v2824, -inf
      %v2889 = vmax.f32 %v2761, %v2857
      %v2890 = vmax.f32 %v2762, %v2858
      %v2891 = vmax.f32 %v2763, %v2859
      %v2892 = vmax.f32 %v2764, %v2860
      %v2893 = vmax.f32 %v2765, %v2861
      %v2894 = vmax.f32 %v2766, %v2862
      %v2895 = vmax.f32 %v2767, %v2863
      %v2896 = vmax.f32 %v2768, %v2864
      %v2897 = vmax.f32 %v2769, %v2865
      %v2898 = vmax.f32 %v2770, %v2866
      %v2899 = vmax.f32 %v2771, %v2867
      %v2900 = vmax.f32 %v2772, %v2868
      %v2901 = vmax.f32 %v2773, %v2869
      %v2902 = vmax.f32 %v2774, %v2870
      %v2903 = vmax.f32 %v2775, %v2871
      %v2904 = vmax.f32 %v2776, %v2872
      %v2905 = vmax.f32 %v2777, %v2873
      %v2906 = vmax.f32 %v2778, %v2874
      %v2907 = vmax.f32 %v2779, %v2875
      %v2908 = vmax.f32 %v2780, %v2876
      %v2909 = vmax.f32 %v2781, %v2877
      %v2910 = vmax.f32 %v2782, %v2878
      %v2911 = vmax.f32 %v2783, %v2879
      %v2912 = vmax.f32 %v2784, %v2880
      %v2913 = vmax.f32 %v2785, %v2881
      %v2914 = vmax.f32 %v2786, %v2882
      %v2915 = vmax.f32 %v2787, %v2883
      %v2916 = vmax.f32 %v2788, %v2884
      %v2917 = vmax.f32 %v2789, %v2885
      %v2918 = vmax.f32 %v2790, %v2886
      %v2919 = vmax.f32 %v2791, %v2887
      %v2920 = vmax.f32 %v2792, %v2888
      %2921 = vst.msk [vmem:[#allocation2 + $0x30] sm:$0xff] %vm226, %v2889
      %2922 = vst.msk [vmem:[#allocation2 + $0x38] sm:$0xff] %vm226, %v2890
      %2923 = vst.msk [vmem:[#allocation2 + $0x40] sm:$0xff] %vm226, %v2891
      %2924 = vst.msk [vmem:[#allocation2 + $0x48] sm:$0xff] %vm226, %v2892
      %2925 = vst.msk [vmem:[#allocation2 + $0x50] sm:$0xff] %vm226, %v2893
      %2926 = vst.msk [vmem:[#allocation2 + $0x58] sm:$0xff] %vm226, %v2894
      %2927 = vst.msk [vmem:[#allocation2 + $0x60] sm:$0xff] %vm226, %v2895
      %2928 = vst.msk [vmem:[#allocation2 + $0x68] sm:$0xff] %vm226, %v2896
      %2929 = vst.msk [vmem:[#allocation2 + $0x70] sm:$0xff] %vm226, %v2897
      %2930 = vst.msk [vmem:[#allocation2 + $0x78] sm:$0xff] %vm226, %v2898
      %2931 = vst.msk [vmem:[#allocation2 + $0x80] sm:$0xff] %vm226, %v2899
      %2932 = vst.msk [vmem:[#allocation2 + $0x88] sm:$0xff] %vm226, %v2900
      %2933 = vst.msk [vmem:[#allocation2 + $0x90] sm:$0xff] %vm226, %v2901
      %2934 = vst.msk [vmem:[#allocation2 + $0x98] sm:$0xff] %vm226, %v2902
      %2935 = vst.msk [vmem:[#allocation2 + $0xa0] sm:$0xff] %vm226, %v2903
      %2936 = vst.msk [vmem:[#allocation2 + $0xa8] sm:$0xff] %vm226, %v2904
      %2937 = vst.msk [vmem:[#allocation2 + $0xb0] sm:$0xff] %vm226, %v2905
      %2938 = vst.msk [vmem:[#allocation2 + $0xb8] sm:$0xff] %vm226, %v2906
      %2939 = vst.msk [vmem:[#allocation2 + $0xc0] sm:$0xff] %vm226, %v2907
      %2940 = vst.msk [vmem:[#allocation2 + $0xc8] sm:$0xff] %vm226, %v2908
      %2941 = vst.msk [vmem:[#allocation2 + $0xd0] sm:$0xff] %vm226, %v2909
      %2942 = vst.msk [vmem:[#allocation2 + $0xd8] sm:$0xff] %vm226, %v2910
      %2943 = vst.msk [vmem:[#allocation2 + $0xe0] sm:$0xff] %vm226, %v2911
      %2944 = vst.msk [vmem:[#allocation2 + $0xe8] sm:$0xff] %vm226, %v2912
      %2945 = vst.msk [vmem:[#allocation2 + $0xf0] sm:$0xff] %vm226, %v2913
      %2946 = vst.msk [vmem:[#allocation2 + $0xf8] sm:$0xff] %vm226, %v2914
      %2947 = vst.msk [vmem:[#allocation2 + $0x100] sm:$0xff] %vm226, %v2915
      %2948 = vst.msk [vmem:[#allocation2 + $0x108] sm:$0xff] %vm226, %v2916
      %2949 = vst.msk [vmem:[#allocation2 + $0x110] sm:$0xff] %vm226, %v2917
      %2950 = vst.msk [vmem:[#allocation2 + $0x118] sm:$0xff] %vm226, %v2918
      %2951 = vst.msk [vmem:[#allocation2 + $0x120] sm:$0xff] %vm226, %v2919
      %2952 = vst.msk [vmem:[#allocation2 + $0x128] sm:$0xff] %vm226, %v2920
      %v2953 = vld [vmem:[#allocation2 + $0x40] sm:$0xff]
      %v2954 = vld [vmem:[#allocation2 + $0x48] sm:$0xff]
      %v2955 = vld [vmem:[#allocation2 + $0x50] sm:$0xff]
      %v2956 = vld [vmem:[#allocation2 + $0x58] sm:$0xff]
      %v2957 = vld [vmem:[#allocation2 + $0x60] sm:$0xff]
      %v2958 = vld [vmem:[#allocation2 + $0x68] sm:$0xff]
      %v2959 = vld [vmem:[#allocation2 + $0x70] sm:$0xff]
      %v2960 = vld [vmem:[#allocation2 + $0x78] sm:$0xff]
      %v2961 = vld [vmem:[#allocation2 + $0x80] sm:$0xff]
      %v2962 = vld [vmem:[#allocation2 + $0x88] sm:$0xff]
      %v2963 = vld [vmem:[#allocation2 + $0x90] sm:$0xff]
      %v2964 = vld [vmem:[#allocation2 + $0x98] sm:$0xff]
      %v2965 = vld [vmem:[#allocation2 + $0xa0] sm:$0xff]
      %v2966 = vld [vmem:[#allocation2 + $0xa8] sm:$0xff]
      %v2967 = vld [vmem:[#allocation2 + $0xb0] sm:$0xff]
      %v2968 = vld [vmem:[#allocation2 + $0xb8] sm:$0xff]
      %v2969 = vld [vmem:[#allocation2 + $0xc0] sm:$0xff]
      %v2970 = vld [vmem:[#allocation2 + $0xc8] sm:$0xff]
      %v2971 = vld [vmem:[#allocation2 + $0xd0] sm:$0xff]
      %v2972 = vld [vmem:[#allocation2 + $0xd8] sm:$0xff]
      %v2973 = vld [vmem:[#allocation2 + $0xe0] sm:$0xff]
      %v2974 = vld [vmem:[#allocation2 + $0xe8] sm:$0xff]
      %v2975 = vld [vmem:[#allocation2 + $0xf0] sm:$0xff]
      %v2976 = vld [vmem:[#allocation2 + $0xf8] sm:$0xff]
      %v2977 = vld [vmem:[#allocation2 + $0x100] sm:$0xff]
      %v2978 = vld [vmem:[#allocation2 + $0x108] sm:$0xff]
      %v2979 = vld [vmem:[#allocation2 + $0x110] sm:$0xff]
      %v2980 = vld [vmem:[#allocation2 + $0x118] sm:$0xff]
      %v2981 = vld [vmem:[#allocation2 + $0x120] sm:$0xff]
      %v2982 = vld [vmem:[#allocation2 + $0x128] sm:$0xff]
      %v2983 = vld [vmem:[#allocation2 + $0x130] sm:$0xff]
      %v2984 = vld [vmem:[#allocation2 + $0x138] sm:$0xff]
      %v2985 = vmax.f32 %v2889, %v2953
      %v2986 = vmax.f32 %v2890, %v2954
      %v2987 = vmax.f32 %v2891, %v2955
      %v2988 = vmax.f32 %v2892, %v2956
      %v2989 = vmax.f32 %v2893, %v2957
      %v2990 = vmax.f32 %v2894, %v2958
      %v2991 = vmax.f32 %v2895, %v2959
      %v2992 = vmax.f32 %v2896, %v2960
      %v2993 = vmax.f32 %v2897, %v2961
      %v2994 = vmax.f32 %v2898, %v2962
      %v2995 = vmax.f32 %v2899, %v2963
      %v2996 = vmax.f32 %v2900, %v2964
      %v2997 = vmax.f32 %v2901, %v2965
      %v2998 = vmax.f32 %v2902, %v2966
      %v2999 = vmax.f32 %v2903, %v2967
      %v3000 = vmax.f32 %v2904, %v2968
      %v3001 = vmax.f32 %v2905, %v2969
      %v3002 = vmax.f32 %v2906, %v2970
      %v3003 = vmax.f32 %v2907, %v2971
      %v3004 = vmax.f32 %v2908, %v2972
      %v3005 = vmax.f32 %v2909, %v2973
      %v3006 = vmax.f32 %v2910, %v2974
      %v3007 = vmax.f32 %v2911, %v2975
      %v3008 = vmax.f32 %v2912, %v2976
      %v3009 = vmax.f32 %v2913, %v2977
      %v3010 = vmax.f32 %v2914, %v2978
      %v3011 = vmax.f32 %v2915, %v2979
      %v3012 = vmax.f32 %v2916, %v2980
      %v3013 = vmax.f32 %v2917, %v2981
      %v3014 = vmax.f32 %v2918, %v2982
      %v3015 = vmax.f32 %v2919, %v2983
      %v3016 = vmax.f32 %v2920, %v2984
      %v3017 = vld [vmem:[#allocation2 + $0x20] sm:$0xff]
      %v3018 = vld [vmem:[#allocation2 + $0x28] sm:$0xff]
      %v3019 = vld [vmem:[#allocation2 + $0x30] sm:$0xff]
      %v3020 = vld [vmem:[#allocation2 + $0x38] sm:$0xff]
      %v3021 = vmax.f32 %v2985, %v3017
      %v3022 = vmax.f32 %v2986, %v3018
      %v3023 = vmax.f32 %v2987, %v3019
      %v3024 = vmax.f32 %v2988, %v3020
      %v3025 = vmax.f32 %v2989, %v2953
      %v3026 = vmax.f32 %v2990, %v2954
      %v3027 = vmax.f32 %v2991, %v2955
      %v3028 = vmax.f32 %v2992, %v2956
      %v3029 = vmax.f32 %v2993, %v2957
      %v3030 = vmax.f32 %v2994, %v2958
      %v3031 = vmax.f32 %v2995, %v2959
      %v3032 = vmax.f32 %v2996, %v2960
      %v3033 = vmax.f32 %v2997, %v2961
      %v3034 = vmax.f32 %v2998, %v2962
      %v3035 = vmax.f32 %v2999, %v2963
      %v3036 = vmax.f32 %v3000, %v2964
      %v3037 = vmax.f32 %v3001, %v2965
      %v3038 = vmax.f32 %v3002, %v2966
      %v3039 = vmax.f32 %v3003, %v2967
      %v3040 = vmax.f32 %v3004, %v2968
      %v3041 = vmax.f32 %v3005, %v2969
      %v3042 = vmax.f32 %v3006, %v2970
      %v3043 = vmax.f32 %v3007, %v2971
      %v3044 = vmax.f32 %v3008, %v2972
      %v3045 = vmax.f32 %v3009, %v2973
      %v3046 = vmax.f32 %v3010, %v2974
      %v3047 = vmax.f32 %v3011, %v2975
      %v3048 = vmax.f32 %v3012, %v2976
      %v3049 = vmax.f32 %v3013, %v2977
      %v3050 = vmax.f32 %v3014, %v2978
      %v3051 = vmax.f32 %v3015, %v2979
      %v3052 = vmax.f32 %v3016, %v2980
      %v3053 = vld [vmem:[#allocation2 + $0x140] sm:$0xff]
      %v3054 = vld [vmem:[#allocation2 + $0x148] sm:$0xff]
      %v3055 = vmax.f32 %v3021, %v2955
      %v3056 = vmax.f32 %v3022, %v2956
      %v3057 = vmax.f32 %v3023, %v2957
      %v3058 = vmax.f32 %v3024, %v2958
      %v3059 = vmax.f32 %v3025, %v2959
      %v3060 = vmax.f32 %v3026, %v2960
      %v3061 = vmax.f32 %v3027, %v2961
      %v3062 = vmax.f32 %v3028, %v2962
      %v3063 = vmax.f32 %v3029, %v2963
      %v3064 = vmax.f32 %v3030, %v2964
      %v3065 = vmax.f32 %v3031, %v2965
      %v3066 = vmax.f32 %v3032, %v2966
      %v3067 = vmax.f32 %v3033, %v2967
      %v3068 = vmax.f32 %v3034, %v2968
      %v3069 = vmax.f32 %v3035, %v2969
      %v3070 = vmax.f32 %v3036, %v2970
      %v3071 = vmax.f32 %v3037, %v2971
      %v3072 = vmax.f32 %v3038, %v2972
      %v3073 = vmax.f32 %v3039, %v2973
      %v3074 = vmax.f32 %v3040, %v2974
      %v3075 = vmax.f32 %v3041, %v2975
      %v3076 = vmax.f32 %v3042, %v2976
      %v3077 = vmax.f32 %v3043, %v2977
      %v3078 = vmax.f32 %v3044, %v2978
      %v3079 = vmax.f32 %v3045, %v2979
      %v3080 = vmax.f32 %v3046, %v2980
      %v3081 = vmax.f32 %v3047, %v2981
      %v3082 = vmax.f32 %v3048, %v2982
      %v3083 = vmax.f32 %v3049, %v2983
      %v3084 = vmax.f32 %v3050, %v2984
      %v3085 = vmax.f32 %v3051, %v3053
      %v3086 = vmax.f32 %v3052, %v3054
      %v3087 = vld [vmem:[#allocation2 + $0x10] sm:$0xff]
      %v3088 = vld [vmem:[#allocation2 + $0x18] sm:$0xff]
      %v3089 = vmax.f32 %v3055, %v3087
      %v3090 = vmax.f32 %v3056, %v3088
      %v3091 = vmax.f32 %v3057, %v3017
      %v3092 = vmax.f32 %v3058, %v3018
      %v3093 = vmax.f32 %v3059, %v3019
      %v3094 = vmax.f32 %v3060, %v3020
      %v3095 = vmax.f32 %v3061, %v2953
      %v3096 = vmax.f32 %v3062, %v2954
      %v3097 = vmax.f32 %v3063, %v2955
      %v3098 = vmax.f32 %v3064, %v2956
      %v3099 = vmax.f32 %v3065, %v2957
      %v3100 = vmax.f32 %v3066, %v2958
      %v3101 = vmax.f32 %v3067, %v2959
      %v3102 = vmax.f32 %v3068, %v2960
      %v3103 = vmax.f32 %v3069, %v2961
      %v3104 = vmax.f32 %v3070, %v2962
      %v3105 = vmax.f32 %v3071, %v2963
      %v3106 = vmax.f32 %v3072, %v2964
      %v3107 = vmax.f32 %v3073, %v2965
      %v3108 = vmax.f32 %v3074, %v2966
      %v3109 = vmax.f32 %v3075, %v2967
      %v3110 = vmax.f32 %v3076, %v2968
      %v3111 = vmax.f32 %v3077, %v2969
      %v3112 = vmax.f32 %v3078, %v2970
      %v3113 = vmax.f32 %v3079, %v2971
      %v3114 = vmax.f32 %v3080, %v2972
      %v3115 = vmax.f32 %v3081, %v2973
      %v3116 = vmax.f32 %v3082, %v2974
      %v3117 = vmax.f32 %v3083, %v2975
      %v3118 = vmax.f32 %v3084, %v2976
      %v3119 = vmax.f32 %v3085, %v2977
      %v3120 = vmax.f32 %v3086, %v2978
      %v3121 = vld [vmem:[#allocation2 + $0x150] sm:$0xff]
      %v3122 = vld [vmem:[#allocation2 + $0x158] sm:$0xff]
      %v3123 = vmax.f32 %v3089, %v2957
      %v3124 = vmax.f32 %v3090, %v2958
      %v3125 = vmax.f32 %v3091, %v2959
      %v3126 = vmax.f32 %v3092, %v2960
      %v3127 = vmax.f32 %v3093, %v2961
      %v3128 = vmax.f32 %v3094, %v2962
      %v3129 = vmax.f32 %v3095, %v2963
      %v3130 = vmax.f32 %v3096, %v2964
      %v3131 = vmax.f32 %v3097, %v2965
      %v3132 = vmax.f32 %v3098, %v2966
      %v3133 = vmax.f32 %v3099, %v2967
      %v3134 = vmax.f32 %v3100, %v2968
      %v3135 = vmax.f32 %v3101, %v2969
      %v3136 = vmax.f32 %v3102, %v2970
      %v3137 = vmax.f32 %v3103, %v2971
      %v3138 = vmax.f32 %v3104, %v2972
      %v3139 = vmax.f32 %v3105, %v2973
      %v3140 = vmax.f32 %v3106, %v2974
      %v3141 = vmax.f32 %v3107, %v2975
      %v3142 = vmax.f32 %v3108, %v2976
      %v3143 = vmax.f32 %v3109, %v2977
      %v3144 = vmax.f32 %v3110, %v2978
      %v3145 = vmax.f32 %v3111, %v2979
      %v3146 = vmax.f32 %v3112, %v2980
      %v3147 = vmax.f32 %v3113, %v2981
      %v3148 = vmax.f32 %v3114, %v2982
      %v3149 = vmax.f32 %v3115, %v2983
      %v3150 = vmax.f32 %v3116, %v2984
      %v3151 = vmax.f32 %v3117, %v3053
      %v3152 = vmax.f32 %v3118, %v3054
      %v3153 = vmax.f32 %v3119, %v3121
      %v3154 = vmax.f32 %v3120, %v3122
      %v3155 = vld [vmem:[#allocation2] sm:$0xff]
      %v3156 = vld [vmem:[#allocation2 + $0x8] sm:$0xff]
      %v3157 = vmax.f32 %v3123, %v3155
      %v3158 = vmax.f32 %v3124, %v3156
      %v3159 = vmax.f32 %v3125, %v3087
      %v3160 = vmax.f32 %v3126, %v3088
      %v3161 = vmax.f32 %v3127, %v3017
      %v3162 = vmax.f32 %v3128, %v3018
      %v3163 = vmax.f32 %v3129, %v3019
      %v3164 = vmax.f32 %v3130, %v3020
      %v3165 = vmax.f32 %v3131, %v2953
      %v3166 = vmax.f32 %v3132, %v2954
      %v3167 = vmax.f32 %v3133, %v2955
      %v3168 = vmax.f32 %v3134, %v2956
      %v3169 = vmax.f32 %v3135, %v2957
      %v3170 = vmax.f32 %v3136, %v2958
      %v3171 = vmax.f32 %v3137, %v2959
      %v3172 = vmax.f32 %v3138, %v2960
      %v3173 = vmax.f32 %v3139, %v2961
      %v3174 = vmax.f32 %v3140, %v2962
      %v3175 = vmax.f32 %v3141, %v2963
      %v3176 = vmax.f32 %v3142, %v2964
      %v3177 = vmax.f32 %v3143, %v2965
      %v3178 = vmax.f32 %v3144, %v2966
      %v3179 = vmax.f32 %v3145, %v2967
      %v3180 = vmax.f32 %v3146, %v2968
      %v3181 = vmax.f32 %v3147, %v2969
      %v3182 = vmax.f32 %v3148, %v2970
      %v3183 = vmax.f32 %v3149, %v2971
      %v3184 = vmax.f32 %v3150, %v2972
      %v3185 = vmax.f32 %v3151, %v2973
      %v3186 = vmax.f32 %v3152, %v2974
      %v3187 = vmax.f32 %v3153, %v2975
      %v3188 = vmax.f32 %v3154, %v2976
      %v3189 = vpack.c.bf16 %v1118, %v1117
      %v3190 = vpack.c.bf16 %v1120, %v1119
      %v3191 = vpack.c.bf16 %v1122, %v1121
      %v3192 = vpack.c.bf16 %v1124, %v1123
      %v3193 = vpack.c.bf16 %v1126, %v1125
      %v3194 = vpack.c.bf16 %v1128, %v1127
      %v3195 = vpack.c.bf16 %v1130, %v1129
      %v3196 = vpack.c.bf16 %v1132, %v1131
      %v3197 = vpack.c.bf16 %v1134, %v1133
      %v3198 = vpack.c.bf16 %v1136, %v1135
      %v3199 = vpack.c.bf16 %v1138, %v1137
      %v3200 = vpack.c.bf16 %v1140, %v1139
      %v3201 = vpack.c.bf16 %v1142, %v1141
      %v3202 = vpack.c.bf16 %v1144, %v1143
      %v3203 = vpack.c.bf16 %v1146, %v1145
      %v3204 = vpack.c.bf16 %v1148, %v1147
      %v3205 = vld [vmem:[%s3] sm:$0xf]
      %v3206 = vpack.c.bf16 %v1538, %v1537
      %v3207 = vpack.c.bf16 %v1540, %v1539
      %v3208 = vpack.c.bf16 %v1542, %v1541
      %v3209 = vpack.c.bf16 %v1544, %v1543
      %v3210 = vpack.c.bf16 %v1546, %v1545
      %v3211 = vpack.c.bf16 %v1548, %v1547
      %v3212 = vpack.c.bf16 %v1550, %v1549
      %v3213 = vpack.c.bf16 %v1552, %v1551
      %v3214 = vpack.c.bf16 %v1554, %v1553
      %v3215 = vpack.c.bf16 %v1556, %v1555
      %v3216 = vpack.c.bf16 %v1558, %v1557
      %v3217 = vpack.c.bf16 %v1560, %v1559
      %v3218 = vpack.c.bf16 %v1562, %v1561
      %v3219 = vpack.c.bf16 %v1564, %v1563
      %v3220 = vpack.c.bf16 %v1566, %v1565
      %v3221 = vpack.c.bf16 %v1568, %v1567
      %s3222 = scalar_lea.vmem %s3, 4
      %v3223 = vld [vmem:[%s3222] sm:$0xf]
      %v3225 = vsel %vm226, %v3206, 0
      %v3228 = vsel %vm226, %v3207, 0
      %v3231 = vsel %vm226, %v3208, 0
      %v3234 = vsel %vm226, %v3209, 0
      %v3237 = vsel %vm226, %v3210, 0
      %v3240 = vsel %vm226, %v3211, 0
      %v3243 = vsel %vm226, %v3212, 0
      %v3246 = vsel %vm226, %v3213, 0
      %v3249 = vsel %vm226, %v3214, 0
      %v3252 = vsel %vm226, %v3215, 0
      %v3255 = vsel %vm226, %v3216, 0
      %v3258 = vsel %vm226, %v3217, 0
      %v3261 = vsel %vm226, %v3218, 0
      %v3264 = vsel %vm226, %v3219, 0
      %v3267 = vsel %vm226, %v3220, 0
      %v3270 = vsel %vm226, %v3221, 0
      %v3273 = vsel %vm760, %v3223, 0
      %3275 = vmatprep.subr.bf16.mxu0 0
      %3276 = vmatpush1.bf16.msra.mxu0 %v3273
      %3277 = vmatprep.subr.bf16.mxu0 0
      %3278 = vmatpush1.bf16.msra.mxu0 0
      %3279 = vmatprep.subr.bf16.mxu0 0
      %3280 = vmatpush1.bf16.msra.mxu0 0
      %3281 = vmatprep.subr.bf16.mxu0 0
      %3282 = vmatpush1.bf16.msra.mxu0 0
      %3283 = vmatprep.subr.bf16.mxu0 0
      %3284 = vmatpush1.bf16.msra.mxu0 0
      %3285 = vmatprep.subr.bf16.mxu0 0
      %3286 = vmatpush1.bf16.msra.mxu0 0
      %3287 = vmatprep.subr.bf16.mxu0 0
      %3288 = vmatpush1.bf16.msra.mxu0 0
      %3289 = vmatprep.subr.bf16.mxu0 0
      %3290 = vmatpush1.bf16.msra.mxu0 0
      %3291 = vmatprep.subr.bf16.mxu0 0
      %3292 = vmatpush1.bf16.msra.mxu0 0
      %3293 = vmatprep.subr.bf16.mxu0 0
      %3294 = vmatpush1.bf16.msra.mxu0 0
      %3295 = vmatprep.subr.bf16.mxu0 0
      %3296 = vmatpush1.bf16.msra.mxu0 0
      %3297 = vmatprep.subr.bf16.mxu0 0
      %3298 = vmatpush1.bf16.msra.mxu0 0
      %3299 = vmatprep.subr.bf16.mxu0 0
      %3300 = vmatpush1.bf16.msra.mxu0 0
      %3301 = vmatprep.subr.bf16.mxu0 0
      %3302 = vmatpush1.bf16.msra.mxu0 0
      %3303 = vmatprep.subr.bf16.mxu0 0
      %3304 = vmatpush1.bf16.msra.mxu0 0
      %3305 = vmatprep.subr.bf16.mxu0 0
      %3306 = vmatpush1.bf16.msra.mxu0 0
      %3307 = vmatprep.mubr.bf16.mxu0 0
      %3308 = vmatmul.mubr.bf16.gmra.mrb[0].mxu0 %v3225
      %v3309 = vpop.f32.mrb[0].mxu0
      %v3310 = vadd.f32 0.0, %v3309
      %v3311 = vpop.f32.mrb[0].mxu0
      %v3312 = vpop.f32.mrb[0].mxu0
      %v3313 = vadd.f32 0.0, %v3312
      %v3314 = vpop.f32.mrb[0].mxu0
      %3315 = vmatprep.mubr.bf16.mxu0 0
      %3316 = vmatmul.mubr.bf16.gmra.mrb[0].mxu0 %v3228
      %v3317 = vpop.f32.mrb[0].mxu0
      %v3318 = vadd.f32 0.0, %v3317
      %v3319 = vpop.f32.mrb[0].mxu0
      %v3320 = vpop.f32.mrb[0].mxu0
      %v3321 = vadd.f32 0.0, %v3320
      %v3322 = vpop.f32.mrb[0].mxu0
      %3323 = vmatprep.mubr.bf16.mxu0 0
      %3324 = vmatmul.mubr.bf16.gmra.mrb[0].mxu0 %v3231
      %v3325 = vpop.f32.mrb[0].mxu0
      %v3326 = vadd.f32 0.0, %v3325
      %v3327 = vpop.f32.mrb[0].mxu0
      %v3328 = vpop.f32.mrb[0].mxu0
      %v3329 = vadd.f32 0.0, %v3328
      %v3330 = vpop.f32.mrb[0].mxu0
      %3331 = vmatprep.mubr.bf16.mxu0 0
      %3332 = vmatmul.mubr.bf16.gmra.mrb[0].mxu0 %v3234
      %v3333 = vpop.f32.mrb[0].mxu0
      %v3334 = vadd.f32 0.0, %v3333
      %v3335 = vpop.f32.mrb[0].mxu0
      %v3336 = vpop.f32.mrb[0].mxu0
      %v3337 = vadd.f32 0.0, %v3336
      %v3338 = vpop.f32.mrb[0].mxu0
      %3339 = vmatprep.mubr.bf16.mxu0 0
      %3340 = vmatmul.mubr.bf16.gmra.mrb[0].mxu0 %v3237
      %v3341 = vpop.f32.mrb[0].mxu0
      %v3342 = vadd.f32 0.0, %v3341
      %v3343 = vpop.f32.mrb[0].mxu0
      %v3344 = vpop.f32.mrb[0].mxu0
      %v3345 = vadd.f32 0.0, %v3344
      %v3346 = vpop.f32.mrb[0].mxu0
      %3347 = vmatprep.mubr.bf16.mxu0 0
      %3348 = vmatmul.mubr.bf16.gmra.mrb[0].mxu0 %v3240
      %v3349 = vpop.f32.mrb[0].mxu0
      %v3350 = vadd.f32 0.0, %v3349
      %v3351 = vpop.f32.mrb[0].mxu0
      %v3352 = vpop.f32.mrb[0].mxu0
      %v3353 = vadd.f32 0.0, %v3352
      %v3354 = vpop.f32.mrb[0].mxu0
      %3355 = vmatprep.mubr.bf16.mxu0 0
      %3356 = vmatmul.mubr.bf16.gmra.mrb[0].mxu0 %v3243
      %v3357 = vpop.f32.mrb[0].mxu0
      %v3358 = vadd.f32 0.0, %v3357
      %v3359 = vpop.f32.mrb[0].mxu0
      %v3360 = vpop.f32.mrb[0].mxu0
      %v3361 = vadd.f32 0.0, %v3360
      %v3362 = vpop.f32.mrb[0].mxu0
      %3363 = vmatprep.mubr.bf16.mxu0 0
      %3364 = vmatmul.mubr.bf16.gmra.mrb[0].mxu0 %v3246
      %v3365 = vpop.f32.mrb[0].mxu0
      %v3366 = vadd.f32 0.0, %v3365
      %v3367 = vpop.f32.mrb[0].mxu0
      %v3368 = vpop.f32.mrb[0].mxu0
      %v3369 = vadd.f32 0.0, %v3368
      %v3370 = vpop.f32.mrb[0].mxu0
      %3371 = vmatprep.mubr.bf16.mxu0 0
      %3372 = vmatmul.mubr.bf16.gmra.mrb[0].mxu0 %v3249
      %v3373 = vpop.f32.mrb[0].mxu0
      %v3374 = vadd.f32 0.0, %v3373
      %v3375 = vpop.f32.mrb[0].mxu0
      %v3376 = vpop.f32.mrb[0].mxu0
      %v3377 = vadd.f32 0.0, %v3376
      %v3378 = vpop.f32.mrb[0].mxu0
      %3379 = vmatprep.mubr.bf16.mxu0 0
      %3380 = vmatmul.mubr.bf16.gmra.mrb[0].mxu0 %v3252
      %v3381 = vpop.f32.mrb[0].mxu0
      %v3382 = vadd.f32 0.0, %v3381
      %v3383 = vpop.f32.mrb[0].mxu0
      %v3384 = vpop.f32.mrb[0].mxu0
      %v3385 = vadd.f32 0.0, %v3384
      %v3386 = vpop.f32.mrb[0].mxu0
      %3387 = vmatprep.mubr.bf16.mxu0 0
      %3388 = vmatmul.mubr.bf16.gmra.mrb[0].mxu0 %v3255
      %v3389 = vpop.f32.mrb[0].mxu0
      %v3390 = vadd.f32 0.0, %v3389
      %v3391 = vpop.f32.mrb[0].mxu0
      %v3392 = vpop.f32.mrb[0].mxu0
      %v3393 = vadd.f32 0.0, %v3392
      %v3394 = vpop.f32.mrb[0].mxu0
      %3395 = vmatprep.mubr.bf16.mxu0 0
      %3396 = vmatmul.mubr.bf16.gmra.mrb[0].mxu0 %v3258
      %v3397 = vpop.f32.mrb[0].mxu0
      %v3398 = vadd.f32 0.0, %v3397
      %v3399 = vpop.f32.mrb[0].mxu0
      %v3400 = vpop.f32.mrb[0].mxu0
      %v3401 = vadd.f32 0.0, %v3400
      %v3402 = vpop.f32.mrb[0].mxu0
      %3403 = vmatprep.mubr.bf16.mxu0 0
      %3404 = vmatmul.mubr.bf16.gmra.mrb[0].mxu0 %v3261
      %v3405 = vpop.f32.mrb[0].mxu0
      %v3406 = vadd.f32 0.0, %v3405
      %v3407 = vpop.f32.mrb[0].mxu0
      %v3408 = vpop.f32.mrb[0].mxu0
      %v3409 = vadd.f32 0.0, %v3408
      %v3410 = vpop.f32.mrb[0].mxu0
      %3411 = vmatprep.mubr.bf16.mxu0 0
      %3412 = vmatmul.mubr.bf16.gmra.mrb[0].mxu0 %v3264
      %v3413 = vpop.f32.mrb[0].mxu0
      %v3414 = vadd.f32 0.0, %v3413
      %v3415 = vpop.f32.mrb[0].mxu0
      %v3416 = vpop.f32.mrb[0].mxu0
      %v3417 = vadd.f32 0.0, %v3416
      %v3418 = vpop.f32.mrb[0].mxu0
      %3419 = vmatprep.mubr.bf16.mxu0 0
      %3420 = vmatmul.mubr.bf16.gmra.mrb[0].mxu0 %v3267
      %v3421 = vpop.f32.mrb[0].mxu0
      %v3422 = vadd.f32 0.0, %v3421
      %v3423 = vpop.f32.mrb[0].mxu0
      %v3424 = vpop.f32.mrb[0].mxu0
      %v3425 = vadd.f32 0.0, %v3424
      %v3426 = vpop.f32.mrb[0].mxu0
      %3427 = vmatprep.mubr.bf16.mxu0 0
      %3428 = vmatmul.mubr.bf16.gmra.mrb[0].mxu0 %v3270
      %v3429 = vpop.f32.mrb[0].mxu0
      %v3430 = vadd.f32 0.0, %v3429
      %v3431 = vpop.f32.mrb[0].mxu0
      %v3432 = vpop.f32.mrb[0].mxu0
      %v3433 = vadd.f32 0.0, %v3432
      %v3434 = vpop.f32.mrb[0].mxu0
      %3435 = vdwg.mxu0
      %v3437 = vsel %vm226, %v3189, 0
      %v3440 = vsel %vm226, %v3190, 0
      %v3443 = vsel %vm226, %v3191, 0
      %v3446 = vsel %vm226, %v3192, 0
      %v3449 = vsel %vm226, %v3193, 0
      %v3452 = vsel %vm226, %v3194, 0
      %v3455 = vsel %vm226, %v3195, 0
      %v3458 = vsel %vm226, %v3196, 0
      %v3461 = vsel %vm226, %v3197, 0
      %v3464 = vsel %vm226, %v3198, 0
      %v3467 = vsel %vm226, %v3199, 0
      %v3470 = vsel %vm226, %v3200, 0
      %v3473 = vsel %vm226, %v3201, 0
      %v3476 = vsel %vm226, %v3202, 0
      %v3479 = vsel %vm226, %v3203, 0
      %v3482 = vsel %vm226, %v3204, 0
      %v3485 = vsel %vm760, %v3205, 0
      %3487 = vmatprep.subr.bf16.mxu0 0
      %3488 = vmatpush1.bf16.msra.mxu0 %v3485
      %3489 = vmatprep.subr.bf16.mxu0 0
      %3490 = vmatpush1.bf16.msra.mxu0 0
      %3491 = vmatprep.subr.bf16.mxu0 0
      %3492 = vmatpush1.bf16.msra.mxu0 0
      %3493 = vmatprep.subr.bf16.mxu0 0
      %3494 = vmatpush1.bf16.msra.mxu0 0
      %3495 = vmatprep.subr.bf16.mxu0 0
      %3496 = vmatpush1.bf16.msra.mxu0 0
      %3497 = vmatprep.subr.bf16.mxu0 0
      %3498 = vmatpush1.bf16.msra.mxu0 0
      %3499 = vmatprep.subr.bf16.mxu0 0
      %3500 = vmatpush1.bf16.msra.mxu0 0
      %3501 = vmatprep.subr.bf16.mxu0 0
      %3502 = vmatpush1.bf16.msra.mxu0 0
      %3503 = vmatprep.subr.bf16.mxu0 0
      %3504 = vmatpush1.bf16.msra.mxu0 0
      %3505 = vmatprep.subr.bf16.mxu0 0
      %3506 = vmatpush1.bf16.msra.mxu0 0
      %3507 = vmatprep.subr.bf16.mxu0 0
      %3508 = vmatpush1.bf16.msra.mxu0 0
      %3509 = vmatprep.subr.bf16.mxu0 0
      %3510 = vmatpush1.bf16.msra.mxu0 0
      %3511 = vmatprep.subr.bf16.mxu0 0
      %3512 = vmatpush1.bf16.msra.mxu0 0
      %3513 = vmatprep.subr.bf16.mxu0 0
      %3514 = vmatpush1.bf16.msra.mxu0 0
      %3515 = vmatprep.subr.bf16.mxu0 0
      %3516 = vmatpush1.bf16.msra.mxu0 0
      %3517 = vmatprep.subr.bf16.mxu0 0
      %3518 = vmatpush1.bf16.msra.mxu0 0
      %3519 = vmatprep.mubr.bf16.mxu0 0
      %3520 = vmatmul.mubr.bf16.gmra.mrb[0].mxu0 %v3437
      %v3521 = vpop.f32.mrb[0].mxu0
      %v3522 = vadd.f32 %v3310, %v3521
      %v3523 = vpop.f32.mrb[0].mxu0
      %v3524 = vpop.f32.mrb[0].mxu0
      %v3525 = vadd.f32 %v3313, %v3524
      %v3526 = vpop.f32.mrb[0].mxu0
      %3527 = vmatprep.mubr.bf16.mxu0 0
      %3528 = vmatmul.mubr.bf16.gmra.mrb[0].mxu0 %v3440
      %v3529 = vpop.f32.mrb[0].mxu0
      %v3530 = vadd.f32 %v3318, %v3529
      %v3531 = vpop.f32.mrb[0].mxu0
      %v3532 = vpop.f32.mrb[0].mxu0
      %v3533 = vadd.f32 %v3321, %v3532
      %v3534 = vpop.f32.mrb[0].mxu0
      %3535 = vmatprep.mubr.bf16.mxu0 0
      %3536 = vmatmul.mubr.bf16.gmra.mrb[0].mxu0 %v3443
      %v3537 = vpop.f32.mrb[0].mxu0
      %v3538 = vadd.f32 %v3326, %v3537
      %v3539 = vpop.f32.mrb[0].mxu0
      %v3540 = vpop.f32.mrb[0].mxu0
      %v3541 = vadd.f32 %v3329, %v3540
      %v3542 = vpop.f32.mrb[0].mxu0
      %3543 = vmatprep.mubr.bf16.mxu0 0
      %3544 = vmatmul.mubr.bf16.gmra.mrb[0].mxu0 %v3446
      %v3545 = vpop.f32.mrb[0].mxu0
      %v3546 = vadd.f32 %v3334, %v3545
      %v3547 = vpop.f32.mrb[0].mxu0
      %v3548 = vpop.f32.mrb[0].mxu0
      %v3549 = vadd.f32 %v3337, %v3548
      %v3550 = vpop.f32.mrb[0].mxu0
      %3551 = vmatprep.mubr.bf16.mxu0 0
      %3552 = vmatmul.mubr.bf16.gmra.mrb[0].mxu0 %v3449
      %v3553 = vpop.f32.mrb[0].mxu0
      %v3554 = vadd.f32 %v3342, %v3553
      %v3555 = vpop.f32.mrb[0].mxu0
      %v3556 = vpop.f32.mrb[0].mxu0
      %v3557 = vadd.f32 %v3345, %v3556
      %v3558 = vpop.f32.mrb[0].mxu0
      %3559 = vmatprep.mubr.bf16.mxu0 0
      %3560 = vmatmul.mubr.bf16.gmra.mrb[0].mxu0 %v3452
      %v3561 = vpop.f32.mrb[0].mxu0
      %v3562 = vadd.f32 %v3350, %v3561
      %v3563 = vpop.f32.mrb[0].mxu0
      %v3564 = vpop.f32.mrb[0].mxu0
      %v3565 = vadd.f32 %v3353, %v3564
      %v3566 = vpop.f32.mrb[0].mxu0
      %3567 = vmatprep.mubr.bf16.mxu0 0
      %3568 = vmatmul.mubr.bf16.gmra.mrb[0].mxu0 %v3455
      %v3569 = vpop.f32.mrb[0].mxu0
      %v3570 = vadd.f32 %v3358, %v3569
      %v3571 = vpop.f32.mrb[0].mxu0
      %v3572 = vpop.f32.mrb[0].mxu0
      %v3573 = vadd.f32 %v3361, %v3572
      %v3574 = vpop.f32.mrb[0].mxu0
      %3575 = vmatprep.mubr.bf16.mxu0 0
      %3576 = vmatmul.mubr.bf16.gmra.mrb[0].mxu0 %v3458
      %v3577 = vpop.f32.mrb[0].mxu0
      %v3578 = vadd.f32 %v3366, %v3577
      %v3579 = vpop.f32.mrb[0].mxu0
      %v3580 = vpop.f32.mrb[0].mxu0
      %v3581 = vadd.f32 %v3369, %v3580
      %v3582 = vpop.f32.mrb[0].mxu0
      %3583 = vmatprep.mubr.bf16.mxu0 0
      %3584 = vmatmul.mubr.bf16.gmra.mrb[0].mxu0 %v3461
      %v3585 = vpop.f32.mrb[0].mxu0
      %v3586 = vadd.f32 %v3374, %v3585
      %v3587 = vpop.f32.mrb[0].mxu0
      %v3588 = vpop.f32.mrb[0].mxu0
      %v3589 = vadd.f32 %v3377, %v3588
      %v3590 = vpop.f32.mrb[0].mxu0
      %3591 = vmatprep.mubr.bf16.mxu0 0
      %3592 = vmatmul.mubr.bf16.gmra.mrb[0].mxu0 %v3464
      %v3593 = vpop.f32.mrb[0].mxu0
      %v3594 = vadd.f32 %v3382, %v3593
      %v3595 = vpop.f32.mrb[0].mxu0
      %v3596 = vpop.f32.mrb[0].mxu0
      %v3597 = vadd.f32 %v3385, %v3596
      %v3598 = vpop.f32.mrb[0].mxu0
      %3599 = vmatprep.mubr.bf16.mxu0 0
      %3600 = vmatmul.mubr.bf16.gmra.mrb[0].mxu0 %v3467
      %v3601 = vpop.f32.mrb[0].mxu0
      %v3602 = vadd.f32 %v3390, %v3601
      %v3603 = vpop.f32.mrb[0].mxu0
      %v3604 = vpop.f32.mrb[0].mxu0
      %v3605 = vadd.f32 %v3393, %v3604
      %v3606 = vpop.f32.mrb[0].mxu0
      %3607 = vmatprep.mubr.bf16.mxu0 0
      %3608 = vmatmul.mubr.bf16.gmra.mrb[0].mxu0 %v3470
      %v3609 = vpop.f32.mrb[0].mxu0
      %v3610 = vadd.f32 %v3398, %v3609
      %v3611 = vpop.f32.mrb[0].mxu0
      %v3612 = vpop.f32.mrb[0].mxu0
      %v3613 = vadd.f32 %v3401, %v3612
      %v3614 = vpop.f32.mrb[0].mxu0
      %3615 = vmatprep.mubr.bf16.mxu0 0
      %3616 = vmatmul.mubr.bf16.gmra.mrb[0].mxu0 %v3473
      %v3617 = vpop.f32.mrb[0].mxu0
      %v3618 = vadd.f32 %v3406, %v3617
      %v3619 = vpop.f32.mrb[0].mxu0
      %v3620 = vpop.f32.mrb[0].mxu0
      %v3621 = vadd.f32 %v3409, %v3620
      %v3622 = vpop.f32.mrb[0].mxu0
      %3623 = vmatprep.mubr.bf16.mxu0 0
      %3624 = vmatmul.mubr.bf16.gmra.mrb[0].mxu0 %v3476
      %v3625 = vpop.f32.mrb[0].mxu0
      %v3626 = vadd.f32 %v3414, %v3625
      %v3627 = vpop.f32.mrb[0].mxu0
      %v3628 = vpop.f32.mrb[0].mxu0
      %v3629 = vadd.f32 %v3417, %v3628
      %v3630 = vpop.f32.mrb[0].mxu0
      %3631 = vmatprep.mubr.bf16.mxu0 0
      %3632 = vmatmul.mubr.bf16.gmra.mrb[0].mxu0 %v3479
      %v3633 = vpop.f32.mrb[0].mxu0
      %v3634 = vadd.f32 %v3422, %v3633
      %v3635 = vpop.f32.mrb[0].mxu0
      %v3636 = vpop.f32.mrb[0].mxu0
      %v3637 = vadd.f32 %v3425, %v3636
      %v3638 = vpop.f32.mrb[0].mxu0
      %3639 = vmatprep.mubr.bf16.mxu0 0
      %3640 = vmatmul.mubr.bf16.gmra.mrb[0].mxu0 %v3482
      %v3641 = vpop.f32.mrb[0].mxu0
      %v3642 = vadd.f32 %v3430, %v3641
      %v3643 = vpop.f32.mrb[0].mxu0
      %v3644 = vpop.f32.mrb[0].mxu0
      %v3645 = vadd.f32 %v3433, %v3644
      %v3646 = vpop.f32.mrb[0].mxu0
      %3647 = vdwg.mxu0
      %v3648 = vpack.c.bf16 %v2218, %v2217
      %v3649 = vpack.c.bf16 %v2220, %v2219
      %v3650 = vpack.c.bf16 %v2222, %v2221
      %v3651 = vpack.c.bf16 %v2224, %v2223
      %v3652 = vpack.c.bf16 %v2226, %v2225
      %v3653 = vpack.c.bf16 %v2228, %v2227
      %v3654 = vpack.c.bf16 %v2230, %v2229
      %v3655 = vpack.c.bf16 %v2232, %v2231
      %v3656 = vpack.c.bf16 %v2234, %v2233
      %v3657 = vpack.c.bf16 %v2236, %v2235
      %v3658 = vpack.c.bf16 %v2238, %v2237
      %v3659 = vpack.c.bf16 %v2240, %v2239
      %v3660 = vpack.c.bf16 %v2242, %v2241
      %v3661 = vpack.c.bf16 %v2244, %v2243
      %v3662 = vpack.c.bf16 %v2246, %v2245
      %v3663 = vpack.c.bf16 %v2248, %v2247
      %s3664 = scalar_lea.vmem %s3, 8
      %v3665 = vld [vmem:[%s3664] sm:$0xf]
      %v3667 = vsel %vm226, %v3648, 0
      %v3670 = vsel %vm226, %v3649, 0
      %v3673 = vsel %vm226, %v3650, 0
      %v3676 = vsel %vm226, %v3651, 0
      %v3679 = vsel %vm226, %v3652, 0
      %v3682 = vsel %vm226, %v3653, 0
      %v3685 = vsel %vm226, %v3654, 0
      %v3688 = vsel %vm226, %v3655, 0
      %v3691 = vsel %vm226, %v3656, 0
      %v3694 = vsel %vm226, %v3657, 0
      %v3697 = vsel %vm226, %v3658, 0
      %v3700 = vsel %vm226, %v3659, 0
      %v3703 = vsel %vm226, %v3660, 0
      %v3706 = vsel %vm226, %v3661, 0
      %v3709 = vsel %vm226, %v3662, 0
      %v3712 = vsel %vm226, %v3663, 0
      %v3715 = vsel %vm760, %v3665, 0
      %3717 = vmatprep.subr.bf16.mxu0 0
      %3718 = vmatpush1.bf16.msra.mxu0 %v3715
      %3719 = vmatprep.subr.bf16.mxu0 0
      %3720 = vmatpush1.bf16.msra.mxu0 0
      %3721 = vmatprep.subr.bf16.mxu0 0
      %3722 = vmatpush1.bf16.msra.mxu0 0
      %3723 = vmatprep.subr.bf16.mxu0 0
      %3724 = vmatpush1.bf16.msra.mxu0 0
      %3725 = vmatprep.subr.bf16.mxu0 0
      %3726 = vmatpush1.bf16.msra.mxu0 0
      %3727 = vmatprep.subr.bf16.mxu0 0
      %3728 = vmatpush1.bf16.msra.mxu0 0
      %3729 = vmatprep.subr.bf16.mxu0 0
      %3730 = vmatpush1.bf16.msra.mxu0 0
      %3731 = vmatprep.subr.bf16.mxu0 0
      %3732 = vmatpush1.bf16.msra.mxu0 0
      %3733 = vmatprep.subr.bf16.mxu0 0
      %3734 = vmatpush1.bf16.msra.mxu0 0
      %3735 = vmatprep.subr.bf16.mxu0 0
      %3736 = vmatpush1.bf16.msra.mxu0 0
      %3737 = vmatprep.subr.bf16.mxu0 0
      %3738 = vmatpush1.bf16.msra.mxu0 0
      %3739 = vmatprep.subr.bf16.mxu0 0
      %3740 = vmatpush1.bf16.msra.mxu0 0
      %3741 = vmatprep.subr.bf16.mxu0 0
      %3742 = vmatpush1.bf16.msra.mxu0 0
      %3743 = vmatprep.subr.bf16.mxu0 0
      %3744 = vmatpush1.bf16.msra.mxu0 0
      %3745 = vmatprep.subr.bf16.mxu0 0
      %3746 = vmatpush1.bf16.msra.mxu0 0
      %3747 = vmatprep.subr.bf16.mxu0 0
      %3748 = vmatpush1.bf16.msra.mxu0 0
      %3749 = vmatprep.mubr.bf16.mxu0 0
      %3750 = vmatmul.mubr.bf16.gmra.mrb[0].mxu0 %v3667
      %v3751 = vpop.f32.mrb[0].mxu0
      %v3752 = vadd.f32 0.0, %v3751
      %v3753 = vpop.f32.mrb[0].mxu0
      %v3754 = vpop.f32.mrb[0].mxu0
      %v3755 = vadd.f32 0.0, %v3754
      %v3756 = vpop.f32.mrb[0].mxu0
      %3757 = vmatprep.mubr.bf16.mxu0 0
      %3758 = vmatmul.mubr.bf16.gmra.mrb[0].mxu0 %v3670
      %v3759 = vpop.f32.mrb[0].mxu0
      %v3760 = vadd.f32 0.0, %v3759
      %v3761 = vpop.f32.mrb[0].mxu0
      %v3762 = vpop.f32.mrb[0].mxu0
      %v3763 = vadd.f32 0.0, %v3762
      %v3764 = vpop.f32.mrb[0].mxu0
      %3765 = vmatprep.mubr.bf16.mxu0 0
      %3766 = vmatmul.mubr.bf16.gmra.mrb[0].mxu0 %v3673
      %v3767 = vpop.f32.mrb[0].mxu0
      %v3768 = vadd.f32 0.0, %v3767
      %v3769 = vpop.f32.mrb[0].mxu0
      %v3770 = vpop.f32.mrb[0].mxu0
      %v3771 = vadd.f32 0.0, %v3770
      %v3772 = vpop.f32.mrb[0].mxu0
      %3773 = vmatprep.mubr.bf16.mxu0 0
      %3774 = vmatmul.mubr.bf16.gmra.mrb[0].mxu0 %v3676
      %v3775 = vpop.f32.mrb[0].mxu0
      %v3776 = vadd.f32 0.0, %v3775
      %v3777 = vpop.f32.mrb[0].mxu0
      %v3778 = vpop.f32.mrb[0].mxu0
      %v3779 = vadd.f32 0.0, %v3778
      %v3780 = vpop.f32.mrb[0].mxu0
      %3781 = vmatprep.mubr.bf16.mxu0 0
      %3782 = vmatmul.mubr.bf16.gmra.mrb[0].mxu0 %v3679
      %v3783 = vpop.f32.mrb[0].mxu0
      %v3784 = vadd.f32 0.0, %v3783
      %v3785 = vpop.f32.mrb[0].mxu0
      %v3786 = vpop.f32.mrb[0].mxu0
      %v3787 = vadd.f32 0.0, %v3786
      %v3788 = vpop.f32.mrb[0].mxu0
      %3789 = vmatprep.mubr.bf16.mxu0 0
      %3790 = vmatmul.mubr.bf16.gmra.mrb[0].mxu0 %v3682
      %v3791 = vpop.f32.mrb[0].mxu0
      %v3792 = vadd.f32 0.0, %v3791
      %v3793 = vpop.f32.mrb[0].mxu0
      %v3794 = vpop.f32.mrb[0].mxu0
      %v3795 = vadd.f32 0.0, %v3794
      %v3796 = vpop.f32.mrb[0].mxu0
      %3797 = vmatprep.mubr.bf16.mxu0 0
      %3798 = vmatmul.mubr.bf16.gmra.mrb[0].mxu0 %v3685
      %v3799 = vpop.f32.mrb[0].mxu0
      %v3800 = vadd.f32 0.0, %v3799
      %v3801 = vpop.f32.mrb[0].mxu0
      %v3802 = vpop.f32.mrb[0].mxu0
      %v3803 = vadd.f32 0.0, %v3802
      %v3804 = vpop.f32.mrb[0].mxu0
      %3805 = vmatprep.mubr.bf16.mxu0 0
      %3806 = vmatmul.mubr.bf16.gmra.mrb[0].mxu0 %v3688
      %v3807 = vpop.f32.mrb[0].mxu0
      %v3808 = vadd.f32 0.0, %v3807
      %v3809 = vpop.f32.mrb[0].mxu0
      %v3810 = vpop.f32.mrb[0].mxu0
      %v3811 = vadd.f32 0.0, %v3810
      %v3812 = vpop.f32.mrb[0].mxu0
      %3813 = vmatprep.mubr.bf16.mxu0 0
      %3814 = vmatmul.mubr.bf16.gmra.mrb[0].mxu0 %v3691
      %v3815 = vpop.f32.mrb[0].mxu0
      %v3816 = vadd.f32 0.0, %v3815
      %v3817 = vpop.f32.mrb[0].mxu0
      %v3818 = vpop.f32.mrb[0].mxu0
      %v3819 = vadd.f32 0.0, %v3818
      %v3820 = vpop.f32.mrb[0].mxu0
      %3821 = vmatprep.mubr.bf16.mxu0 0
      %3822 = vmatmul.mubr.bf16.gmra.mrb[0].mxu0 %v3694
      %v3823 = vpop.f32.mrb[0].mxu0
      %v3824 = vadd.f32 0.0, %v3823
      %v3825 = vpop.f32.mrb[0].mxu0
      %v3826 = vpop.f32.mrb[0].mxu0
      %v3827 = vadd.f32 0.0, %v3826
      %v3828 = vpop.f32.mrb[0].mxu0
      %3829 = vmatprep.mubr.bf16.mxu0 0
      %3830 = vmatmul.mubr.bf16.gmra.mrb[0].mxu0 %v3697
      %v3831 = vpop.f32.mrb[0].mxu0
      %v3832 = vadd.f32 0.0, %v3831
      %v3833 = vpop.f32.mrb[0].mxu0
      %v3834 = vpop.f32.mrb[0].mxu0
      %v3835 = vadd.f32 0.0, %v3834
      %v3836 = vpop.f32.mrb[0].mxu0
      %3837 = vmatprep.mubr.bf16.mxu0 0
      %3838 = vmatmul.mubr.bf16.gmra.mrb[0].mxu0 %v3700
      %v3839 = vpop.f32.mrb[0].mxu0
      %v3840 = vadd.f32 0.0, %v3839
      %v3841 = vpop.f32.mrb[0].mxu0
      %v3842 = vpop.f32.mrb[0].mxu0
      %v3843 = vadd.f32 0.0, %v3842
      %v3844 = vpop.f32.mrb[0].mxu0
      %3845 = vmatprep.mubr.bf16.mxu0 0
      %3846 = vmatmul.mubr.bf16.gmra.mrb[0].mxu0 %v3703
      %v3847 = vpop.f32.mrb[0].mxu0
      %v3848 = vadd.f32 0.0, %v3847
      %v3849 = vpop.f32.mrb[0].mxu0
      %v3850 = vpop.f32.mrb[0].mxu0
      %v3851 = vadd.f32 0.0, %v3850
      %v3852 = vpop.f32.mrb[0].mxu0
      %3853 = vmatprep.mubr.bf16.mxu0 0
      %3854 = vmatmul.mubr.bf16.gmra.mrb[0].mxu0 %v3706
      %v3855 = vpop.f32.mrb[0].mxu0
      %v3856 = vadd.f32 0.0, %v3855
      %v3857 = vpop.f32.mrb[0].mxu0
      %v3858 = vpop.f32.mrb[0].mxu0
      %v3859 = vadd.f32 0.0, %v3858
      %v3860 = vpop.f32.mrb[0].mxu0
      %3861 = vmatprep.mubr.bf16.mxu0 0
      %3862 = vmatmul.mubr.bf16.gmra.mrb[0].mxu0 %v3709
      %v3863 = vpop.f32.mrb[0].mxu0
      %v3864 = vadd.f32 0.0, %v3863
      %v3865 = vpop.f32.mrb[0].mxu0
      %v3866 = vpop.f32.mrb[0].mxu0
      %v3867 = vadd.f32 0.0, %v3866
      %v3868 = vpop.f32.mrb[0].mxu0
      %3869 = vmatprep.mubr.bf16.mxu0 0
      %3870 = vmatmul.mubr.bf16.gmra.mrb[0].mxu0 %v3712
      %v3871 = vpop.f32.mrb[0].mxu0
      %v3872 = vadd.f32 0.0, %v3871
      %v3873 = vpop.f32.mrb[0].mxu0
      %v3874 = vpop.f32.mrb[0].mxu0
      %v3875 = vadd.f32 0.0, %v3874
      %v3876 = vpop.f32.mrb[0].mxu0
      %3877 = vdwg.mxu0
      %v3878 = vadd.f32 %v3522, %v3752
      %v3879 = vadd.f32 %v3525, %v3755
      %v3880 = vadd.f32 %v3530, %v3760
      %v3881 = vadd.f32 %v3533, %v3763
      %v3882 = vadd.f32 %v3538, %v3768
      %v3883 = vadd.f32 %v3541, %v3771
      %v3884 = vadd.f32 %v3546, %v3776
      %v3885 = vadd.f32 %v3549, %v3779
      %v3886 = vadd.f32 %v3554, %v3784
      %v3887 = vadd.f32 %v3557, %v3787
      %v3888 = vadd.f32 %v3562, %v3792
      %v3889 = vadd.f32 %v3565, %v3795
      %v3890 = vadd.f32 %v3570, %v3800
      %v3891 = vadd.f32 %v3573, %v3803
      %v3892 = vadd.f32 %v3578, %v3808
      %v3893 = vadd.f32 %v3581, %v3811
      %v3894 = vadd.f32 %v3586, %v3816
      %v3895 = vadd.f32 %v3589, %v3819
      %v3896 = vadd.f32 %v3594, %v3824
      %v3897 = vadd.f32 %v3597, %v3827
      %v3898 = vadd.f32 %v3602, %v3832
      %v3899 = vadd.f32 %v3605, %v3835
      %v3900 = vadd.f32 %v3610, %v3840
      %v3901 = vadd.f32 %v3613, %v3843
      %v3902 = vadd.f32 %v3618, %v3848
      %v3903 = vadd.f32 %v3621, %v3851
      %v3904 = vadd.f32 %v3626, %v3856
      %v3905 = vadd.f32 %v3629, %v3859
      %v3906 = vadd.f32 %v3634, %v3864
      %v3907 = vadd.f32 %v3637, %v3867
      %v3908 = vadd.f32 %v3642, %v3872
      %v3909 = vadd.f32 %v3645, %v3875
      %v3910 = vpack.c.bf16 %v3158, %v3157
      %v3911 = vpack.c.bf16 %v3160, %v3159
      %v3912 = vpack.c.bf16 %v3162, %v3161
      %v3913 = vpack.c.bf16 %v3164, %v3163
      %v3914 = vpack.c.bf16 %v3166, %v3165
      %v3915 = vpack.c.bf16 %v3168, %v3167
      %v3916 = vpack.c.bf16 %v3170, %v3169
      %v3917 = vpack.c.bf16 %v3172, %v3171
      %v3918 = vpack.c.bf16 %v3174, %v3173
      %v3919 = vpack.c.bf16 %v3176, %v3175
      %v3920 = vpack.c.bf16 %v3178, %v3177
      %v3921 = vpack.c.bf16 %v3180, %v3179
      %v3922 = vpack.c.bf16 %v3182, %v3181
      %v3923 = vpack.c.bf16 %v3184, %v3183
      %v3924 = vpack.c.bf16 %v3186, %v3185
      %v3925 = vpack.c.bf16 %v3188, %v3187
      %s3926 = scalar_lea.vmem %s3, 12
      %v3927 = vld [vmem:[%s3926] sm:$0xf]
      %v3929 = vsel %vm226, %v3910, 0
      %v3932 = vsel %vm226, %v3911, 0
      %v3935 = vsel %vm226, %v3912, 0
      %v3938 = vsel %vm226, %v3913, 0
      %v3941 = vsel %vm226, %v3914, 0
      %v3944 = vsel %vm226, %v3915, 0
      %v3947 = vsel %vm226, %v3916, 0
      %v3950 = vsel %vm226, %v3917, 0
      %v3953 = vsel %vm226, %v3918, 0
      %v3956 = vsel %vm226, %v3919, 0
      %v3959 = vsel %vm226, %v3920, 0
      %v3962 = vsel %vm226, %v3921, 0
      %v3965 = vsel %vm226, %v3922, 0
      %v3968 = vsel %vm226, %v3923, 0
      %v3971 = vsel %vm226, %v3924, 0
      %v3974 = vsel %vm226, %v3925, 0
      %v3977 = vsel %vm760, %v3927, 0
      %3979 = vmatprep.subr.bf16.mxu0 0
      %3980 = vmatpush1.bf16.msra.mxu0 %v3977
      %3981 = vmatprep.subr.bf16.mxu0 0
      %3982 = vmatpush1.bf16.msra.mxu0 0
      %3983 = vmatprep.subr.bf16.mxu0 0
      %3984 = vmatpush1.bf16.msra.mxu0 0
      %3985 = vmatprep.subr.bf16.mxu0 0
      %3986 = vmatpush1.bf16.msra.mxu0 0
      %3987 = vmatprep.subr.bf16.mxu0 0
      %3988 = vmatpush1.bf16.msra.mxu0 0
      %3989 = vmatprep.subr.bf16.mxu0 0
      %3990 = vmatpush1.bf16.msra.mxu0 0
      %3991 = vmatprep.subr.bf16.mxu0 0
      %3992 = vmatpush1.bf16.msra.mxu0 0
      %3993 = vmatprep.subr.bf16.mxu0 0
      %3994 = vmatpush1.bf16.msra.mxu0 0
      %3995 = vmatprep.subr.bf16.mxu0 0
      %3996 = vmatpush1.bf16.msra.mxu0 0
      %3997 = vmatprep.subr.bf16.mxu0 0
      %3998 = vmatpush1.bf16.msra.mxu0 0
      %3999 = vmatprep.subr.bf16.mxu0 0
      %4000 = vmatpush1.bf16.msra.mxu0 0
      %4001 = vmatprep.subr.bf16.mxu0 0
      %4002 = vmatpush1.bf16.msra.mxu0 0
      %4003 = vmatprep.subr.bf16.mxu0 0
      %4004 = vmatpush1.bf16.msra.mxu0 0
      %4005 = vmatprep.subr.bf16.mxu0 0
      %4006 = vmatpush1.bf16.msra.mxu0 0
      %4007 = vmatprep.subr.bf16.mxu0 0
      %4008 = vmatpush1.bf16.msra.mxu0 0
      %4009 = vmatprep.subr.bf16.mxu0 0
      %4010 = vmatpush1.bf16.msra.mxu0 0
      %4011 = vmatprep.mubr.bf16.mxu0 0
      %4012 = vmatmul.mubr.bf16.gmra.mrb[0].mxu0 %v3929
      %v4013 = vpop.f32.mrb[0].mxu0
      %v4014 = vadd.f32 0.0, %v4013
      %v4015 = vpop.f32.mrb[0].mxu0
      %v4016 = vpop.f32.mrb[0].mxu0
      %v4017 = vadd.f32 0.0, %v4016
      %v4018 = vpop.f32.mrb[0].mxu0
      %4019 = vmatprep.mubr.bf16.mxu0 0
      %4020 = vmatmul.mubr.bf16.gmra.mrb[0].mxu0 %v3932
      %v4021 = vpop.f32.mrb[0].mxu0
      %v4022 = vadd.f32 0.0, %v4021
      %v4023 = vpop.f32.mrb[0].mxu0
      %v4024 = vpop.f32.mrb[0].mxu0
      %v4025 = vadd.f32 0.0, %v4024
      %v4026 = vpop.f32.mrb[0].mxu0
      %4027 = vmatprep.mubr.bf16.mxu0 0
      %4028 = vmatmul.mubr.bf16.gmra.mrb[0].mxu0 %v3935
      %v4029 = vpop.f32.mrb[0].mxu0
      %v4030 = vadd.f32 0.0, %v4029
      %v4031 = vpop.f32.mrb[0].mxu0
      %v4032 = vpop.f32.mrb[0].mxu0
      %v4033 = vadd.f32 0.0, %v4032
      %v4034 = vpop.f32.mrb[0].mxu0
      %4035 = vmatprep.mubr.bf16.mxu0 0
      %4036 = vmatmul.mubr.bf16.gmra.mrb[0].mxu0 %v3938
      %v4037 = vpop.f32.mrb[0].mxu0
      %v4038 = vadd.f32 0.0, %v4037
      %v4039 = vpop.f32.mrb[0].mxu0
      %v4040 = vpop.f32.mrb[0].mxu0
      %v4041 = vadd.f32 0.0, %v4040
      %v4042 = vpop.f32.mrb[0].mxu0
      %4043 = vmatprep.mubr.bf16.mxu0 0
      %4044 = vmatmul.mubr.bf16.gmra.mrb[0].mxu0 %v3941
      %v4045 = vpop.f32.mrb[0].mxu0
      %v4046 = vadd.f32 0.0, %v4045
      %v4047 = vpop.f32.mrb[0].mxu0
      %v4048 = vpop.f32.mrb[0].mxu0
      %v4049 = vadd.f32 0.0, %v4048
      %v4050 = vpop.f32.mrb[0].mxu0
      %4051 = vmatprep.mubr.bf16.mxu0 0
      %4052 = vmatmul.mubr.bf16.gmra.mrb[0].mxu0 %v3944
      %v4053 = vpop.f32.mrb[0].mxu0
      %v4054 = vadd.f32 0.0, %v4053
      %v4055 = vpop.f32.mrb[0].mxu0
      %v4056 = vpop.f32.mrb[0].mxu0
      %v4057 = vadd.f32 0.0, %v4056
      %v4058 = vpop.f32.mrb[0].mxu0
      %4059 = vmatprep.mubr.bf16.mxu0 0
      %4060 = vmatmul.mubr.bf16.gmra.mrb[0].mxu0 %v3947
      %v4061 = vpop.f32.mrb[0].mxu0
      %v4062 = vadd.f32 0.0, %v4061
      %v4063 = vpop.f32.mrb[0].mxu0
      %v4064 = vpop.f32.mrb[0].mxu0
      %v4065 = vadd.f32 0.0, %v4064
      %v4066 = vpop.f32.mrb[0].mxu0
      %4067 = vmatprep.mubr.bf16.mxu0 0
      %4068 = vmatmul.mubr.bf16.gmra.mrb[0].mxu0 %v3950
      %v4069 = vpop.f32.mrb[0].mxu0
      %v4070 = vadd.f32 0.0, %v4069
      %v4071 = vpop.f32.mrb[0].mxu0
      %v4072 = vpop.f32.mrb[0].mxu0
      %v4073 = vadd.f32 0.0, %v4072
      %v4074 = vpop.f32.mrb[0].mxu0
      %4075 = vmatprep.mubr.bf16.mxu0 0
      %4076 = vmatmul.mubr.bf16.gmra.mrb[0].mxu0 %v3953
      %v4077 = vpop.f32.mrb[0].mxu0
      %v4078 = vadd.f32 0.0, %v4077
      %v4079 = vpop.f32.mrb[0].mxu0
      %v4080 = vpop.f32.mrb[0].mxu0
      %v4081 = vadd.f32 0.0, %v4080
      %v4082 = vpop.f32.mrb[0].mxu0
      %4083 = vmatprep.mubr.bf16.mxu0 0
      %4084 = vmatmul.mubr.bf16.gmra.mrb[0].mxu0 %v3956
      %v4085 = vpop.f32.mrb[0].mxu0
      %v4086 = vadd.f32 0.0, %v4085
      %v4087 = vpop.f32.mrb[0].mxu0
      %v4088 = vpop.f32.mrb[0].mxu0
      %v4089 = vadd.f32 0.0, %v4088
      %v4090 = vpop.f32.mrb[0].mxu0
      %4091 = vmatprep.mubr.bf16.mxu0 0
      %4092 = vmatmul.mubr.bf16.gmra.mrb[0].mxu0 %v3959
      %v4093 = vpop.f32.mrb[0].mxu0
      %v4094 = vadd.f32 0.0, %v4093
      %v4095 = vpop.f32.mrb[0].mxu0
      %v4096 = vpop.f32.mrb[0].mxu0
      %v4097 = vadd.f32 0.0, %v4096
      %v4098 = vpop.f32.mrb[0].mxu0
      %4099 = vmatprep.mubr.bf16.mxu0 0
      %4100 = vmatmul.mubr.bf16.gmra.mrb[0].mxu0 %v3962
      %v4101 = vpop.f32.mrb[0].mxu0
      %v4102 = vadd.f32 0.0, %v4101
      %v4103 = vpop.f32.mrb[0].mxu0
      %v4104 = vpop.f32.mrb[0].mxu0
      %v4105 = vadd.f32 0.0, %v4104
      %v4106 = vpop.f32.mrb[0].mxu0
      %4107 = vmatprep.mubr.bf16.mxu0 0
      %4108 = vmatmul.mubr.bf16.gmra.mrb[0].mxu0 %v3965
      %v4109 = vpop.f32.mrb[0].mxu0
      %v4110 = vadd.f32 0.0, %v4109
      %v4111 = vpop.f32.mrb[0].mxu0
      %v4112 = vpop.f32.mrb[0].mxu0
      %v4113 = vadd.f32 0.0, %v4112
      %v4114 = vpop.f32.mrb[0].mxu0
      %4115 = vmatprep.mubr.bf16.mxu0 0
      %4116 = vmatmul.mubr.bf16.gmra.mrb[0].mxu0 %v3968
      %v4117 = vpop.f32.mrb[0].mxu0
      %v4118 = vadd.f32 0.0, %v4117
      %v4119 = vpop.f32.mrb[0].mxu0
      %v4120 = vpop.f32.mrb[0].mxu0
      %v4121 = vadd.f32 0.0, %v4120
      %v4122 = vpop.f32.mrb[0].mxu0
      %4123 = vmatprep.mubr.bf16.mxu0 0
      %4124 = vmatmul.mubr.bf16.gmra.mrb[0].mxu0 %v3971
      %v4125 = vpop.f32.mrb[0].mxu0
      %v4126 = vadd.f32 0.0, %v4125
      %v4127 = vpop.f32.mrb[0].mxu0
      %v4128 = vpop.f32.mrb[0].mxu0
      %v4129 = vadd.f32 0.0, %v4128
      %v4130 = vpop.f32.mrb[0].mxu0
      %4131 = vmatprep.mubr.bf16.mxu0 0
      %4132 = vmatmul.mubr.bf16.gmra.mrb[0].mxu0 %v3974
      %v4133 = vpop.f32.mrb[0].mxu0
      %v4134 = vadd.f32 0.0, %v4133
      %v4135 = vpop.f32.mrb[0].mxu0
      %v4136 = vpop.f32.mrb[0].mxu0
      %v4137 = vadd.f32 0.0, %v4136
      %v4138 = vpop.f32.mrb[0].mxu0
      %4139 = vdwg.mxu0
      %v4140 = vadd.f32 %v3878, %v4014
      %v4141 = vadd.f32 %v3879, %v4017
      %v4142 = vadd.f32 %v3880, %v4022
      %v4143 = vadd.f32 %v3881, %v4025
      %v4144 = vadd.f32 %v3882, %v4030
      %v4145 = vadd.f32 %v3883, %v4033
      %v4146 = vadd.f32 %v3884, %v4038
      %v4147 = vadd.f32 %v3885, %v4041
      %v4148 = vadd.f32 %v3886, %v4046
      %v4149 = vadd.f32 %v3887, %v4049
      %v4150 = vadd.f32 %v3888, %v4054
      %v4151 = vadd.f32 %v3889, %v4057
      %v4152 = vadd.f32 %v3890, %v4062
      %v4153 = vadd.f32 %v3891, %v4065
      %v4154 = vadd.f32 %v3892, %v4070
      %v4155 = vadd.f32 %v3893, %v4073
      %v4156 = vadd.f32 %v3894, %v4078
      %v4157 = vadd.f32 %v3895, %v4081
      %v4158 = vadd.f32 %v3896, %v4086
      %v4159 = vadd.f32 %v3897, %v4089
      %v4160 = vadd.f32 %v3898, %v4094
      %v4161 = vadd.f32 %v3899, %v4097
      %v4162 = vadd.f32 %v3900, %v4102
      %v4163 = vadd.f32 %v3901, %v4105
      %v4164 = vadd.f32 %v3902, %v4110
      %v4165 = vadd.f32 %v3903, %v4113
      %v4166 = vadd.f32 %v3904, %v4118
      %v4167 = vadd.f32 %v3905, %v4121
      %v4168 = vadd.f32 %v3906, %v4126
      %v4169 = vadd.f32 %v3907, %v4129
      %v4170 = vadd.f32 %v3908, %v4134
      %v4171 = vadd.f32 %v3909, %v4137
      %v4172 = vld [vmem:[%s4] sm:$0x1]
      %v4174 = vlaneseq
      %v4175 = vshrl.u32 %v4174, 7
      %v4176 = vsub.s32 0, %v4175
      %v4177 = vrot.slane %v4172, %v4176
      %v4179 = vadd.f32 %v4140, %v4177
      %v4180 = vadd.f32 %v4141, %v4177
      %v4181 = vadd.f32 %v4142, %v4177
      %v4182 = vadd.f32 %v4143, %v4177
      %v4183 = vadd.f32 %v4144, %v4177
      %v4184 = vadd.f32 %v4145, %v4177
      %v4185 = vadd.f32 %v4146, %v4177
      %v4186 = vadd.f32 %v4147, %v4177
      %v4187 = vadd.f32 %v4148, %v4177
      %v4188 = vadd.f32 %v4149, %v4177
      %v4189 = vadd.f32 %v4150, %v4177
      %v4190 = vadd.f32 %v4151, %v4177
      %v4191 = vadd.f32 %v4152, %v4177
      %v4192 = vadd.f32 %v4153, %v4177
      %v4193 = vadd.f32 %v4154, %v4177
      %v4194 = vadd.f32 %v4155, %v4177
      %v4195 = vadd.f32 %v4156, %v4177
      %v4196 = vadd.f32 %v4157, %v4177
      %v4197 = vadd.f32 %v4158, %v4177
      %v4198 = vadd.f32 %v4159, %v4177
      %v4199 = vadd.f32 %v4160, %v4177
      %v4200 = vadd.f32 %v4161, %v4177
      %v4201 = vadd.f32 %v4162, %v4177
      %v4202 = vadd.f32 %v4163, %v4177
      %v4203 = vadd.f32 %v4164, %v4177
      %v4204 = vadd.f32 %v4165, %v4177
      %v4205 = vadd.f32 %v4166, %v4177
      %v4206 = vadd.f32 %v4167, %v4177
      %v4207 = vadd.f32 %v4168, %v4177
      %v4208 = vadd.f32 %v4169, %v4177
      %v4209 = vadd.f32 %v4170, %v4177
      %v4210 = vadd.f32 %v4171, %v4177
      %v4211 = vxor.u32 %v4179, 2147483648
      %v4212 = vxor.u32 %v4180, 2147483648
      %v4213 = vxor.u32 %v4181, 2147483648
      %v4214 = vxor.u32 %v4182, 2147483648
      %v4215 = vxor.u32 %v4183, 2147483648
      %v4216 = vxor.u32 %v4184, 2147483648
      %v4217 = vxor.u32 %v4185, 2147483648
      %v4218 = vxor.u32 %v4186, 2147483648
      %v4219 = vxor.u32 %v4187, 2147483648
      %v4220 = vxor.u32 %v4188, 2147483648
      %v4221 = vxor.u32 %v4189, 2147483648
      %v4222 = vxor.u32 %v4190, 2147483648
      %v4223 = vxor.u32 %v4191, 2147483648
      %v4224 = vxor.u32 %v4192, 2147483648
      %v4225 = vxor.u32 %v4193, 2147483648
      %v4226 = vxor.u32 %v4194, 2147483648
      %v4227 = vxor.u32 %v4195, 2147483648
      %v4228 = vxor.u32 %v4196, 2147483648
      %v4229 = vxor.u32 %v4197, 2147483648
      %v4230 = vxor.u32 %v4198, 2147483648
      %v4231 = vxor.u32 %v4199, 2147483648
      %v4232 = vxor.u32 %v4200, 2147483648
      %v4233 = vxor.u32 %v4201, 2147483648
      %v4234 = vxor.u32 %v4202, 2147483648
      %v4235 = vxor.u32 %v4203, 2147483648
      %v4236 = vxor.u32 %v4204, 2147483648
      %v4237 = vxor.u32 %v4205, 2147483648
      %v4238 = vxor.u32 %v4206, 2147483648
      %v4239 = vxor.u32 %v4207, 2147483648
      %v4240 = vxor.u32 %v4208, 2147483648
      %v4241 = vxor.u32 %v4209, 2147483648
      %v4242 = vxor.u32 %v4210, 2147483648
      %v4243 = vmul.f32 %v4211, 1.442695
      %v4244 = vpow.pop %v4243
      %v4245 = vmul.f32 %v4212, 1.442695
      %v4246 = vpow.pop %v4245
      %v4247 = vmul.f32 %v4213, 1.442695
      %v4248 = vpow.pop %v4247
      %v4249 = vmul.f32 %v4214, 1.442695
      %v4250 = vpow.pop %v4249
      %v4251 = vmul.f32 %v4215, 1.442695
      %v4252 = vpow.pop %v4251
      %v4253 = vmul.f32 %v4216, 1.442695
      %v4254 = vpow.pop %v4253
      %v4255 = vmul.f32 %v4217, 1.442695
      %v4256 = vpow.pop %v4255
      %v4257 = vmul.f32 %v4218, 1.442695
      %v4258 = vpow.pop %v4257
      %v4259 = vmul.f32 %v4219, 1.442695
      %v4260 = vpow.pop %v4259
      %v4261 = vmul.f32 %v4220, 1.442695
      %v4262 = vpow.pop %v4261
      %v4263 = vmul.f32 %v4221, 1.442695
      %v4264 = vpow.pop %v4263
      %v4265 = vmul.f32 %v4222, 1.442695
      %v4266 = vpow.pop %v4265
      %v4267 = vmul.f32 %v4223, 1.442695
      %v4268 = vpow.pop %v4267
      %v4269 = vmul.f32 %v4224, 1.442695
      %v4270 = vpow.pop %v4269
      %v4271 = vmul.f32 %v4225, 1.442695
      %v4272 = vpow.pop %v4271
      %v4273 = vmul.f32 %v4226, 1.442695
      %v4274 = vpow.pop %v4273
      %v4275 = vmul.f32 %v4227, 1.442695
      %v4276 = vpow.pop %v4275
      %v4277 = vmul.f32 %v4228, 1.442695
      %v4278 = vpow.pop %v4277
      %v4279 = vmul.f32 %v4229, 1.442695
      %v4280 = vpow.pop %v4279
      %v4281 = vmul.f32 %v4230, 1.442695
      %v4282 = vpow.pop %v4281
      %v4283 = vmul.f32 %v4231, 1.442695
      %v4284 = vpow.pop %v4283
      %v4285 = vmul.f32 %v4232, 1.442695
      %v4286 = vpow.pop %v4285
      %v4287 = vmul.f32 %v4233, 1.442695
      %v4288 = vpow.pop %v4287
      %v4289 = vmul.f32 %v4234, 1.442695
      %v4290 = vpow.pop %v4289
      %v4291 = vmul.f32 %v4235, 1.442695
      %v4292 = vpow.pop %v4291
      %v4293 = vmul.f32 %v4236, 1.442695
      %v4294 = vpow.pop %v4293
      %v4295 = vmul.f32 %v4237, 1.442695
      %v4296 = vpow.pop %v4295
      %v4297 = vmul.f32 %v4238, 1.442695
      %v4298 = vpow.pop %v4297
      %v4299 = vmul.f32 %v4239, 1.442695
      %v4300 = vpow.pop %v4299
      %v4301 = vmul.f32 %v4240, 1.442695
      %v4302 = vpow.pop %v4301
      %v4303 = vmul.f32 %v4241, 1.442695
      %v4304 = vpow.pop %v4303
      %v4305 = vmul.f32 %v4242, 1.442695
      %v4306 = vpow.pop %v4305
      %v4307 = vadd.f32 %v4244, 1.0
      %v4308 = vadd.f32 %v4246, 1.0
      %v4309 = vadd.f32 %v4248, 1.0
      %v4310 = vadd.f32 %v4250, 1.0
      %v4311 = vadd.f32 %v4252, 1.0
      %v4312 = vadd.f32 %v4254, 1.0
      %v4313 = vadd.f32 %v4256, 1.0
      %v4314 = vadd.f32 %v4258, 1.0
      %v4315 = vadd.f32 %v4260, 1.0
      %v4316 = vadd.f32 %v4262, 1.0
      %v4317 = vadd.f32 %v4264, 1.0
      %v4318 = vadd.f32 %v4266, 1.0
      %v4319 = vadd.f32 %v4268, 1.0
      %v4320 = vadd.f32 %v4270, 1.0
      %v4321 = vadd.f32 %v4272, 1.0
      %v4322 = vadd.f32 %v4274, 1.0
      %v4323 = vadd.f32 %v4276, 1.0
      %v4324 = vadd.f32 %v4278, 1.0
      %v4325 = vadd.f32 %v4280, 1.0
      %v4326 = vadd.f32 %v4282, 1.0
      %v4327 = vadd.f32 %v4284, 1.0
      %v4328 = vadd.f32 %v4286, 1.0
      %v4329 = vadd.f32 %v4288, 1.0
      %v4330 = vadd.f32 %v4290, 1.0
      %v4331 = vadd.f32 %v4292, 1.0
      %v4332 = vadd.f32 %v4294, 1.0
      %v4333 = vadd.f32 %v4296, 1.0
      %v4334 = vadd.f32 %v4298, 1.0
      %v4335 = vadd.f32 %v4300, 1.0
      %v4336 = vadd.f32 %v4302, 1.0
      %v4337 = vadd.f32 %v4304, 1.0
      %v4338 = vadd.f32 %v4306, 1.0
      %v4339 = vrcp.pop %v4307
      %v4340 = vmul.f32 1.0, %v4339
      %v4341 = vrcp.pop %v4308
      %v4342 = vmul.f32 1.0, %v4341
      %v4343 = vrcp.pop %v4309
      %v4344 = vmul.f32 1.0, %v4343
      %v4345 = vrcp.pop %v4310
      %v4346 = vmul.f32 1.0, %v4345
      %v4347 = vrcp.pop %v4311
      %v4348 = vmul.f32 1.0, %v4347
      %v4349 = vrcp.pop %v4312
      %v4350 = vmul.f32 1.0, %v4349
      %v4351 = vrcp.pop %v4313
      %v4352 = vmul.f32 1.0, %v4351
      %v4353 = vrcp.pop %v4314
      %v4354 = vmul.f32 1.0, %v4353
      %v4355 = vrcp.pop %v4315
      %v4356 = vmul.f32 1.0, %v4355
      %v4357 = vrcp.pop %v4316
      %v4358 = vmul.f32 1.0, %v4357
      %v4359 = vrcp.pop %v4317
      %v4360 = vmul.f32 1.0, %v4359
      %v4361 = vrcp.pop %v4318
      %v4362 = vmul.f32 1.0, %v4361
      %v4363 = vrcp.pop %v4319
      %v4364 = vmul.f32 1.0, %v4363
      %v4365 = vrcp.pop %v4320
      %v4366 = vmul.f32 1.0, %v4365
      %v4367 = vrcp.pop %v4321
      %v4368 = vmul.f32 1.0, %v4367
      %v4369 = vrcp.pop %v4322
      %v4370 = vmul.f32 1.0, %v4369
      %v4371 = vrcp.pop %v4323
      %v4372 = vmul.f32 1.0, %v4371
      %v4373 = vrcp.pop %v4324
      %v4374 = vmul.f32 1.0, %v4373
      %v4375 = vrcp.pop %v4325
      %v4376 = vmul.f32 1.0, %v4375
      %v4377 = vrcp.pop %v4326
      %v4378 = vmul.f32 1.0, %v4377
      %v4379 = vrcp.pop %v4327
      %v4380 = vmul.f32 1.0, %v4379
      %v4381 = vrcp.pop %v4328
      %v4382 = vmul.f32 1.0, %v4381
      %v4383 = vrcp.pop %v4329
      %v4384 = vmul.f32 1.0, %v4383
      %v4385 = vrcp.pop %v4330
      %v4386 = vmul.f32 1.0, %v4385
      %v4387 = vrcp.pop %v4331
      %v4388 = vmul.f32 1.0, %v4387
      %v4389 = vrcp.pop %v4332
      %v4390 = vmul.f32 1.0, %v4389
      %v4391 = vrcp.pop %v4333
      %v4392 = vmul.f32 1.0, %v4391
      %v4393 = vrcp.pop %v4334
      %v4394 = vmul.f32 1.0, %v4393
      %v4395 = vrcp.pop %v4335
      %v4396 = vmul.f32 1.0, %v4395
      %v4397 = vrcp.pop %v4336
      %v4398 = vmul.f32 1.0, %v4397
      %v4399 = vrcp.pop %v4337
      %v4400 = vmul.f32 1.0, %v4399
      %v4401 = vrcp.pop %v4338
      %v4402 = vmul.f32 1.0, %v4401
      %v4403 = vmul.f32 %v4179, %v4340
      %v4404 = vmul.f32 %v4180, %v4342
      %v4405 = vmul.f32 %v4181, %v4344
      %v4406 = vmul.f32 %v4182, %v4346
      %v4407 = vmul.f32 %v4183, %v4348
      %v4408 = vmul.f32 %v4184, %v4350
      %v4409 = vmul.f32 %v4185, %v4352
      %v4410 = vmul.f32 %v4186, %v4354
      %v4411 = vmul.f32 %v4187, %v4356
      %v4412 = vmul.f32 %v4188, %v4358
      %v4413 = vmul.f32 %v4189, %v4360
      %v4414 = vmul.f32 %v4190, %v4362
      %v4415 = vmul.f32 %v4191, %v4364
      %v4416 = vmul.f32 %v4192, %v4366
      %v4417 = vmul.f32 %v4193, %v4368
      %v4418 = vmul.f32 %v4194, %v4370
      %v4419 = vmul.f32 %v4195, %v4372
      %v4420 = vmul.f32 %v4196, %v4374
      %v4421 = vmul.f32 %v4197, %v4376
      %v4422 = vmul.f32 %v4198, %v4378
      %v4423 = vmul.f32 %v4199, %v4380
      %v4424 = vmul.f32 %v4200, %v4382
      %v4425 = vmul.f32 %v4201, %v4384
      %v4426 = vmul.f32 %v4202, %v4386
      %v4427 = vmul.f32 %v4203, %v4388
      %v4428 = vmul.f32 %v4204, %v4390
      %v4429 = vmul.f32 %v4205, %v4392
      %v4430 = vmul.f32 %v4206, %v4394
      %v4431 = vmul.f32 %v4207, %v4396
      %v4432 = vmul.f32 %v4208, %v4398
      %v4433 = vmul.f32 %v4209, %v4400
      %v4434 = vmul.f32 %v4210, %v4402
      %4435 = vst.msk [vmem:[%s224] sm:$0xff] %vm226, %v4403
      %4436 = vst.msk [vmem:[%s224 + $0x8] sm:$0xff] %vm226, %v4404
      %4437 = vst.msk [vmem:[%s224 + $0x10] sm:$0xff] %vm226, %v4405
      %4438 = vst.msk [vmem:[%s224 + $0x18] sm:$0xff] %vm226, %v4406
      %4439 = vst.msk [vmem:[%s224 + $0x20] sm:$0xff] %vm226, %v4407
      %4440 = vst.msk [vmem:[%s224 + $0x28] sm:$0xff] %vm226, %v4408
      %4441 = vst.msk [vmem:[%s224 + $0x30] sm:$0xff] %vm226, %v4409
      %4442 = vst.msk [vmem:[%s224 + $0x38] sm:$0xff] %vm226, %v4410
      %4443 = vst.msk [vmem:[%s224 + $0x40] sm:$0xff] %vm226, %v4411
      %4444 = vst.msk [vmem:[%s224 + $0x48] sm:$0xff] %vm226, %v4412
      %4445 = vst.msk [vmem:[%s224 + $0x50] sm:$0xff] %vm226, %v4413
      %4446 = vst.msk [vmem:[%s224 + $0x58] sm:$0xff] %vm226, %v4414
      %4447 = vst.msk [vmem:[%s224 + $0x60] sm:$0xff] %vm226, %v4415
      %4448 = vst.msk [vmem:[%s224 + $0x68] sm:$0xff] %vm226, %v4416
      %4449 = vst.msk [vmem:[%s224 + $0x70] sm:$0xff] %vm226, %v4417
      %4450 = vst.msk [vmem:[%s224 + $0x78] sm:$0xff] %vm226, %v4418
      %4451 = vst.msk [vmem:[%s224 + $0x80] sm:$0xff] %vm226, %v4419
      %4452 = vst.msk [vmem:[%s224 + $0x88] sm:$0xff] %vm226, %v4420
      %4453 = vst.msk [vmem:[%s224 + $0x90] sm:$0xff] %vm226, %v4421
      %4454 = vst.msk [vmem:[%s224 + $0x98] sm:$0xff] %vm226, %v4422
      %4455 = vst.msk [vmem:[%s224 + $0xa0] sm:$0xff] %vm226, %v4423
      %4456 = vst.msk [vmem:[%s224 + $0xa8] sm:$0xff] %vm226, %v4424
      %4457 = vst.msk [vmem:[%s224 + $0xb0] sm:$0xff] %vm226, %v4425
      %4458 = vst.msk [vmem:[%s224 + $0xb8] sm:$0xff] %vm226, %v4426
      %4459 = vst.msk [vmem:[%s224 + $0xc0] sm:$0xff] %vm226, %v4427
      %4460 = vst.msk [vmem:[%s224 + $0xc8] sm:$0xff] %vm226, %v4428
      %4461 = vst.msk [vmem:[%s224 + $0xd0] sm:$0xff] %vm226, %v4429
      %4462 = vst.msk [vmem:[%s224 + $0xd8] sm:$0xff] %vm226, %v4430
      %4463 = vst.msk [vmem:[%s224 + $0xe0] sm:$0xff] %vm226, %v4431
      %4464 = vst.msk [vmem:[%s224 + $0xe8] sm:$0xff] %vm226, %v4432
      %4465 = vst.msk [vmem:[%s224 + $0xf0] sm:$0xff] %vm226, %v4433
      %4466 = vst.msk [vmem:[%s224 + $0xf8] sm:$0xff] %vm226, %v4434
      %p4467 = scmp.lt.s32.totalorder %s16, 1
      %s4468 = scalar_select %p4467, %s16, 1
      %s4469 = smul.addr %s4468, 32
      %s4470 = smul.addr %s4469, 8
      %s4471 = scalar_lea.vmem %s5, %s4470
      // Predicated region
      $region41: #{sppf_forward.1} parent=39 // pred_check
        %p4472 = pneg %p144
      $region42: #{sppf_forward.1} parent=39 // pred_check_branch
        %4474 = sbr.rel (%p4472) target = $region44
      $region43: #{sppf_forward.1} parent=39 // pred_region
        _
      $region44: #{sppf_forward.1} parent=39 // pred_fallthru
        _
    $region40: #{sppf_forward.1} parent=5 // pred_fallthru
      _
    %p4475 = scmp.le.s32.totalorder 2, %s11
    // Predicated region
    $region45: #{sppf_forward.1} parent=5 // pred_check
      %p4476 = pneg %p4475
    $region46: #{sppf_forward.1} parent=5 // pred_check_branch
      %4478 = sbr.rel (%p4476) target = $region48
    $region47: #{sppf_forward.1} parent=5 // pred_region
      %s4479 = ssub.s32 %s11, 2
      // Predicated region
      $region49: #{sppf_forward.1} parent=47 // pred_check
        %p4480 = pneg %p150
      $region50: #{sppf_forward.1} parent=47 // pred_check_branch
        %4482 = sbr.rel (%p4480) target = $region52
      $region51: #{sppf_forward.1} parent=47 // pred_region
        %p4483 = scmp.lt.s32.totalorder %s17, 1
        %s4484 = scalar_select %p4483, %s17, 1
        %s4485 = smul.addr %s4484, 32
        %s4486 = smul.addr %s4485, 8
        %s4487 = scalar_lea.vmem %s5, %s4486
      $region52: #{sppf_forward.1} parent=47 // pred_fallthru
        _
    $region48: #{sppf_forward.1} parent=5 // pred_fallthru
      _
  $region6: #{sppf_forward.1} parent=0 // loop_footer
    %s15 = sadd.s32 1, %s11
  $region7: #{sppf_forward.1} parent=0 // loop_footer_branch
    %10 = sbr.rel target = $region3
  $region8: #{sppf_forward.1} parent=0 // loop_exit
    _

</llo_original>
